<compile_context>
chip_gen: v5e
topology: v5e:2x2
jax: 0.10.0
libtpu: 0.0.40
codegen_flags: <defaults>
</compile_context>

<pallas_src>
import jax
import jax.numpy as jnp
from jax.experimental import pallas as pl
from jax.experimental.pallas import tpu as pltpu


def _vmem_spec():
    # whole-array block resident in VMEM (shapes here are tiny)
    return pl.BlockSpec(memory_space=pltpu.MemorySpace.VMEM)


# ------------------------------------------------------------------------------
# Fused kernel factory: num_layers bi-GRU layers + attention + pooling
# (+ optional FC + log-softmax).  Per-layer weights are passed pre-arranged:
#   w_in  (F, 6H)  : [fwd r|z|n , bwd r|z|n] input projection (both directions)
#   b_in  (1, 6H)  : input bias with r/z recurrent biases folded in
#   wh_blk(2H, 6H) : block-diagonal recurrent weight, gate-major [r|z|n] x [fwd|bwd]
#   bhn   (1, 2H)  : n-gate recurrent bias [fwd|bwd]
# ------------------------------------------------------------------------------
def _make_stack_kernel(num_layers, fuse_fc):
    def kernel(*refs):
        x_ref, mcat_ref = refs[0], refs[1]
        p = 2
        layer_refs = []
        for _ in range(num_layers):
            layer_refs.append(refs[p:p + 4])
            p += 4
        att_w_ref, att_b_ref, ctx_ref = refs[p], refs[p + 1], refs[p + 2]
        p += 3
        if fuse_fc:
            fc_w_ref, fc_b_ref = refs[p], refs[p + 1]
            p += 2
        out0_ref, w_ref = refs[p], refs[p + 1]
        act_scr = refs[p + 2]                              # (T, B, 2H) VMEM scratch

        T, B, H2 = act_scr.shape
        H = H2 // 2
        f32 = jnp.float32

        m_cat = mcat_ref[...]                              # (T,B,2H): [mask(t) | mask(T-1-t)]

        for l, (win_ref, bin_ref, whb_ref, bhn_ref) in enumerate(layer_refs):
            xin = x_ref[...] if l == 0 else act_scr[...]
            Fin = xin.shape[-1]
            # Hoisted input projection: ONE matmul covers both directions & all gates.
            gi_all = (jnp.dot(xin.reshape(T * B, Fin), win_ref[...],
                              preferred_element_type=f32)
                      + bin_ref[...]).reshape(T, B, 6 * H)
            gif = gi_all[:, :, :3 * H]                               # forward  [r z n]
            gib = gi_all[:, :, 3 * H:]                               # backward [r z n]
            # time-reverse backward projections once (loop index runs forward only)
            gib = jnp.stack([gib[T - 1 - t] for t in range(T)], axis=0)
            # pre-split per-gate inputs, each (T, B, 2H) = [fwd | bwd]  (off the serial path)
            gi_r = jnp.concatenate([gif[:, :, :H], gib[:, :, :H]], axis=-1)
            gi_z = jnp.concatenate([gif[:, :, H:2 * H], gib[:, :, H:2 * H]], axis=-1)
            gi_n = jnp.concatenate([gif[:, :, 2 * H:], gib[:, :, 2 * H:]], axis=-1)

            wh_blk = whb_ref[...]                                    # (2H, 6H) block-diag
            bhn = jnp.broadcast_to(bhn_ref[...], (B, H2))            # hoisted broadcast

            h = jnp.zeros((B, H2), f32)                              # [h_fwd | h_bwd]
            # Fully unrolled time loop; ONE MXU matmul per step covers both directions.
            for i in range(T):
                j = T - 1 - i
                gh = jnp.dot(h, wh_blk, preferred_element_type=f32)  # (B, 6H)
                r = jax.nn.sigmoid(gi_r[i] + gh[:, :H2])
                z = jax.nn.sigmoid(gi_z[i] + gh[:, H2:2 * H2])
                n = jnp.tanh(gi_n[i] + r * (gh[:, 2 * H2:] + bhn))
                h_new = n + z * (h - n)                              # == (1-z)*n + z*h
                m_i = m_cat[i]
                out_v = m_i * h_new                                  # zero at padded positions
                h = h + m_i * (h_new - h)                            # packed: freeze past length
                act_scr[i, :, :H] = out_v[:, :H]                     # fwd output @ t = i
                act_scr[j, :, H:] = out_v[:, H:]                     # bwd output @ t = j

        # ---- attention + weighted pooling epilogue (activation never leaves HBM) ----
        hfull = act_scr[...]                                         # (T, B, 2H)
        u = jnp.tanh(jnp.dot(hfull.reshape(T * B, H2), att_w_ref[...],
                             preferred_element_type=f32) + att_b_ref[...])
        # context score: VPU multiply + lane reduction (avoids an N=1 MXU matmul)
        s = jnp.sum(u * ctx_ref[...], axis=-1, keepdims=True)        # (T*B, 1)
        m2d = m_cat[:, :, :1].reshape(T * B, 1)                      # forward-time mask
        # masked global max for numerical stability; cancels exactly in the ratio
        smax = jnp.max(jnp.where(m2d > 0.0, s, -1e30))
        att = jnp.exp(jnp.minimum(s - smax, 0.0)) * m2d
        inv = pl.reciprocal(jnp.sum(att, keepdims=True), approx=True)   # EUP, not VPU divide
        w = att * inv                                                 # GLOBAL normalization (ref)
        w3 = w.reshape(T, B, 1)
        w_ref[...] = w3
        pooled = jnp.sum(w3 * hfull, axis=0)                          # (B, 2H)

        if fuse_fc:
            zlin = jnp.dot(pooled, fc_w_ref[...],
                           preferred_element_type=f32) + fc_b_ref[...]
            mx = jnp.max(zlin, axis=-1, keepdims=True)
            e = jnp.exp(zlin - mx)
            out0_ref[...] = zlin - mx - jnp.log(jnp.sum(e, axis=-1, keepdims=True))
        else:
            out0_ref[...] = pooled

    return kernel


# ------------------------------------------------------------------------------
# Weight pre-arrangement (pure-JAX glue, tiny)
# ------------------------------------------------------------------------------
def _prep_layer(lp):
    wif, whf, bif, bhf, wib, whb, bib, bhb = lp
    H = whf.shape[0]
    w_in = jnp.concatenate([wif, wib], axis=-1)                       # (F, 6H)
    z1 = jnp.zeros((1, H), jnp.float32)
    b_in = jnp.concatenate(
        [bif + jnp.concatenate([bhf[:, :2 * H], z1], axis=-1),        # fold r/z recurrent bias
         bib + jnp.concatenate([bhb[:, :2 * H], z1], axis=-1)], axis=-1)
    zH = jnp.zeros((H, H), jnp.float32)

    def blk(g):                                                       # gate g of [r,z,n]
        top = jnp.concatenate([whf[:, g * H:(g + 1) * H], zH], axis=-1)
        bot = jnp.concatenate([zH, whb[:, g * H:(g + 1) * H]], axis=-1)
        return jnp.concatenate([top, bot], axis=0)                    # (2H, 2H) block-diag

    wh_blk = jnp.concatenate([blk(0), blk(1), blk(2)], axis=-1)       # (2H, 6H)
    bhn = jnp.concatenate([bhf[:, 2 * H:], bhb[:, 2 * H:]], axis=-1)  # (1, 2H)
    return w_in, b_in, wh_blk, bhn


# ------------------------------------------------------------------------------
# Wrapper: one fused pallas_call per GRU stack
# ------------------------------------------------------------------------------
def _run_stack(x_btf, mask_bt, layers, att_w, att_b, ctx_v, fc_w=None, fc_b=None):
    """x: (B, T, F) batch-first, mask: (B, T).
    Returns (pooled | log-softmax scores)[:B] and attention weights (B, T)."""
    Borig = x_btf.shape[0]
    x_tm = jnp.transpose(x_btf, (1, 0, 2)).astype(jnp.float32)        # time-major, once
    m_tm = jnp.transpose(mask_bt, (1, 0)).astype(jnp.float32)         # (T, B)
    T, B, _ = x_tm.shape
    Bp = -(-B // 8) * 8                                               # sublane multiple
    if Bp != B:
        x_tm = jnp.pad(x_tm, ((0, 0), (0, Bp - B), (0, 0)))
        m_tm = jnp.pad(m_tm, ((0, 0), (0, Bp - B)))
    H = layers[0][1].shape[0]
    # combined per-step blend mask [fwd mask(t) | bwd mask(T-1-t)], broadcast once
    mbh = jnp.broadcast_to(m_tm[:, :, None], (T, Bp, H))
    m_cat = jnp.concatenate([mbh, mbh[::-1]], axis=-1)                # (T, Bp, 2H)

    flat_w = [w for lp in layers for w in _prep_layer(lp)]
    fuse_fc = fc_w is not None
    out0_dim = fc_b.shape[-1] if fuse_fc else 2 * H
    extra = [att_w, att_b, ctx_v.reshape(1, -1)]
    if fuse_fc:
        extra += [fc_w, fc_b]
    n_in = 2 + len(flat_w) + len(extra)

    out0, w_att = pl.pallas_call(
        _make_stack_kernel(len(layers), fuse_fc),
        out_shape=(jax.ShapeDtypeStruct((Bp, out0_dim), jnp.float32),
                   jax.ShapeDtypeStruct((T, Bp, 1), jnp.float32)),
        in_specs=[_vmem_spec()] * n_in,
        out_specs=(_vmem_spec(), _vmem_spec()),
        scratch_shapes=[pltpu.VMEM((T, Bp, 2 * H), jnp.float32)],
    )(x_tm, m_cat, *flat_w, *extra)

    return out0[:Borig], jnp.transpose(w_att[:, :Borig, 0], (1, 0))


# ------------------------------------------------------------------------------
# Parameter initialization (deterministic, synthetic)
# ------------------------------------------------------------------------------
def init_params(key, cfg):
    E = cfg['embed_dim']
    Hw, Hs = cfg['word_gru_hidden_dim'], cfg['sent_gru_hidden_dim']
    Aw, As = cfg['word_att_dim'], cfg['sent_att_dim']
    V, C = cfg['vocab_size'], cfg['num_classes']

    keys = iter(jax.random.split(key, 128))
    scale = 0.1

    def nrm(shape):
        return jax.random.normal(next(keys), shape, jnp.float32) * scale

    def gru_layers(num_layers, in_dim, H):
        layers = []
        for _ in range(num_layers):
            shapes = [(in_dim, 3 * H), (H, 3 * H), (1, 3 * H), (1, 3 * H),   # forward
                      (in_dim, 3 * H), (H, 3 * H), (1, 3 * H), (1, 3 * H)]   # backward
            layers.append(tuple(nrm(s) for s in shapes))
            in_dim = 2 * H
        return layers

    return {
        'embedding': nrm((V, E)),
        'word_gru': gru_layers(cfg['word_gru_num_layers'], E, Hw),
        'word_att_w': nrm((2 * Hw, Aw)),
        'word_att_b': nrm((1, Aw)),
        'word_ctx': nrm((Aw, 1)),
        'sent_gru': gru_layers(cfg['sent_gru_num_layers'], 2 * Hw, Hs),
        'sent_att_w': nrm((2 * Hs, As)),
        'sent_att_b': nrm((1, As)),
        'sent_ctx': nrm((As, 1)),
        'fc_w': nrm((2 * Hs, C)),
        'fc_b': nrm((1, C)),
    }


# ------------------------------------------------------------------------------
# Full HAN forward (glue: sorting / static packing emulation / embedding lookup)
# ------------------------------------------------------------------------------
def han_forward(params, docs, doc_lengths, sent_lengths):
    num_docs, max_doc_len, max_sent_len = docs.shape
    N = num_docs * max_doc_len

    # --- SentenceAttention: sort docs by length descending (stable) ---
    doc_perm = jnp.argsort(-doc_lengths)
    docs_s = docs[doc_perm]
    doc_len_s = doc_lengths[doc_perm]
    sent_len_s = sent_lengths[doc_perm]

    # --- static emulation of pack_padded_sequence over the doc (sentence) axis ---
    b_idx = jnp.arange(num_docs)[:, None]
    t_idx = jnp.arange(max_doc_len)[None, :]
    doc_valid = t_idx < doc_len_s[:, None]                       # (B, Td)
    key_valid = t_idx * num_docs + b_idx                         # time-major packed order
    key = jnp.where(doc_valid, key_valid, N + b_idx * max_doc_len + t_idx)
    pack_perm = jnp.argsort(key.reshape(-1))                     # packed pos -> flat (b*Td+t)
    inv_pack = jnp.argsort(pack_perm)                            # flat -> packed pos

    packed_sents = docs_s.reshape(N, max_sent_len)[pack_perm]
    packed_sent_len = jnp.where(doc_valid.reshape(-1),
                                sent_len_s.reshape(-1), 0)[pack_perm]

    # --- WordAttention: sort packed sentences by length descending (stable) ---
    w_perm = jnp.argsort(-packed_sent_len)
    sents_sorted = packed_sents[w_perm]
    lens_sorted = packed_sent_len[w_perm]

    # TODO(synk): embedding gather stays XLA glue (data-dependent gather).
    emb = params['embedding'][sents_sorted]                      # (N, Tw, E)
    word_mask = (jnp.arange(max_sent_len)[None, :] < lens_sorted[:, None]).astype(jnp.float32)

    sent_vecs_sorted, word_att_sorted = _run_stack(
        emb, word_mask, params['word_gru'],
        params['word_att_w'], params['word_att_b'], params['word_ctx'])

    # un-sort sentence embeddings (attention weights stay in sorted order, as in torch)
    w_unperm = jnp.argsort(w_perm)
    sent_vecs = sent_vecs_sorted[w_unperm]                       # time-major packed order

    # --- sentence-level bi-GRU + attention + FC + log-softmax (one fused kernel) ---
    doc_sents = sent_vecs[inv_pack].reshape(num_docs, max_doc_len, -1)
    doc_mask = doc_valid.astype(jnp.float32)

    scores_sorted, sent_att_weights = _run_stack(
        doc_sents, doc_mask, params['sent_gru'],
        params['sent_att_w'], params['sent_att_b'], params['sent_ctx'],
        fc_w=params['fc_w'], fc_b=params['fc_b'])

    # word attention weights re-"pad_packed" with the doc batch sizes, reproducing the
    # reference's ordering (sorted word-att rows indexed by time-major packed indices).
    wa = word_att_sorted[inv_pack].reshape(num_docs, max_doc_len, max_sent_len)
    word_att_weights = jnp.where(doc_valid[:, :, None], wa, 0.0)
    # TODO(synk): reference pads att weights only to the max *valid* lengths; here the
    # static padded widths are used (extra entries are exact zeros).

    # scores un-permuted (fc/log-softmax are row-wise so they commute with the permutation)
    doc_unperm = jnp.argsort(doc_perm)
    scores = scores_sorted[doc_unperm]

    return scores, word_att_weights, sent_att_weights


# ------------------------------------------------------------------------------
if __name__ == "__main__":
    cfg = dict(num_classes=5, vocab_size=50, embed_dim=32,
               word_gru_hidden_dim=32, sent_gru_hidden_dim=32,
               word_gru_num_layers=2,   # exercises multi-layer fusion inside one kernel
               sent_gru_num_layers=1,
               word_att_dim=32, sent_att_dim=32)

    key = jax.random.PRNGKey(0)
    pkey, dkey, skey = jax.random.split(key, 3)
    params = init_params(pkey, cfg)

    num_docs, max_doc_len, max_sent_len = 2, 4, 8
    docs = jax.random.randint(dkey, (num_docs, max_doc_len, max_sent_len),
                              0, cfg['vocab_size'], dtype=jnp.int32)
    doc_lengths = jnp.array([3, 4], dtype=jnp.int32)
    sent_lengths = jax.random.randint(skey, (num_docs, max_doc_len),
                                      1, max_sent_len + 1, dtype=jnp.int32)

    fwd = jax.jit(han_forward)
    scores, word_att, sent_att = fwd(params, docs, doc_lengths, sent_lengths)
    jax.block_until_ready((scores, word_att, sent_att))

    assert scores.shape == (num_docs, cfg['num_classes'])
    assert word_att.shape == (num_docs, max_doc_len, max_sent_len)
    assert sent_att.shape == (num_docs, max_doc_len)
    assert bool(jnp.all(jnp.isfinite(scores)))
    assert bool(jnp.all(jnp.isfinite(word_att)))
    assert bool(jnp.all(jnp.isfinite(sent_att)))
    print("KERNEL_OK")
</pallas_src>

<mosaic_0001>
module attributes {stable_mosaic.version = 11 : i64} {
  func.func @kernel(%arg0: memref<4x8x64xf32, #tpu.memory_space<vmem>>, %arg1: memref<4x8x64xf32, #tpu.memory_space<vmem>>, %arg2: memref<64x192xf32, #tpu.memory_space<vmem>>, %arg3: memref<1x192xf32, #tpu.memory_space<vmem>>, %arg4: memref<64x192xf32, #tpu.memory_space<vmem>>, %arg5: memref<1x64xf32, #tpu.memory_space<vmem>>, %arg6: memref<64x32xf32, #tpu.memory_space<vmem>>, %arg7: memref<1x32xf32, #tpu.memory_space<vmem>>, %arg8: memref<1x32xf32, #tpu.memory_space<vmem>>, %arg9: memref<64x5xf32, #tpu.memory_space<vmem>>, %arg10: memref<1x5xf32, #tpu.memory_space<vmem>>, %arg11: memref<8x5xf32, #tpu.memory_space<vmem>>, %arg12: memref<4x8x1xf32, #tpu.memory_space<vmem>>, %arg13: memref<4x8x64xf32, #tpu.memory_space<vmem>>) attributes {dimension_semantics = [], scalar_prefetch = 0 : i64, scratch_operands = 1 : i64, tpu.core_type = #tpu.core_type<tc>} {
    %c0 = arith.constant 0 : index
    %c0_0 = arith.constant 0 : index
    %c0_1 = arith.constant 0 : index
    %0 = vector.load %arg1[%c0, %c0_0, %c0_1] : memref<4x8x64xf32, #tpu.memory_space<vmem>>, vector<4x8x64xf32>
    %c0_2 = arith.constant 0 : index
    %c0_3 = arith.constant 0 : index
    %c0_4 = arith.constant 0 : index
    %1 = vector.load %arg0[%c0_2, %c0_3, %c0_4] : memref<4x8x64xf32, #tpu.memory_space<vmem>>, vector<4x8x64xf32>
    %2 = vector.shape_cast %1 : vector<4x8x64xf32> to vector<32x64xf32>
    %c0_5 = arith.constant 0 : index
    %c0_6 = arith.constant 0 : index
    %3 = vector.load %arg2[%c0_5, %c0_6] : memref<64x192xf32, #tpu.memory_space<vmem>>, vector<64x192xf32>
    %cst = arith.constant dense<0.000000e+00> : vector<32x192xf32>
    %4 = tpu.matmul %2, %3, %cst {dimension_numbers = #tpu.dot_dimension_numbers<[1], [0], [0], [1], [0, 0, 1, 1], [], []>} : vector<32x64xf32>, vector<64x192xf32>, vector<32x192xf32> -> vector<32x192xf32>
    %c0_7 = arith.constant 0 : index
    %c0_8 = arith.constant 0 : index
    %5 = vector.load %arg3[%c0_7, %c0_8] : memref<1x192xf32, #tpu.memory_space<vmem>>, vector<1x192xf32>
    %6 = vector.broadcast %5 : vector<1x192xf32> to vector<32x192xf32>
    %7 = arith.addf %4, %6 : vector<32x192xf32>
    %8 = vector.shape_cast %7 : vector<32x192xf32> to vector<4x8x192xf32>
    %9 = vector.extract_strided_slice %8 {offsets = [0, 0, 0], sizes = [4, 8, 96], strides = [1, 1, 1]} : vector<4x8x192xf32> to vector<4x8x96xf32>
    %10 = vector.extract_strided_slice %8 {offsets = [0, 0, 96], sizes = [4, 8, 96], strides = [1, 1, 1]} : vector<4x8x192xf32> to vector<4x8x96xf32>
    %11 = vector.extract_strided_slice %10 {offsets = [3, 0, 0], sizes = [1, 8, 96], strides = [1, 1, 1]} : vector<4x8x96xf32> to vector<1x8x96xf32>
    %12 = vector.shape_cast %11 : vector<1x8x96xf32> to vector<8x96xf32>
    %13 = vector.extract_strided_slice %10 {offsets = [2, 0, 0], sizes = [1, 8, 96], strides = [1, 1, 1]} : vector<4x8x96xf32> to vector<1x8x96xf32>
    %14 = vector.shape_cast %13 : vector<1x8x96xf32> to vector<8x96xf32>
    %15 = vector.extract_strided_slice %10 {offsets = [1, 0, 0], sizes = [1, 8, 96], strides = [1, 1, 1]} : vector<4x8x96xf32> to vector<1x8x96xf32>
    %16 = vector.shape_cast %15 : vector<1x8x96xf32> to vector<8x96xf32>
    %17 = vector.extract_strided_slice %10 {offsets = [0, 0, 0], sizes = [1, 8, 96], strides = [1, 1, 1]} : vector<4x8x96xf32> to vector<1x8x96xf32>
    %18 = vector.shape_cast %17 : vector<1x8x96xf32> to vector<8x96xf32>
    %19 = vector.shape_cast %12 : vector<8x96xf32> to vector<1x8x96xf32>
    %20 = vector.shape_cast %14 : vector<8x96xf32> to vector<1x8x96xf32>
    %21 = vector.shape_cast %16 : vector<8x96xf32> to vector<1x8x96xf32>
    %22 = vector.shape_cast %18 : vector<8x96xf32> to vector<1x8x96xf32>
    %23 = tpu.concatenate %19, %20, %21, %22 in 0 : vector<1x8x96xf32>, vector<1x8x96xf32>, vector<1x8x96xf32>, vector<1x8x96xf32> -> vector<4x8x96xf32>
    %24 = vector.extract_strided_slice %9 {offsets = [0, 0, 0], sizes = [4, 8, 32], strides = [1, 1, 1]} : vector<4x8x96xf32> to vector<4x8x32xf32>
    %25 = vector.extract_strided_slice %23 {offsets = [0, 0, 0], sizes = [4, 8, 32], strides = [1, 1, 1]} : vector<4x8x96xf32> to vector<4x8x32xf32>
    %26 = tpu.concatenate %24, %25 in 2 : vector<4x8x32xf32>, vector<4x8x32xf32> -> vector<4x8x64xf32>
    %27 = vector.extract_strided_slice %9 {offsets = [0, 0, 32], sizes = [4, 8, 32], strides = [1, 1, 1]} : vector<4x8x96xf32> to vector<4x8x32xf32>
    %28 = vector.extract_strided_slice %23 {offsets = [0, 0, 32], sizes = [4, 8, 32], strides = [1, 1, 1]} : vector<4x8x96xf32> to vector<4x8x32xf32>
    %29 = tpu.concatenate %27, %28 in 2 : vector<4x8x32xf32>, vector<4x8x32xf32> -> vector<4x8x64xf32>
    %30 = vector.extract_strided_slice %9 {offsets = [0, 0, 64], sizes = [4, 8, 32], strides = [1, 1, 1]} : vector<4x8x96xf32> to vector<4x8x32xf32>
    %31 = vector.extract_strided_slice %23 {offsets = [0, 0, 64], sizes = [4, 8, 32], strides = [1, 1, 1]} : vector<4x8x96xf32> to vector<4x8x32xf32>
    %32 = tpu.concatenate %30, %31 in 2 : vector<4x8x32xf32>, vector<4x8x32xf32> -> vector<4x8x64xf32>
    %c0_9 = arith.constant 0 : index
    %c0_10 = arith.constant 0 : index
    %33 = vector.load %arg4[%c0_9, %c0_10] : memref<64x192xf32, #tpu.memory_space<vmem>>, vector<64x192xf32>
    %c0_11 = arith.constant 0 : index
    %c0_12 = arith.constant 0 : index
    %34 = vector.load %arg5[%c0_11, %c0_12] : memref<1x64xf32, #tpu.memory_space<vmem>>, vector<1x64xf32>
    %35 = vector.shape_cast %34 : vector<1x64xf32> to vector<1x64xf32>
    %36 = vector.broadcast %35 : vector<1x64xf32> to vector<8x64xf32>
    %cst_13 = arith.constant 0.000000e+00 : f32
    %37 = vector.broadcast %cst_13 : f32 to vector<8x64xf32>
    %cst_14 = arith.constant dense<0.000000e+00> : vector<8x192xf32>
    %38 = tpu.matmul %37, %33, %cst_14 {dimension_numbers = #tpu.dot_dimension_numbers<[1], [0], [0], [1], [0, 0, 1, 1], [], []>} : vector<8x64xf32>, vector<64x192xf32>, vector<8x192xf32> -> vector<8x192xf32>
    %39 = vector.extract_strided_slice %26 {offsets = [0, 0, 0], sizes = [1, 8, 64], strides = [1, 1, 1]} : vector<4x8x64xf32> to vector<1x8x64xf32>
    %40 = vector.shape_cast %39 : vector<1x8x64xf32> to vector<8x64xf32>
    %41 = vector.extract_strided_slice %38 {offsets = [0, 0], sizes = [8, 64], strides = [1, 1]} : vector<8x192xf32> to vector<8x64xf32>
    %42 = arith.addf %40, %41 : vector<8x64xf32>
    %43 = arith.negf %42 : vector<8x64xf32>
    %44 = math.exp %43 : vector<8x64xf32>
    %cst_15 = arith.constant 1.000000e+00 : f32
    %45 = vector.broadcast %cst_15 : f32 to vector<8x64xf32>
    %46 = arith.addf %45, %44 : vector<8x64xf32>
    %47 = arith.divf %45, %46 : vector<8x64xf32>
    %48 = vector.extract_strided_slice %29 {offsets = [0, 0, 0], sizes = [1, 8, 64], strides = [1, 1, 1]} : vector<4x8x64xf32> to vector<1x8x64xf32>
    %49 = vector.shape_cast %48 : vector<1x8x64xf32> to vector<8x64xf32>
    %50 = vector.extract_strided_slice %38 {offsets = [0, 64], sizes = [8, 64], strides = [1, 1]} : vector<8x192xf32> to vector<8x64xf32>
    %51 = arith.addf %49, %50 : vector<8x64xf32>
    %52 = arith.negf %51 : vector<8x64xf32>
    %53 = math.exp %52 : vector<8x64xf32>
    %cst_16 = arith.constant 1.000000e+00 : f32
    %54 = vector.broadcast %cst_16 : f32 to vector<8x64xf32>
    %55 = arith.addf %54, %53 : vector<8x64xf32>
    %56 = arith.divf %54, %55 : vector<8x64xf32>
    %57 = vector.extract_strided_slice %32 {offsets = [0, 0, 0], sizes = [1, 8, 64], strides = [1, 1, 1]} : vector<4x8x64xf32> to vector<1x8x64xf32>
    %58 = vector.shape_cast %57 : vector<1x8x64xf32> to vector<8x64xf32>
    %59 = vector.extract_strided_slice %38 {offsets = [0, 128], sizes = [8, 64], strides = [1, 1]} : vector<8x192xf32> to vector<8x64xf32>
    %60 = arith.addf %59, %36 : vector<8x64xf32>
    %61 = arith.mulf %47, %60 : vector<8x64xf32>
    %62 = arith.addf %58, %61 : vector<8x64xf32>
    %63 = math.tanh %62 : vector<8x64xf32>
    %64 = arith.subf %37, %63 : vector<8x64xf32>
    %65 = arith.mulf %56, %64 : vector<8x64xf32>
    %66 = arith.addf %63, %65 : vector<8x64xf32>
    %67 = vector.extract_strided_slice %0 {offsets = [0, 0, 0], sizes = [1, 8, 64], strides = [1, 1, 1]} : vector<4x8x64xf32> to vector<1x8x64xf32>
    %68 = vector.shape_cast %67 : vector<1x8x64xf32> to vector<8x64xf32>
    %69 = arith.mulf %68, %66 : vector<8x64xf32>
    %70 = arith.subf %66, %37 : vector<8x64xf32>
    %71 = arith.mulf %68, %70 : vector<8x64xf32>
    %72 = arith.addf %37, %71 : vector<8x64xf32>
    %73 = vector.extract_strided_slice %69 {offsets = [0, 0], sizes = [8, 32], strides = [1, 1]} : vector<8x64xf32> to vector<8x32xf32>
    %c0_17 = arith.constant 0 : index
    %c0_18 = arith.constant 0 : index
    %c0_19 = arith.constant 0 : index
    %74 = vector.load %arg13[%c0_17, %c0_18, %c0_19] : memref<4x8x64xf32, #tpu.memory_space<vmem>>, vector<1x8x32xf32>
    %75 = vector.shape_cast %74 : vector<1x8x32xf32> to vector<8x32xf32>
    %76 = vector.shape_cast %73 : vector<8x32xf32> to vector<1x8x32xf32>
    tpu.vector_store %arg13[%c0_17, %c0_18, %c0_19], %76 {strides = array<i32>} : memref<4x8x64xf32, #tpu.memory_space<vmem>>, vector<1x8x32xf32>,
    %77 = vector.extract_strided_slice %69 {offsets = [0, 32], sizes = [8, 32], strides = [1, 1]} : vector<8x64xf32> to vector<8x32xf32>
    %c3 = arith.constant 3 : index
    %c0_20 = arith.constant 0 : index
    %c32 = arith.constant 32 : index
    %78 = vector.load %arg13[%c3, %c0_20, %c32] : memref<4x8x64xf32, #tpu.memory_space<vmem>>, vector<1x8x32xf32>
    %79 = vector.shape_cast %78 : vector<1x8x32xf32> to vector<8x32xf32>
    %80 = vector.shape_cast %77 : vector<8x32xf32> to vector<1x8x32xf32>
    tpu.vector_store %arg13[%c3, %c0_20, %c32], %80 {strides = array<i32>} : memref<4x8x64xf32, #tpu.memory_space<vmem>>, vector<1x8x32xf32>,
    %cst_21 = arith.constant dense<0.000000e+00> : vector<8x192xf32>
    %81 = tpu.matmul %72, %33, %cst_21 {dimension_numbers = #tpu.dot_dimension_numbers<[1], [0], [0], [1], [0, 0, 1, 1], [], []>} : vector<8x64xf32>, vector<64x192xf32>, vector<8x192xf32> -> vector<8x192xf32>
    %82 = vector.extract_strided_slice %26 {offsets = [1, 0, 0], sizes = [1, 8, 64], strides = [1, 1, 1]} : vector<4x8x64xf32> to vector<1x8x64xf32>
    %83 = vector.shape_cast %82 : vector<1x8x64xf32> to vector<8x64xf32>
    %84 = vector.extract_strided_slice %81 {offsets = [0, 0], sizes = [8, 64], strides = [1, 1]} : vector<8x192xf32> to vector<8x64xf32>
    %85 = arith.addf %83, %84 : vector<8x64xf32>
    %86 = arith.negf %85 : vector<8x64xf32>
    %87 = math.exp %86 : vector<8x64xf32>
    %cst_22 = arith.constant 1.000000e+00 : f32
    %88 = vector.broadcast %cst_22 : f32 to vector<8x64xf32>
    %89 = arith.addf %88, %87 : vector<8x64xf32>
    %90 = arith.divf %88, %89 : vector<8x64xf32>
    %91 = vector.extract_strided_slice %29 {offsets = [1, 0, 0], sizes = [1, 8, 64], strides = [1, 1, 1]} : vector<4x8x64xf32> to vector<1x8x64xf32>
    %92 = vector.shape_cast %91 : vector<1x8x64xf32> to vector<8x64xf32>
    %93 = vector.extract_strided_slice %81 {offsets = [0, 64], sizes = [8, 64], strides = [1, 1]} : vector<8x192xf32> to vector<8x64xf32>
    %94 = arith.addf %92, %93 : vector<8x64xf32>
    %95 = arith.negf %94 : vector<8x64xf32>
    %96 = math.exp %95 : vector<8x64xf32>
    %cst_23 = arith.constant 1.000000e+00 : f32
    %97 = vector.broadcast %cst_23 : f32 to vector<8x64xf32>
    %98 = arith.addf %97, %96 : vector<8x64xf32>
    %99 = arith.divf %97, %98 : vector<8x64xf32>
    %100 = vector.extract_strided_slice %32 {offsets = [1, 0, 0], sizes = [1, 8, 64], strides = [1, 1, 1]} : vector<4x8x64xf32> to vector<1x8x64xf32>
    %101 = vector.shape_cast %100 : vector<1x8x64xf32> to vector<8x64xf32>
    %102 = vector.extract_strided_slice %81 {offsets = [0, 128], sizes = [8, 64], strides = [1, 1]} : vector<8x192xf32> to vector<8x64xf32>
    %103 = arith.addf %102, %36 : vector<8x64xf32>
    %104 = arith.mulf %90, %103 : vector<8x64xf32>
    %105 = arith.addf %101, %104 : vector<8x64xf32>
    %106 = math.tanh %105 : vector<8x64xf32>
    %107 = arith.subf %72, %106 : vector<8x64xf32>
    %108 = arith.mulf %99, %107 : vector<8x64xf32>
    %109 = arith.addf %106, %108 : vector<8x64xf32>
    %110 = vector.extract_strided_slice %0 {offsets = [1, 0, 0], sizes = [1, 8, 64], strides = [1, 1, 1]} : vector<4x8x64xf32> to vector<1x8x64xf32>
    %111 = vector.shape_cast %110 : vector<1x8x64xf32> to vector<8x64xf32>
    %112 = arith.mulf %111, %109 : vector<8x64xf32>
    %113 = arith.subf %109, %72 : vector<8x64xf32>
    %114 = arith.mulf %111, %113 : vector<8x64xf32>
    %115 = arith.addf %72, %114 : vector<8x64xf32>
    %116 = vector.extract_strided_slice %112 {offsets = [0, 0], sizes = [8, 32], strides = [1, 1]} : vector<8x64xf32> to vector<8x32xf32>
    %c1 = arith.constant 1 : index
    %c0_24 = arith.constant 0 : index
    %c0_25 = arith.constant 0 : index
    %117 = vector.load %arg13[%c1, %c0_24, %c0_25] : memref<4x8x64xf32, #tpu.memory_space<vmem>>, vector<1x8x32xf32>
    %118 = vector.shape_cast %117 : vector<1x8x32xf32> to vector<8x32xf32>
    %119 = vector.shape_cast %116 : vector<8x32xf32> to vector<1x8x32xf32>
    tpu.vector_store %arg13[%c1, %c0_24, %c0_25], %119 {strides = array<i32>} : memref<4x8x64xf32, #tpu.memory_space<vmem>>, vector<1x8x32xf32>,
    %120 = vector.extract_strided_slice %112 {offsets = [0, 32], sizes = [8, 32], strides = [1, 1]} : vector<8x64xf32> to vector<8x32xf32>
    %c2 = arith.constant 2 : index
    %c0_26 = arith.constant 0 : index
    %c32_27 = arith.constant 32 : index
    %121 = vector.load %arg13[%c2, %c0_26, %c32_27] : memref<4x8x64xf32, #tpu.memory_space<vmem>>, vector<1x8x32xf32>
    %122 = vector.shape_cast %121 : vector<1x8x32xf32> to vector<8x32xf32>
    %123 = vector.shape_cast %120 : vector<8x32xf32> to vector<1x8x32xf32>
    tpu.vector_store %arg13[%c2, %c0_26, %c32_27], %123 {strides = array<i32>} : memref<4x8x64xf32, #tpu.memory_space<vmem>>, vector<1x8x32xf32>,
    %cst_28 = arith.constant dense<0.000000e+00> : vector<8x192xf32>
    %124 = tpu.matmul %115, %33, %cst_28 {dimension_numbers = #tpu.dot_dimension_numbers<[1], [0], [0], [1], [0, 0, 1, 1], [], []>} : vector<8x64xf32>, vector<64x192xf32>, vector<8x192xf32> -> vector<8x192xf32>
    %125 = vector.extract_strided_slice %26 {offsets = [2, 0, 0], sizes = [1, 8, 64], strides = [1, 1, 1]} : vector<4x8x64xf32> to vector<1x8x64xf32>
    %126 = vector.shape_cast %125 : vector<1x8x64xf32> to vector<8x64xf32>
    %127 = vector.extract_strided_slice %124 {offsets = [0, 0], sizes = [8, 64], strides = [1, 1]} : vector<8x192xf32> to vector<8x64xf32>
    %128 = arith.addf %126, %127 : vector<8x64xf32>
    %129 = arith.negf %128 : vector<8x64xf32>
    %130 = math.exp %129 : vector<8x64xf32>
    %cst_29 = arith.constant 1.000000e+00 : f32
    %131 = vector.broadcast %cst_29 : f32 to vector<8x64xf32>
    %132 = arith.addf %131, %130 : vector<8x64xf32>
    %133 = arith.divf %131, %132 : vector<8x64xf32>
    %134 = vector.extract_strided_slice %29 {offsets = [2, 0, 0], sizes = [1, 8, 64], strides = [1, 1, 1]} : vector<4x8x64xf32> to vector<1x8x64xf32>
    %135 = vector.shape_cast %134 : vector<1x8x64xf32> to vector<8x64xf32>
    %136 = vector.extract_strided_slice %124 {offsets = [0, 64], sizes = [8, 64], strides = [1, 1]} : vector<8x192xf32> to vector<8x64xf32>
    %137 = arith.addf %135, %136 : vector<8x64xf32>
    %138 = arith.negf %137 : vector<8x64xf32>
    %139 = math.exp %138 : vector<8x64xf32>
    %cst_30 = arith.constant 1.000000e+00 : f32
    %140 = vector.broadcast %cst_30 : f32 to vector<8x64xf32>
    %141 = arith.addf %140, %139 : vector<8x64xf32>
    %142 = arith.divf %140, %141 : vector<8x64xf32>
    %143 = vector.extract_strided_slice %32 {offsets = [2, 0, 0], sizes = [1, 8, 64], strides = [1, 1, 1]} : vector<4x8x64xf32> to vector<1x8x64xf32>
    %144 = vector.shape_cast %143 : vector<1x8x64xf32> to vector<8x64xf32>
    %145 = vector.extract_strided_slice %124 {offsets = [0, 128], sizes = [8, 64], strides = [1, 1]} : vector<8x192xf32> to vector<8x64xf32>
    %146 = arith.addf %145, %36 : vector<8x64xf32>
    %147 = arith.mulf %133, %146 : vector<8x64xf32>
    %148 = arith.addf %144, %147 : vector<8x64xf32>
    %149 = math.tanh %148 : vector<8x64xf32>
    %150 = arith.subf %115, %149 : vector<8x64xf32>
    %151 = arith.mulf %142, %150 : vector<8x64xf32>
    %152 = arith.addf %149, %151 : vector<8x64xf32>
    %153 = vector.extract_strided_slice %0 {offsets = [2, 0, 0], sizes = [1, 8, 64], strides = [1, 1, 1]} : vector<4x8x64xf32> to vector<1x8x64xf32>
    %154 = vector.shape_cast %153 : vector<1x8x64xf32> to vector<8x64xf32>
    %155 = arith.mulf %154, %152 : vector<8x64xf32>
    %156 = arith.subf %152, %115 : vector<8x64xf32>
    %157 = arith.mulf %154, %156 : vector<8x64xf32>
    %158 = arith.addf %115, %157 : vector<8x64xf32>
    %159 = vector.extract_strided_slice %155 {offsets = [0, 0], sizes = [8, 32], strides = [1, 1]} : vector<8x64xf32> to vector<8x32xf32>
    %c2_31 = arith.constant 2 : index
    %c0_32 = arith.constant 0 : index
    %c0_33 = arith.constant 0 : index
    %160 = vector.load %arg13[%c2_31, %c0_32, %c0_33] : memref<4x8x64xf32, #tpu.memory_space<vmem>>, vector<1x8x32xf32>
    %161 = vector.shape_cast %160 : vector<1x8x32xf32> to vector<8x32xf32>
    %162 = vector.shape_cast %159 : vector<8x32xf32> to vector<1x8x32xf32>
    tpu.vector_store %arg13[%c2_31, %c0_32, %c0_33], %162 {strides = array<i32>} : memref<4x8x64xf32, #tpu.memory_space<vmem>>, vector<1x8x32xf32>,
    %163 = vector.extract_strided_slice %155 {offsets = [0, 32], sizes = [8, 32], strides = [1, 1]} : vector<8x64xf32> to vector<8x32xf32>
    %c1_34 = arith.constant 1 : index
    %c0_35 = arith.constant 0 : index
    %c32_36 = arith.constant 32 : index
    %164 = vector.load %arg13[%c1_34, %c0_35, %c32_36] : memref<4x8x64xf32, #tpu.memory_space<vmem>>, vector<1x8x32xf32>
    %165 = vector.shape_cast %164 : vector<1x8x32xf32> to vector<8x32xf32>
    %166 = vector.shape_cast %163 : vector<8x32xf32> to vector<1x8x32xf32>
    tpu.vector_store %arg13[%c1_34, %c0_35, %c32_36], %166 {strides = array<i32>} : memref<4x8x64xf32, #tpu.memory_space<vmem>>, vector<1x8x32xf32>,
    %cst_37 = arith.constant dense<0.000000e+00> : vector<8x192xf32>
    %167 = tpu.matmul %158, %33, %cst_37 {dimension_numbers = #tpu.dot_dimension_numbers<[1], [0], [0], [1], [0, 0, 1, 1], [], []>} : vector<8x64xf32>, vector<64x192xf32>, vector<8x192xf32> -> vector<8x192xf32>
    %168 = vector.extract_strided_slice %26 {offsets = [3, 0, 0], sizes = [1, 8, 64], strides = [1, 1, 1]} : vector<4x8x64xf32> to vector<1x8x64xf32>
    %169 = vector.shape_cast %168 : vector<1x8x64xf32> to vector<8x64xf32>
    %170 = vector.extract_strided_slice %167 {offsets = [0, 0], sizes = [8, 64], strides = [1, 1]} : vector<8x192xf32> to vector<8x64xf32>
    %171 = arith.addf %169, %170 : vector<8x64xf32>
    %172 = arith.negf %171 : vector<8x64xf32>
    %173 = math.exp %172 : vector<8x64xf32>
    %cst_38 = arith.constant 1.000000e+00 : f32
    %174 = vector.broadcast %cst_38 : f32 to vector<8x64xf32>
    %175 = arith.addf %174, %173 : vector<8x64xf32>
    %176 = arith.divf %174, %175 : vector<8x64xf32>
    %177 = vector.extract_strided_slice %29 {offsets = [3, 0, 0], sizes = [1, 8, 64], strides = [1, 1, 1]} : vector<4x8x64xf32> to vector<1x8x64xf32>
    %178 = vector.shape_cast %177 : vector<1x8x64xf32> to vector<8x64xf32>
    %179 = vector.extract_strided_slice %167 {offsets = [0, 64], sizes = [8, 64], strides = [1, 1]} : vector<8x192xf32> to vector<8x64xf32>
    %180 = arith.addf %178, %179 : vector<8x64xf32>
    %181 = arith.negf %180 : vector<8x64xf32>
    %182 = math.exp %181 : vector<8x64xf32>
    %cst_39 = arith.constant 1.000000e+00 : f32
    %183 = vector.broadcast %cst_39 : f32 to vector<8x64xf32>
    %184 = arith.addf %183, %182 : vector<8x64xf32>
    %185 = arith.divf %183, %184 : vector<8x64xf32>
    %186 = vector.extract_strided_slice %32 {offsets = [3, 0, 0], sizes = [1, 8, 64], strides = [1, 1, 1]} : vector<4x8x64xf32> to vector<1x8x64xf32>
    %187 = vector.shape_cast %186 : vector<1x8x64xf32> to vector<8x64xf32>
    %188 = vector.extract_strided_slice %167 {offsets = [0, 128], sizes = [8, 64], strides = [1, 1]} : vector<8x192xf32> to vector<8x64xf32>
    %189 = arith.addf %188, %36 : vector<8x64xf32>
    %190 = arith.mulf %176, %189 : vector<8x64xf32>
    %191 = arith.addf %187, %190 : vector<8x64xf32>
    %192 = math.tanh %191 : vector<8x64xf32>
    %193 = arith.subf %158, %192 : vector<8x64xf32>
    %194 = arith.mulf %185, %193 : vector<8x64xf32>
    %195 = arith.addf %192, %194 : vector<8x64xf32>
    %196 = vector.extract_strided_slice %0 {offsets = [3, 0, 0], sizes = [1, 8, 64], strides = [1, 1, 1]} : vector<4x8x64xf32> to vector<1x8x64xf32>
    %197 = vector.shape_cast %196 : vector<1x8x64xf32> to vector<8x64xf32>
    %198 = arith.mulf %197, %195 : vector<8x64xf32>
    %199 = vector.extract_strided_slice %198 {offsets = [0, 0], sizes = [8, 32], strides = [1, 1]} : vector<8x64xf32> to vector<8x32xf32>
    %c3_40 = arith.constant 3 : index
    %c0_41 = arith.constant 0 : index
    %c0_42 = arith.constant 0 : index
    %200 = vector.load %arg13[%c3_40, %c0_41, %c0_42] : memref<4x8x64xf32, #tpu.memory_space<vmem>>, vector<1x8x32xf32>
    %201 = vector.shape_cast %200 : vector<1x8x32xf32> to vector<8x32xf32>
    %202 = vector.shape_cast %199 : vector<8x32xf32> to vector<1x8x32xf32>
    tpu.vector_store %arg13[%c3_40, %c0_41, %c0_42], %202 {strides = array<i32>} : memref<4x8x64xf32, #tpu.memory_space<vmem>>, vector<1x8x32xf32>,
    %203 = vector.extract_strided_slice %198 {offsets = [0, 32], sizes = [8, 32], strides = [1, 1]} : vector<8x64xf32> to vector<8x32xf32>
    %c0_43 = arith.constant 0 : index
    %c0_44 = arith.constant 0 : index
    %c32_45 = arith.constant 32 : index
    %204 = vector.load %arg13[%c0_43, %c0_44, %c32_45] : memref<4x8x64xf32, #tpu.memory_space<vmem>>, vector<1x8x32xf32>
    %205 = vector.shape_cast %204 : vector<1x8x32xf32> to vector<8x32xf32>
    %206 = vector.shape_cast %203 : vector<8x32xf32> to vector<1x8x32xf32>
    tpu.vector_store %arg13[%c0_43, %c0_44, %c32_45], %206 {strides = array<i32>} : memref<4x8x64xf32, #tpu.memory_space<vmem>>, vector<1x8x32xf32>,
    %c0_46 = arith.constant 0 : index
    %c0_47 = arith.constant 0 : index
    %c0_48 = arith.constant 0 : index
    %207 = vector.load %arg13[%c0_46, %c0_47, %c0_48] : memref<4x8x64xf32, #tpu.memory_space<vmem>>, vector<4x8x64xf32>
    %208 = vector.shape_cast %207 : vector<4x8x64xf32> to vector<32x64xf32>
    %c0_49 = arith.constant 0 : index
    %c0_50 = arith.constant 0 : index
    %209 = vector.load %arg6[%c0_49, %c0_50] : memref<64x32xf32, #tpu.memory_space<vmem>>, vector<64x32xf32>
    %cst_51 = arith.constant dense<0.000000e+00> : vector<32x32xf32>
    %210 = tpu.matmul %208, %209, %cst_51 {dimension_numbers = #tpu.dot_dimension_numbers<[1], [0], [0], [1], [0, 0, 1, 1], [], []>} : vector<32x64xf32>, vector<64x32xf32>, vector<32x32xf32> -> vector<32x32xf32>
    %c0_52 = arith.constant 0 : index
    %c0_53 = arith.constant 0 : index
    %211 = vector.load %arg7[%c0_52, %c0_53] : memref<1x32xf32, #tpu.memory_space<vmem>>, vector<1x32xf32>
    %212 = vector.broadcast %211 : vector<1x32xf32> to vector<32x32xf32>
    %213 = arith.addf %210, %212 : vector<32x32xf32>
    %214 = math.tanh %213 : vector<32x32xf32>
    %c0_54 = arith.constant 0 : index
    %c0_55 = arith.constant 0 : index
    %215 = vector.load %arg8[%c0_54, %c0_55] : memref<1x32xf32, #tpu.memory_space<vmem>>, vector<1x32xf32>
    %216 = vector.broadcast %215 : vector<1x32xf32> to vector<32x32xf32>
    %217 = arith.mulf %214, %216 : vector<32x32xf32>
    %cst_56 = arith.constant dense<0.000000e+00> : vector<32xf32>
    %218 = vector.multi_reduction <add>, %217, %cst_56 [1] : vector<32x32xf32> to vector<32xf32>
    %219 = vector.shape_cast %218 : vector<32xf32> to vector<32x1xf32>
    %220 = vector.extract_strided_slice %0 {offsets = [0, 0, 0], sizes = [4, 8, 1], strides = [1, 1, 1]} : vector<4x8x64xf32> to vector<4x8x1xf32>
    %221 = vector.shape_cast %220 : vector<4x8x1xf32> to vector<32x1xf32>
    %cst_57 = arith.constant 0.000000e+00 : f32
    %222 = vector.broadcast %cst_57 : f32 to vector<32x1xf32>
    %223 = arith.cmpf ogt, %221, %222 : vector<32x1xf32>
    %cst_58 = arith.constant -1.000000e+30 : f32
    %224 = vector.broadcast %cst_58 : f32 to vector<32x1xf32>
    %225 = arith.select %223, %219, %224 : vector<32x1xi1>, vector<32x1xf32>
    %226 = vector.shape_cast %225 : vector<32x1xf32> to vector<1x32x1xf32>
    %cst_59 = arith.constant dense<0xFF800000> : vector<1xf32>
    %227 = vector.multi_reduction <maximumf>, %226, %cst_59 [1, 2] : vector<1x32x1xf32> to vector<1xf32>
    %228 = vector.shape_cast %227 : vector<1xf32> to vector<1x1x1xf32>
    %229 = vector.extract %228[0, 0, 0] : f32 from vector<1x1x1xf32>
    %230 = vector.broadcast %229 : f32 to vector<32x1xf32>
    %231 = arith.subf %219, %230 : vector<32x1xf32>
    %cst_60 = arith.constant 0.000000e+00 : f32
    %232 = vector.broadcast %cst_60 : f32 to vector<32x1xf32>
    %233 = arith.minimumf %231, %232 : vector<32x1xf32>
    %234 = math.exp %233 : vector<32x1xf32>
    %235 = arith.mulf %234, %221 : vector<32x1xf32>
    %236 = vector.shape_cast %235 : vector<32x1xf32> to vector<1x32x1xf32>
    %cst_61 = arith.constant dense<0.000000e+00> : vector<1xf32>
    %237 = vector.multi_reduction <add>, %236, %cst_61 [1, 2] : vector<1x32x1xf32> to vector<1xf32>
    %238 = vector.shape_cast %237 : vector<1xf32> to vector<1x1x1xf32>
    %239 = vector.extract %238[0, 0, 0] : f32 from vector<1x1x1xf32>
    %240 = vector.broadcast %239 : f32 to vector<1x1xf32>
    %241 = tpu.reciprocal %240 {approx = true} : vector<1x1xf32> -> vector<1x1xf32>
    %242 = vector.broadcast %241 : vector<1x1xf32> to vector<32x1xf32>
    %243 = arith.mulf %235, %242 : vector<32x1xf32>
    %244 = vector.shape_cast %243 : vector<32x1xf32> to vector<4x8x1xf32>
    %c0_62 = arith.constant 0 : index
    %c0_63 = arith.constant 0 : index
    %c0_64 = arith.constant 0 : index
    %245 = vector.load %arg12[%c0_62, %c0_63, %c0_64] : memref<4x8x1xf32, #tpu.memory_space<vmem>>, vector<4x8x1xf32>
    tpu.vector_store %arg12[%c0_62, %c0_63, %c0_64], %244 {strides = array<i32>} : memref<4x8x1xf32, #tpu.memory_space<vmem>>, vector<4x8x1xf32>,
    %246 = vector.broadcast %244 : vector<4x8x1xf32> to vector<4x8x64xf32>
    %247 = arith.mulf %246, %207 : vector<4x8x64xf32>
    %cst_65 = arith.constant dense<0.000000e+00> : vector<8x64xf32>
    %248 = vector.multi_reduction <add>, %247, %cst_65 [0] : vector<4x8x64xf32> to vector<8x64xf32>
    %c0_66 = arith.constant 0 : index
    %c0_67 = arith.constant 0 : index
    %249 = vector.load %arg9[%c0_66, %c0_67] : memref<64x5xf32, #tpu.memory_space<vmem>>, vector<64x5xf32>
    %cst_68 = arith.constant dense<0.000000e+00> : vector<8x5xf32>
    %250 = tpu.matmul %248, %249, %cst_68 {dimension_numbers = #tpu.dot_dimension_numbers<[1], [0], [0], [1], [0, 0, 1, 1], [], []>} : vector<8x64xf32>, vector<64x5xf32>, vector<8x5xf32> -> vector<8x5xf32>
    %c0_69 = arith.constant 0 : index
    %c0_70 = arith.constant 0 : index
    %251 = vector.load %arg10[%c0_69, %c0_70] : memref<1x5xf32, #tpu.memory_space<vmem>>, vector<1x5xf32>
    %252 = vector.broadcast %251 : vector<1x5xf32> to vector<8x5xf32>
    %253 = arith.addf %250, %252 : vector<8x5xf32>
    %cst_71 = arith.constant dense<0xFF800000> : vector<8xf32>
    %254 = vector.multi_reduction <maximumf>, %253, %cst_71 [1] : vector<8x5xf32> to vector<8xf32>
    %255 = vector.shape_cast %254 : vector<8xf32> to vector<8x1xf32>
    %256 = vector.broadcast %255 : vector<8x1xf32> to vector<8x5xf32>
    %257 = arith.subf %253, %256 : vector<8x5xf32>
    %258 = math.exp %257 : vector<8x5xf32>
    %259 = vector.broadcast %255 : vector<8x1xf32> to vector<8x5xf32>
    %260 = arith.subf %253, %259 : vector<8x5xf32>
    %cst_72 = arith.constant dense<0.000000e+00> : vector<8xf32>
    %261 = vector.multi_reduction <add>, %258, %cst_72 [1] : vector<8x5xf32> to vector<8xf32>
    %262 = vector.shape_cast %261 : vector<8xf32> to vector<8x1xf32>
    %263 = math.log %262 : vector<8x1xf32>
    %264 = vector.broadcast %263 : vector<8x1xf32> to vector<8x5xf32>
    %265 = arith.subf %260, %264 : vector<8x5xf32>
    %c0_73 = arith.constant 0 : index
    %c0_74 = arith.constant 0 : index
    %266 = vector.load %arg11[%c0_73, %c0_74] : memref<8x5xf32, #tpu.memory_space<vmem>>, vector<8x5xf32>
    tpu.vector_store %arg11[%c0_73, %c0_74], %265 {strides = array<i32>} : memref<8x5xf32, #tpu.memory_space<vmem>>, vector<8x5xf32>,
    return
  }
}

module attributes {stable_mosaic.version = 11 : i64} {
  func.func @kernel(%arg0: memref<8x8x32xf32, #tpu.memory_space<vmem>>, %arg1: memref<8x8x64xf32, #tpu.memory_space<vmem>>, %arg2: memref<32x192xf32, #tpu.memory_space<vmem>>, %arg3: memref<1x192xf32, #tpu.memory_space<vmem>>, %arg4: memref<64x192xf32, #tpu.memory_space<vmem>>, %arg5: memref<1x64xf32, #tpu.memory_space<vmem>>, %arg6: memref<64x192xf32, #tpu.memory_space<vmem>>, %arg7: memref<1x192xf32, #tpu.memory_space<vmem>>, %arg8: memref<64x192xf32, #tpu.memory_space<vmem>>, %arg9: memref<1x64xf32, #tpu.memory_space<vmem>>, %arg10: memref<64x32xf32, #tpu.memory_space<vmem>>, %arg11: memref<1x32xf32, #tpu.memory_space<vmem>>, %arg12: memref<1x32xf32, #tpu.memory_space<vmem>>, %arg13: memref<8x64xf32, #tpu.memory_space<vmem>>, %arg14: memref<8x8x1xf32, #tpu.memory_space<vmem>>, %arg15: memref<8x8x64xf32, #tpu.memory_space<vmem>>) attributes {dimension_semantics = [], scalar_prefetch = 0 : i64, scratch_operands = 1 : i64, tpu.core_type = #tpu.core_type<tc>} {
    %c0 = arith.constant 0 : index
    %c0_0 = arith.constant 0 : index
    %c0_1 = arith.constant 0 : index
    %0 = vector.load %arg1[%c0, %c0_0, %c0_1] : memref<8x8x64xf32, #tpu.memory_space<vmem>>, vector<8x8x64xf32>
    %c0_2 = arith.constant 0 : index
    %c0_3 = arith.constant 0 : index
    %c0_4 = arith.constant 0 : index
    %1 = vector.load %arg0[%c0_2, %c0_3, %c0_4] : memref<8x8x32xf32, #tpu.memory_space<vmem>>, vector<8x8x32xf32>
    %2 = vector.shape_cast %1 : vector<8x8x32xf32> to vector<64x32xf32>
    %c0_5 = arith.constant 0 : index
    %c0_6 = arith.constant 0 : index
    %3 = vector.load %arg2[%c0_5, %c0_6] : memref<32x192xf32, #tpu.memory_space<vmem>>, vector<32x192xf32>
    %cst = arith.constant dense<0.000000e+00> : vector<64x192xf32>
    %4 = tpu.matmul %2, %3, %cst {dimension_numbers = #tpu.dot_dimension_numbers<[1], [0], [0], [1], [0, 0, 1, 1], [], []>} : vector<64x32xf32>, vector<32x192xf32>, vector<64x192xf32> -> vector<64x192xf32>
    %c0_7 = arith.constant 0 : index
    %c0_8 = arith.constant 0 : index
    %5 = vector.load %arg3[%c0_7, %c0_8] : memref<1x192xf32, #tpu.memory_space<vmem>>, vector<1x192xf32>
    %6 = vector.broadcast %5 : vector<1x192xf32> to vector<64x192xf32>
    %7 = arith.addf %4, %6 : vector<64x192xf32>
    %8 = vector.shape_cast %7 : vector<64x192xf32> to vector<8x8x192xf32>
    %9 = vector.extract_strided_slice %8 {offsets = [0, 0, 0], sizes = [8, 8, 96], strides = [1, 1, 1]} : vector<8x8x192xf32> to vector<8x8x96xf32>
    %10 = vector.extract_strided_slice %8 {offsets = [0, 0, 96], sizes = [8, 8, 96], strides = [1, 1, 1]} : vector<8x8x192xf32> to vector<8x8x96xf32>
    %11 = vector.extract_strided_slice %10 {offsets = [7, 0, 0], sizes = [1, 8, 96], strides = [1, 1, 1]} : vector<8x8x96xf32> to vector<1x8x96xf32>
    %12 = vector.shape_cast %11 : vector<1x8x96xf32> to vector<8x96xf32>
    %13 = vector.extract_strided_slice %10 {offsets = [6, 0, 0], sizes = [1, 8, 96], strides = [1, 1, 1]} : vector<8x8x96xf32> to vector<1x8x96xf32>
    %14 = vector.shape_cast %13 : vector<1x8x96xf32> to vector<8x96xf32>
    %15 = vector.extract_strided_slice %10 {offsets = [5, 0, 0], sizes = [1, 8, 96], strides = [1, 1, 1]} : vector<8x8x96xf32> to vector<1x8x96xf32>
    %16 = vector.shape_cast %15 : vector<1x8x96xf32> to vector<8x96xf32>
    %17 = vector.extract_strided_slice %10 {offsets = [4, 0, 0], sizes = [1, 8, 96], strides = [1, 1, 1]} : vector<8x8x96xf32> to vector<1x8x96xf32>
    %18 = vector.shape_cast %17 : vector<1x8x96xf32> to vector<8x96xf32>
    %19 = vector.extract_strided_slice %10 {offsets = [3, 0, 0], sizes = [1, 8, 96], strides = [1, 1, 1]} : vector<8x8x96xf32> to vector<1x8x96xf32>
    %20 = vector.shape_cast %19 : vector<1x8x96xf32> to vector<8x96xf32>
    %21 = vector.extract_strided_slice %10 {offsets = [2, 0, 0], sizes = [1, 8, 96], strides = [1, 1, 1]} : vector<8x8x96xf32> to vector<1x8x96xf32>
    %22 = vector.shape_cast %21 : vector<1x8x96xf32> to vector<8x96xf32>
    %23 = vector.extract_strided_slice %10 {offsets = [1, 0, 0], sizes = [1, 8, 96], strides = [1, 1, 1]} : vector<8x8x96xf32> to vector<1x8x96xf32>
    %24 = vector.shape_cast %23 : vector<1x8x96xf32> to vector<8x96xf32>
    %25 = vector.extract_strided_slice %10 {offsets = [0, 0, 0], sizes = [1, 8, 96], strides = [1, 1, 1]} : vector<8x8x96xf32> to vector<1x8x96xf32>
    %26 = vector.shape_cast %25 : vector<1x8x96xf32> to vector<8x96xf32>
    %27 = vector.shape_cast %12 : vector<8x96xf32> to vector<1x8x96xf32>
    %28 = vector.shape_cast %14 : vector<8x96xf32> to vector<1x8x96xf32>
    %29 = vector.shape_cast %16 : vector<8x96xf32> to vector<1x8x96xf32>
    %30 = vector.shape_cast %18 : vector<8x96xf32> to vector<1x8x96xf32>
    %31 = vector.shape_cast %20 : vector<8x96xf32> to vector<1x8x96xf32>
    %32 = vector.shape_cast %22 : vector<8x96xf32> to vector<1x8x96xf32>
    %33 = vector.shape_cast %24 : vector<8x96xf32> to vector<1x8x96xf32>
    %34 = vector.shape_cast %26 : vector<8x96xf32> to vector<1x8x96xf32>
    %35 = tpu.concatenate %27, %28, %29, %30, %31, %32, %33, %34 in 0 : vector<1x8x96xf32>, vector<1x8x96xf32>, vector<1x8x96xf32>, vector<1x8x96xf32>, vector<1x8x96xf32>, vector<1x8x96xf32>, vector<1x8x96xf32>, vector<1x8x96xf32> -> vector<8x8x96xf32>
    %36 = vector.extract_strided_slice %9 {offsets = [0, 0, 0], sizes = [8, 8, 32], strides = [1, 1, 1]} : vector<8x8x96xf32> to vector<8x8x32xf32>
    %37 = vector.extract_strided_slice %35 {offsets = [0, 0, 0], sizes = [8, 8, 32], strides = [1, 1, 1]} : vector<8x8x96xf32> to vector<8x8x32xf32>
    %38 = tpu.concatenate %36, %37 in 2 : vector<8x8x32xf32>, vector<8x8x32xf32> -> vector<8x8x64xf32>
    %39 = vector.extract_strided_slice %9 {offsets = [0, 0, 32], sizes = [8, 8, 32], strides = [1, 1, 1]} : vector<8x8x96xf32> to vector<8x8x32xf32>
    %40 = vector.extract_strided_slice %35 {offsets = [0, 0, 32], sizes = [8, 8, 32], strides = [1, 1, 1]} : vector<8x8x96xf32> to vector<8x8x32xf32>
    %41 = tpu.concatenate %39, %40 in 2 : vector<8x8x32xf32>, vector<8x8x32xf32> -> vector<8x8x64xf32>
    %42 = vector.extract_strided_slice %9 {offsets = [0, 0, 64], sizes = [8, 8, 32], strides = [1, 1, 1]} : vector<8x8x96xf32> to vector<8x8x32xf32>
    %43 = vector.extract_strided_slice %35 {offsets = [0, 0, 64], sizes = [8, 8, 32], strides = [1, 1, 1]} : vector<8x8x96xf32> to vector<8x8x32xf32>
    %44 = tpu.concatenate %42, %43 in 2 : vector<8x8x32xf32>, vector<8x8x32xf32> -> vector<8x8x64xf32>
    %c0_9 = arith.constant 0 : index
    %c0_10 = arith.constant 0 : index
    %45 = vector.load %arg4[%c0_9, %c0_10] : memref<64x192xf32, #tpu.memory_space<vmem>>, vector<64x192xf32>
    %c0_11 = arith.constant 0 : index
    %c0_12 = arith.constant 0 : index
    %46 = vector.load %arg5[%c0_11, %c0_12] : memref<1x64xf32, #tpu.memory_space<vmem>>, vector<1x64xf32>
    %47 = vector.shape_cast %46 : vector<1x64xf32> to vector<1x64xf32>
    %48 = vector.broadcast %47 : vector<1x64xf32> to vector<8x64xf32>
    %cst_13 = arith.constant 0.000000e+00 : f32
    %49 = vector.broadcast %cst_13 : f32 to vector<8x64xf32>
    %cst_14 = arith.constant dense<0.000000e+00> : vector<8x192xf32>
    %50 = tpu.matmul %49, %45, %cst_14 {dimension_numbers = #tpu.dot_dimension_numbers<[1], [0], [0], [1], [0, 0, 1, 1], [], []>} : vector<8x64xf32>, vector<64x192xf32>, vector<8x192xf32> -> vector<8x192xf32>
    %51 = vector.extract_strided_slice %38 {offsets = [0, 0, 0], sizes = [1, 8, 64], strides = [1, 1, 1]} : vector<8x8x64xf32> to vector<1x8x64xf32>
    %52 = vector.shape_cast %51 : vector<1x8x64xf32> to vector<8x64xf32>
    %53 = vector.extract_strided_slice %50 {offsets = [0, 0], sizes = [8, 64], strides = [1, 1]} : vector<8x192xf32> to vector<8x64xf32>
    %54 = arith.addf %52, %53 : vector<8x64xf32>
    %55 = arith.negf %54 : vector<8x64xf32>
    %56 = math.exp %55 : vector<8x64xf32>
    %cst_15 = arith.constant 1.000000e+00 : f32
    %57 = vector.broadcast %cst_15 : f32 to vector<8x64xf32>
    %58 = arith.addf %57, %56 : vector<8x64xf32>
    %59 = arith.divf %57, %58 : vector<8x64xf32>
    %60 = vector.extract_strided_slice %41 {offsets = [0, 0, 0], sizes = [1, 8, 64], strides = [1, 1, 1]} : vector<8x8x64xf32> to vector<1x8x64xf32>
    %61 = vector.shape_cast %60 : vector<1x8x64xf32> to vector<8x64xf32>
    %62 = vector.extract_strided_slice %50 {offsets = [0, 64], sizes = [8, 64], strides = [1, 1]} : vector<8x192xf32> to vector<8x64xf32>
    %63 = arith.addf %61, %62 : vector<8x64xf32>
    %64 = arith.negf %63 : vector<8x64xf32>
    %65 = math.exp %64 : vector<8x64xf32>
    %cst_16 = arith.constant 1.000000e+00 : f32
    %66 = vector.broadcast %cst_16 : f32 to vector<8x64xf32>
    %67 = arith.addf %66, %65 : vector<8x64xf32>
    %68 = arith.divf %66, %67 : vector<8x64xf32>
    %69 = vector.extract_strided_slice %44 {offsets = [0, 0, 0], sizes = [1, 8, 64], strides = [1, 1, 1]} : vector<8x8x64xf32> to vector<1x8x64xf32>
    %70 = vector.shape_cast %69 : vector<1x8x64xf32> to vector<8x64xf32>
    %71 = vector.extract_strided_slice %50 {offsets = [0, 128], sizes = [8, 64], strides = [1, 1]} : vector<8x192xf32> to vector<8x64xf32>
    %72 = arith.addf %71, %48 : vector<8x64xf32>
    %73 = arith.mulf %59, %72 : vector<8x64xf32>
    %74 = arith.addf %70, %73 : vector<8x64xf32>
    %75 = math.tanh %74 : vector<8x64xf32>
    %76 = arith.subf %49, %75 : vector<8x64xf32>
    %77 = arith.mulf %68, %76 : vector<8x64xf32>
    %78 = arith.addf %75, %77 : vector<8x64xf32>
    %79 = vector.extract_strided_slice %0 {offsets = [0, 0, 0], sizes = [1, 8, 64], strides = [1, 1, 1]} : vector<8x8x64xf32> to vector<1x8x64xf32>
    %80 = vector.shape_cast %79 : vector<1x8x64xf32> to vector<8x64xf32>
    %81 = arith.mulf %80, %78 : vector<8x64xf32>
    %82 = arith.subf %78, %49 : vector<8x64xf32>
    %83 = arith.mulf %80, %82 : vector<8x64xf32>
    %84 = arith.addf %49, %83 : vector<8x64xf32>
    %85 = vector.extract_strided_slice %81 {offsets = [0, 0], sizes = [8, 32], strides = [1, 1]} : vector<8x64xf32> to vector<8x32xf32>
    %c0_17 = arith.constant 0 : index
    %c0_18 = arith.constant 0 : index
    %c0_19 = arith.constant 0 : index
    %86 = vector.load %arg15[%c0_17, %c0_18, %c0_19] : memref<8x8x64xf32, #tpu.memory_space<vmem>>, vector<1x8x32xf32>
    %87 = vector.shape_cast %86 : vector<1x8x32xf32> to vector<8x32xf32>
    %88 = vector.shape_cast %85 : vector<8x32xf32> to vector<1x8x32xf32>
    tpu.vector_store %arg15[%c0_17, %c0_18, %c0_19], %88 {strides = array<i32>} : memref<8x8x64xf32, #tpu.memory_space<vmem>>, vector<1x8x32xf32>,
    %89 = vector.extract_strided_slice %81 {offsets = [0, 32], sizes = [8, 32], strides = [1, 1]} : vector<8x64xf32> to vector<8x32xf32>
    %c7 = arith.constant 7 : index
    %c0_20 = arith.constant 0 : index
    %c32 = arith.constant 32 : index
    %90 = vector.load %arg15[%c7, %c0_20, %c32] : memref<8x8x64xf32, #tpu.memory_space<vmem>>, vector<1x8x32xf32>
    %91 = vector.shape_cast %90 : vector<1x8x32xf32> to vector<8x32xf32>
    %92 = vector.shape_cast %89 : vector<8x32xf32> to vector<1x8x32xf32>
    tpu.vector_store %arg15[%c7, %c0_20, %c32], %92 {strides = array<i32>} : memref<8x8x64xf32, #tpu.memory_space<vmem>>, vector<1x8x32xf32>,
    %cst_21 = arith.constant dense<0.000000e+00> : vector<8x192xf32>
    %93 = tpu.matmul %84, %45, %cst_21 {dimension_numbers = #tpu.dot_dimension_numbers<[1], [0], [0], [1], [0, 0, 1, 1], [], []>} : vector<8x64xf32>, vector<64x192xf32>, vector<8x192xf32> -> vector<8x192xf32>
    %94 = vector.extract_strided_slice %38 {offsets = [1, 0, 0], sizes = [1, 8, 64], strides = [1, 1, 1]} : vector<8x8x64xf32> to vector<1x8x64xf32>
    %95 = vector.shape_cast %94 : vector<1x8x64xf32> to vector<8x64xf32>
    %96 = vector.extract_strided_slice %93 {offsets = [0, 0], sizes = [8, 64], strides = [1, 1]} : vector<8x192xf32> to vector<8x64xf32>
    %97 = arith.addf %95, %96 : vector<8x64xf32>
    %98 = arith.negf %97 : vector<8x64xf32>
    %99 = math.exp %98 : vector<8x64xf32>
    %cst_22 = arith.constant 1.000000e+00 : f32
    %100 = vector.broadcast %cst_22 : f32 to vector<8x64xf32>
    %101 = arith.addf %100, %99 : vector<8x64xf32>
    %102 = arith.divf %100, %101 : vector<8x64xf32>
    %103 = vector.extract_strided_slice %41 {offsets = [1, 0, 0], sizes = [1, 8, 64], strides = [1, 1, 1]} : vector<8x8x64xf32> to vector<1x8x64xf32>
    %104 = vector.shape_cast %103 : vector<1x8x64xf32> to vector<8x64xf32>
    %105 = vector.extract_strided_slice %93 {offsets = [0, 64], sizes = [8, 64], strides = [1, 1]} : vector<8x192xf32> to vector<8x64xf32>
    %106 = arith.addf %104, %105 : vector<8x64xf32>
    %107 = arith.negf %106 : vector<8x64xf32>
    %108 = math.exp %107 : vector<8x64xf32>
    %cst_23 = arith.constant 1.000000e+00 : f32
    %109 = vector.broadcast %cst_23 : f32 to vector<8x64xf32>
    %110 = arith.addf %109, %108 : vector<8x64xf32>
    %111 = arith.divf %109, %110 : vector<8x64xf32>
    %112 = vector.extract_strided_slice %44 {offsets = [1, 0, 0], sizes = [1, 8, 64], strides = [1, 1, 1]} : vector<8x8x64xf32> to vector<1x8x64xf32>
    %113 = vector.shape_cast %112 : vector<1x8x64xf32> to vector<8x64xf32>
    %114 = vector.extract_strided_slice %93 {offsets = [0, 128], sizes = [8, 64], strides = [1, 1]} : vector<8x192xf32> to vector<8x64xf32>
    %115 = arith.addf %114, %48 : vector<8x64xf32>
    %116 = arith.mulf %102, %115 : vector<8x64xf32>
    %117 = arith.addf %113, %116 : vector<8x64xf32>
    %118 = math.tanh %117 : vector<8x64xf32>
    %119 = arith.subf %84, %118 : vector<8x64xf32>
    %120 = arith.mulf %111, %119 : vector<8x64xf32>
    %121 = arith.addf %118, %120 : vector<8x64xf32>
    %122 = vector.extract_strided_slice %0 {offsets = [1, 0, 0], sizes = [1, 8, 64], strides = [1, 1, 1]} : vector<8x8x64xf32> to vector<1x8x64xf32>
    %123 = vector.shape_cast %122 : vector<1x8x64xf32> to vector<8x64xf32>
    %124 = arith.mulf %123, %121 : vector<8x64xf32>
    %125 = arith.subf %121, %84 : vector<8x64xf32>
    %126 = arith.mulf %123, %125 : vector<8x64xf32>
    %127 = arith.addf %84, %126 : vector<8x64xf32>
    %128 = vector.extract_strided_slice %124 {offsets = [0, 0], sizes = [8, 32], strides = [1, 1]} : vector<8x64xf32> to vector<8x32xf32>
    %c1 = arith.constant 1 : index
    %c0_24 = arith.constant 0 : index
    %c0_25 = arith.constant 0 : index
    %129 = vector.load %arg15[%c1, %c0_24, %c0_25] : memref<8x8x64xf32, #tpu.memory_space<vmem>>, vector<1x8x32xf32>
    %130 = vector.shape_cast %129 : vector<1x8x32xf32> to vector<8x32xf32>
    %131 = vector.shape_cast %128 : vector<8x32xf32> to vector<1x8x32xf32>
    tpu.vector_store %arg15[%c1, %c0_24, %c0_25], %131 {strides = array<i32>} : memref<8x8x64xf32, #tpu.memory_space<vmem>>, vector<1x8x32xf32>,
    %132 = vector.extract_strided_slice %124 {offsets = [0, 32], sizes = [8, 32], strides = [1, 1]} : vector<8x64xf32> to vector<8x32xf32>
    %c6 = arith.constant 6 : index
    %c0_26 = arith.constant 0 : index
    %c32_27 = arith.constant 32 : index
    %133 = vector.load %arg15[%c6, %c0_26, %c32_27] : memref<8x8x64xf32, #tpu.memory_space<vmem>>, vector<1x8x32xf32>
    %134 = vector.shape_cast %133 : vector<1x8x32xf32> to vector<8x32xf32>
    %135 = vector.shape_cast %132 : vector<8x32xf32> to vector<1x8x32xf32>
    tpu.vector_store %arg15[%c6, %c0_26, %c32_27], %135 {strides = array<i32>} : memref<8x8x64xf32, #tpu.memory_space<vmem>>, vector<1x8x32xf32>,
    %cst_28 = arith.constant dense<0.000000e+00> : vector<8x192xf32>
    %136 = tpu.matmul %127, %45, %cst_28 {dimension_numbers = #tpu.dot_dimension_numbers<[1], [0], [0], [1], [0, 0, 1, 1], [], []>} : vector<8x64xf32>, vector<64x192xf32>, vector<8x192xf32> -> vector<8x192xf32>
    %137 = vector.extract_strided_slice %38 {offsets = [2, 0, 0], sizes = [1, 8, 64], strides = [1, 1, 1]} : vector<8x8x64xf32> to vector<1x8x64xf32>
    %138 = vector.shape_cast %137 : vector<1x8x64xf32> to vector<8x64xf32>
    %139 = vector.extract_strided_slice %136 {offsets = [0, 0], sizes = [8, 64], strides = [1, 1]} : vector<8x192xf32> to vector<8x64xf32>
    %140 = arith.addf %138, %139 : vector<8x64xf32>
    %141 = arith.negf %140 : vector<8x64xf32>
    %142 = math.exp %141 : vector<8x64xf32>
    %cst_29 = arith.constant 1.000000e+00 : f32
    %143 = vector.broadcast %cst_29 : f32 to vector<8x64xf32>
    %144 = arith.addf %143, %142 : vector<8x64xf32>
    %145 = arith.divf %143, %144 : vector<8x64xf32>
    %146 = vector.extract_strided_slice %41 {offsets = [2, 0, 0], sizes = [1, 8, 64], strides = [1, 1, 1]} : vector<8x8x64xf32> to vector<1x8x64xf32>
    %147 = vector.shape_cast %146 : vector<1x8x64xf32> to vector<8x64xf32>
    %148 = vector.extract_strided_slice %136 {offsets = [0, 64], sizes = [8, 64], strides = [1, 1]} : vector<8x192xf32> to vector<8x64xf32>
    %149 = arith.addf %147, %148 : vector<8x64xf32>
    %150 = arith.negf %149 : vector<8x64xf32>
    %151 = math.exp %150 : vector<8x64xf32>
    %cst_30 = arith.constant 1.000000e+00 : f32
    %152 = vector.broadcast %cst_30 : f32 to vector<8x64xf32>
    %153 = arith.addf %152, %151 : vector<8x64xf32>
    %154 = arith.divf %152, %153 : vector<8x64xf32>
    %155 = vector.extract_strided_slice %44 {offsets = [2, 0, 0], sizes = [1, 8, 64], strides = [1, 1, 1]} : vector<8x8x64xf32> to vector<1x8x64xf32>
    %156 = vector.shape_cast %155 : vector<1x8x64xf32> to vector<8x64xf32>
    %157 = vector.extract_strided_slice %136 {offsets = [0, 128], sizes = [8, 64], strides = [1, 1]} : vector<8x192xf32> to vector<8x64xf32>
    %158 = arith.addf %157, %48 : vector<8x64xf32>
    %159 = arith.mulf %145, %158 : vector<8x64xf32>
    %160 = arith.addf %156, %159 : vector<8x64xf32>
    %161 = math.tanh %160 : vector<8x64xf32>
    %162 = arith.subf %127, %161 : vector<8x64xf32>
    %163 = arith.mulf %154, %162 : vector<8x64xf32>
    %164 = arith.addf %161, %163 : vector<8x64xf32>
    %165 = vector.extract_strided_slice %0 {offsets = [2, 0, 0], sizes = [1, 8, 64], strides = [1, 1, 1]} : vector<8x8x64xf32> to vector<1x8x64xf32>
    %166 = vector.shape_cast %165 : vector<1x8x64xf32> to vector<8x64xf32>
    %167 = arith.mulf %166, %164 : vector<8x64xf32>
    %168 = arith.subf %164, %127 : vector<8x64xf32>
    %169 = arith.mulf %166, %168 : vector<8x64xf32>
    %170 = arith.addf %127, %169 : vector<8x64xf32>
    %171 = vector.extract_strided_slice %167 {offsets = [0, 0], sizes = [8, 32], strides = [1, 1]} : vector<8x64xf32> to vector<8x32xf32>
    %c2 = arith.constant 2 : index
    %c0_31 = arith.constant 0 : index
    %c0_32 = arith.constant 0 : index
    %172 = vector.load %arg15[%c2, %c0_31, %c0_32] : memref<8x8x64xf32, #tpu.memory_space<vmem>>, vector<1x8x32xf32>
    %173 = vector.shape_cast %172 : vector<1x8x32xf32> to vector<8x32xf32>
    %174 = vector.shape_cast %171 : vector<8x32xf32> to vector<1x8x32xf32>
    tpu.vector_store %arg15[%c2, %c0_31, %c0_32], %174 {strides = array<i32>} : memref<8x8x64xf32, #tpu.memory_space<vmem>>, vector<1x8x32xf32>,
    %175 = vector.extract_strided_slice %167 {offsets = [0, 32], sizes = [8, 32], strides = [1, 1]} : vector<8x64xf32> to vector<8x32xf32>
    %c5 = arith.constant 5 : index
    %c0_33 = arith.constant 0 : index
    %c32_34 = arith.constant 32 : index
    %176 = vector.load %arg15[%c5, %c0_33, %c32_34] : memref<8x8x64xf32, #tpu.memory_space<vmem>>, vector<1x8x32xf32>
    %177 = vector.shape_cast %176 : vector<1x8x32xf32> to vector<8x32xf32>
    %178 = vector.shape_cast %175 : vector<8x32xf32> to vector<1x8x32xf32>
    tpu.vector_store %arg15[%c5, %c0_33, %c32_34], %178 {strides = array<i32>} : memref<8x8x64xf32, #tpu.memory_space<vmem>>, vector<1x8x32xf32>,
    %cst_35 = arith.constant dense<0.000000e+00> : vector<8x192xf32>
    %179 = tpu.matmul %170, %45, %cst_35 {dimension_numbers = #tpu.dot_dimension_numbers<[1], [0], [0], [1], [0, 0, 1, 1], [], []>} : vector<8x64xf32>, vector<64x192xf32>, vector<8x192xf32> -> vector<8x192xf32>
    %180 = vector.extract_strided_slice %38 {offsets = [3, 0, 0], sizes = [1, 8, 64], strides = [1, 1, 1]} : vector<8x8x64xf32> to vector<1x8x64xf32>
    %181 = vector.shape_cast %180 : vector<1x8x64xf32> to vector<8x64xf32>
    %182 = vector.extract_strided_slice %179 {offsets = [0, 0], sizes = [8, 64], strides = [1, 1]} : vector<8x192xf32> to vector<8x64xf32>
    %183 = arith.addf %181, %182 : vector<8x64xf32>
    %184 = arith.negf %183 : vector<8x64xf32>
    %185 = math.exp %184 : vector<8x64xf32>
    %cst_36 = arith.constant 1.000000e+00 : f32
    %186 = vector.broadcast %cst_36 : f32 to vector<8x64xf32>
    %187 = arith.addf %186, %185 : vector<8x64xf32>
    %188 = arith.divf %186, %187 : vector<8x64xf32>
    %189 = vector.extract_strided_slice %41 {offsets = [3, 0, 0], sizes = [1, 8, 64], strides = [1, 1, 1]} : vector<8x8x64xf32> to vector<1x8x64xf32>
    %190 = vector.shape_cast %189 : vector<1x8x64xf32> to vector<8x64xf32>
    %191 = vector.extract_strided_slice %179 {offsets = [0, 64], sizes = [8, 64], strides = [1, 1]} : vector<8x192xf32> to vector<8x64xf32>
    %192 = arith.addf %190, %191 : vector<8x64xf32>
    %193 = arith.negf %192 : vector<8x64xf32>
    %194 = math.exp %193 : vector<8x64xf32>
    %cst_37 = arith.constant 1.000000e+00 : f32
    %195 = vector.broadcast %cst_37 : f32 to vector<8x64xf32>
    %196 = arith.addf %195, %194 : vector<8x64xf32>
    %197 = arith.divf %195, %196 : vector<8x64xf32>
    %198 = vector.extract_strided_slice %44 {offsets = [3, 0, 0], sizes = [1, 8, 64], strides = [1, 1, 1]} : vector<8x8x64xf32> to vector<1x8x64xf32>
    %199 = vector.shape_cast %198 : vector<1x8x64xf32> to vector<8x64xf32>
    %200 = vector.extract_strided_slice %179 {offsets = [0, 128], sizes = [8, 64], strides = [1, 1]} : vector<8x192xf32> to vector<8x64xf32>
    %201 = arith.addf %200, %48 : vector<8x64xf32>
    %202 = arith.mulf %188, %201 : vector<8x64xf32>
    %203 = arith.addf %199, %202 : vector<8x64xf32>
    %204 = math.tanh %203 : vector<8x64xf32>
    %205 = arith.subf %170, %204 : vector<8x64xf32>
    %206 = arith.mulf %197, %205 : vector<8x64xf32>
    %207 = arith.addf %204, %206 : vector<8x64xf32>
    %208 = vector.extract_strided_slice %0 {offsets = [3, 0, 0], sizes = [1, 8, 64], strides = [1, 1, 1]} : vector<8x8x64xf32> to vector<1x8x64xf32>
    %209 = vector.shape_cast %208 : vector<1x8x64xf32> to vector<8x64xf32>
    %210 = arith.mulf %209, %207 : vector<8x64xf32>
    %211 = arith.subf %207, %170 : vector<8x64xf32>
    %212 = arith.mulf %209, %211 : vector<8x64xf32>
    %213 = arith.addf %170, %212 : vector<8x64xf32>
    %214 = vector.extract_strided_slice %210 {offsets = [0, 0], sizes = [8, 32], strides = [1, 1]} : vector<8x64xf32> to vector<8x32xf32>
    %c3 = arith.constant 3 : index
    %c0_38 = arith.constant 0 : index
    %c0_39 = arith.constant 0 : index
    %215 = vector.load %arg15[%c3, %c0_38, %c0_39] : memref<8x8x64xf32, #tpu.memory_space<vmem>>, vector<1x8x32xf32>
    %216 = vector.shape_cast %215 : vector<1x8x32xf32> to vector<8x32xf32>
    %217 = vector.shape_cast %214 : vector<8x32xf32> to vector<1x8x32xf32>
    tpu.vector_store %arg15[%c3, %c0_38, %c0_39], %217 {strides = array<i32>} : memref<8x8x64xf32, #tpu.memory_space<vmem>>, vector<1x8x32xf32>,
    %218 = vector.extract_strided_slice %210 {offsets = [0, 32], sizes = [8, 32], strides = [1, 1]} : vector<8x64xf32> to vector<8x32xf32>
    %c4 = arith.constant 4 : index
    %c0_40 = arith.constant 0 : index
    %c32_41 = arith.constant 32 : index
    %219 = vector.load %arg15[%c4, %c0_40, %c32_41] : memref<8x8x64xf32, #tpu.memory_space<vmem>>, vector<1x8x32xf32>
    %220 = vector.shape_cast %219 : vector<1x8x32xf32> to vector<8x32xf32>
    %221 = vector.shape_cast %218 : vector<8x32xf32> to vector<1x8x32xf32>
    tpu.vector_store %arg15[%c4, %c0_40, %c32_41], %221 {strides = array<i32>} : memref<8x8x64xf32, #tpu.memory_space<vmem>>, vector<1x8x32xf32>,
    %cst_42 = arith.constant dense<0.000000e+00> : vector<8x192xf32>
    %222 = tpu.matmul %213, %45, %cst_42 {dimension_numbers = #tpu.dot_dimension_numbers<[1], [0], [0], [1], [0, 0, 1, 1], [], []>} : vector<8x64xf32>, vector<64x192xf32>, vector<8x192xf32> -> vector<8x192xf32>
    %223 = vector.extract_strided_slice %38 {offsets = [4, 0, 0], sizes = [1, 8, 64], strides = [1, 1, 1]} : vector<8x8x64xf32> to vector<1x8x64xf32>
    %224 = vector.shape_cast %223 : vector<1x8x64xf32> to vector<8x64xf32>
    %225 = vector.extract_strided_slice %222 {offsets = [0, 0], sizes = [8, 64], strides = [1, 1]} : vector<8x192xf32> to vector<8x64xf32>
    %226 = arith.addf %224, %225 : vector<8x64xf32>
    %227 = arith.negf %226 : vector<8x64xf32>
    %228 = math.exp %227 : vector<8x64xf32>
    %cst_43 = arith.constant 1.000000e+00 : f32
    %229 = vector.broadcast %cst_43 : f32 to vector<8x64xf32>
    %230 = arith.addf %229, %228 : vector<8x64xf32>
    %231 = arith.divf %229, %230 : vector<8x64xf32>
    %232 = vector.extract_strided_slice %41 {offsets = [4, 0, 0], sizes = [1, 8, 64], strides = [1, 1, 1]} : vector<8x8x64xf32> to vector<1x8x64xf32>
    %233 = vector.shape_cast %232 : vector<1x8x64xf32> to vector<8x64xf32>
    %234 = vector.extract_strided_slice %222 {offsets = [0, 64], sizes = [8, 64], strides = [1, 1]} : vector<8x192xf32> to vector<8x64xf32>
    %235 = arith.addf %233, %234 : vector<8x64xf32>
    %236 = arith.negf %235 : vector<8x64xf32>
    %237 = math.exp %236 : vector<8x64xf32>
    %cst_44 = arith.constant 1.000000e+00 : f32
    %238 = vector.broadcast %cst_44 : f32 to vector<8x64xf32>
    %239 = arith.addf %238, %237 : vector<8x64xf32>
    %240 = arith.divf %238, %239 : vector<8x64xf32>
    %241 = vector.extract_strided_slice %44 {offsets = [4, 0, 0], sizes = [1, 8, 64], strides = [1, 1, 1]} : vector<8x8x64xf32> to vector<1x8x64xf32>
    %242 = vector.shape_cast %241 : vector<1x8x64xf32> to vector<8x64xf32>
    %243 = vector.extract_strided_slice %222 {offsets = [0, 128], sizes = [8, 64], strides = [1, 1]} : vector<8x192xf32> to vector<8x64xf32>
    %244 = arith.addf %243, %48 : vector<8x64xf32>
    %245 = arith.mulf %231, %244 : vector<8x64xf32>
    %246 = arith.addf %242, %245 : vector<8x64xf32>
    %247 = math.tanh %246 : vector<8x64xf32>
    %248 = arith.subf %213, %247 : vector<8x64xf32>
    %249 = arith.mulf %240, %248 : vector<8x64xf32>
    %250 = arith.addf %247, %249 : vector<8x64xf32>
    %251 = vector.extract_strided_slice %0 {offsets = [4, 0, 0], sizes = [1, 8, 64], strides = [1, 1, 1]} : vector<8x8x64xf32> to vector<1x8x64xf32>
    %252 = vector.shape_cast %251 : vector<1x8x64xf32> to vector<8x64xf32>
    %253 = arith.mulf %252, %250 : vector<8x64xf32>
    %254 = arith.subf %250, %213 : vector<8x64xf32>
    %255 = arith.mulf %252, %254 : vector<8x64xf32>
    %256 = arith.addf %213, %255 : vector<8x64xf32>
    %257 = vector.extract_strided_slice %253 {offsets = [0, 0], sizes = [8, 32], strides = [1, 1]} : vector<8x64xf32> to vector<8x32xf32>
    %c4_45 = arith.constant 4 : index
    %c0_46 = arith.constant 0 : index
    %c0_47 = arith.constant 0 : index
    %258 = vector.load %arg15[%c4_45, %c0_46, %c0_47] : memref<8x8x64xf32, #tpu.memory_space<vmem>>, vector<1x8x32xf32>
    %259 = vector.shape_cast %258 : vector<1x8x32xf32> to vector<8x32xf32>
    %260 = vector.shape_cast %257 : vector<8x32xf32> to vector<1x8x32xf32>
    tpu.vector_store %arg15[%c4_45, %c0_46, %c0_47], %260 {strides = array<i32>} : memref<8x8x64xf32, #tpu.memory_space<vmem>>, vector<1x8x32xf32>,
    %261 = vector.extract_strided_slice %253 {offsets = [0, 32], sizes = [8, 32], strides = [1, 1]} : vector<8x64xf32> to vector<8x32xf32>
    %c3_48 = arith.constant 3 : index
    %c0_49 = arith.constant 0 : index
    %c32_50 = arith.constant 32 : index
    %262 = vector.load %arg15[%c3_48, %c0_49, %c32_50] : memref<8x8x64xf32, #tpu.memory_space<vmem>>, vector<1x8x32xf32>
    %263 = vector.shape_cast %262 : vector<1x8x32xf32> to vector<8x32xf32>
    %264 = vector.shape_cast %261 : vector<8x32xf32> to vector<1x8x32xf32>
    tpu.vector_store %arg15[%c3_48, %c0_49, %c32_50], %264 {strides = array<i32>} : memref<8x8x64xf32, #tpu.memory_space<vmem>>, vector<1x8x32xf32>,
    %cst_51 = arith.constant dense<0.000000e+00> : vector<8x192xf32>
    %265 = tpu.matmul %256, %45, %cst_51 {dimension_numbers = #tpu.dot_dimension_numbers<[1], [0], [0], [1], [0, 0, 1, 1], [], []>} : vector<8x64xf32>, vector<64x192xf32>, vector<8x192xf32> -> vector<8x192xf32>
    %266 = vector.extract_strided_slice %38 {offsets = [5, 0, 0], sizes = [1, 8, 64], strides = [1, 1, 1]} : vector<8x8x64xf32> to vector<1x8x64xf32>
    %267 = vector.shape_cast %266 : vector<1x8x64xf32> to vector<8x64xf32>
    %268 = vector.extract_strided_slice %265 {offsets = [0, 0], sizes = [8, 64], strides = [1, 1]} : vector<8x192xf32> to vector<8x64xf32>
    %269 = arith.addf %267, %268 : vector<8x64xf32>
    %270 = arith.negf %269 : vector<8x64xf32>
    %271 = math.exp %270 : vector<8x64xf32>
    %cst_52 = arith.constant 1.000000e+00 : f32
    %272 = vector.broadcast %cst_52 : f32 to vector<8x64xf32>
    %273 = arith.addf %272, %271 : vector<8x64xf32>
    %274 = arith.divf %272, %273 : vector<8x64xf32>
    %275 = vector.extract_strided_slice %41 {offsets = [5, 0, 0], sizes = [1, 8, 64], strides = [1, 1, 1]} : vector<8x8x64xf32> to vector<1x8x64xf32>
    %276 = vector.shape_cast %275 : vector<1x8x64xf32> to vector<8x64xf32>
    %277 = vector.extract_strided_slice %265 {offsets = [0, 64], sizes = [8, 64], strides = [1, 1]} : vector<8x192xf32> to vector<8x64xf32>
    %278 = arith.addf %276, %277 : vector<8x64xf32>
    %279 = arith.negf %278 : vector<8x64xf32>
    %280 = math.exp %279 : vector<8x64xf32>
    %cst_53 = arith.constant 1.000000e+00 : f32
    %281 = vector.broadcast %cst_53 : f32 to vector<8x64xf32>
    %282 = arith.addf %281, %280 : vector<8x64xf32>
    %283 = arith.divf %281, %282 : vector<8x64xf32>
    %284 = vector.extract_strided_slice %44 {offsets = [5, 0, 0], sizes = [1, 8, 64], strides = [1, 1, 1]} : vector<8x8x64xf32> to vector<1x8x64xf32>
    %285 = vector.shape_cast %284 : vector<1x8x64xf32> to vector<8x64xf32>
    %286 = vector.extract_strided_slice %265 {offsets = [0, 128], sizes = [8, 64], strides = [1, 1]} : vector<8x192xf32> to vector<8x64xf32>
    %287 = arith.addf %286, %48 : vector<8x64xf32>
    %288 = arith.mulf %274, %287 : vector<8x64xf32>
    %289 = arith.addf %285, %288 : vector<8x64xf32>
    %290 = math.tanh %289 : vector<8x64xf32>
    %291 = arith.subf %256, %290 : vector<8x64xf32>
    %292 = arith.mulf %283, %291 : vector<8x64xf32>
    %293 = arith.addf %290, %292 : vector<8x64xf32>
    %294 = vector.extract_strided_slice %0 {offsets = [5, 0, 0], sizes = [1, 8, 64], strides = [1, 1, 1]} : vector<8x8x64xf32> to vector<1x8x64xf32>
    %295 = vector.shape_cast %294 : vector<1x8x64xf32> to vector<8x64xf32>
    %296 = arith.mulf %295, %293 : vector<8x64xf32>
    %297 = arith.subf %293, %256 : vector<8x64xf32>
    %298 = arith.mulf %295, %297 : vector<8x64xf32>
    %299 = arith.addf %256, %298 : vector<8x64xf32>
    %300 = vector.extract_strided_slice %296 {offsets = [0, 0], sizes = [8, 32], strides = [1, 1]} : vector<8x64xf32> to vector<8x32xf32>
    %c5_54 = arith.constant 5 : index
    %c0_55 = arith.constant 0 : index
    %c0_56 = arith.constant 0 : index
    %301 = vector.load %arg15[%c5_54, %c0_55, %c0_56] : memref<8x8x64xf32, #tpu.memory_space<vmem>>, vector<1x8x32xf32>
    %302 = vector.shape_cast %301 : vector<1x8x32xf32> to vector<8x32xf32>
    %303 = vector.shape_cast %300 : vector<8x32xf32> to vector<1x8x32xf32>
    tpu.vector_store %arg15[%c5_54, %c0_55, %c0_56], %303 {strides = array<i32>} : memref<8x8x64xf32, #tpu.memory_space<vmem>>, vector<1x8x32xf32>,
    %304 = vector.extract_strided_slice %296 {offsets = [0, 32], sizes = [8, 32], strides = [1, 1]} : vector<8x64xf32> to vector<8x32xf32>
    %c2_57 = arith.constant 2 : index
    %c0_58 = arith.constant 0 : index
    %c32_59 = arith.constant 32 : index
    %305 = vector.load %arg15[%c2_57, %c0_58, %c32_59] : memref<8x8x64xf32, #tpu.memory_space<vmem>>, vector<1x8x32xf32>
    %306 = vector.shape_cast %305 : vector<1x8x32xf32> to vector<8x32xf32>
    %307 = vector.shape_cast %304 : vector<8x32xf32> to vector<1x8x32xf32>
    tpu.vector_store %arg15[%c2_57, %c0_58, %c32_59], %307 {strides = array<i32>} : memref<8x8x64xf32, #tpu.memory_space<vmem>>, vector<1x8x32xf32>,
    %cst_60 = arith.constant dense<0.000000e+00> : vector<8x192xf32>
    %308 = tpu.matmul %299, %45, %cst_60 {dimension_numbers = #tpu.dot_dimension_numbers<[1], [0], [0], [1], [0, 0, 1, 1], [], []>} : vector<8x64xf32>, vector<64x192xf32>, vector<8x192xf32> -> vector<8x192xf32>
    %309 = vector.extract_strided_slice %38 {offsets = [6, 0, 0], sizes = [1, 8, 64], strides = [1, 1, 1]} : vector<8x8x64xf32> to vector<1x8x64xf32>
    %310 = vector.shape_cast %309 : vector<1x8x64xf32> to vector<8x64xf32>
    %311 = vector.extract_strided_slice %308 {offsets = [0, 0], sizes = [8, 64], strides = [1, 1]} : vector<8x192xf32> to vector<8x64xf32>
    %312 = arith.addf %310, %311 : vector<8x64xf32>
    %313 = arith.negf %312 : vector<8x64xf32>
    %314 = math.exp %313 : vector<8x64xf32>
    %cst_61 = arith.constant 1.000000e+00 : f32
    %315 = vector.broadcast %cst_61 : f32 to vector<8x64xf32>
    %316 = arith.addf %315, %314 : vector<8x64xf32>
    %317 = arith.divf %315, %316 : vector<8x64xf32>
    %318 = vector.extract_strided_slice %41 {offsets = [6, 0, 0], sizes = [1, 8, 64], strides = [1, 1, 1]} : vector<8x8x64xf32> to vector<1x8x64xf32>
    %319 = vector.shape_cast %318 : vector<1x8x64xf32> to vector<8x64xf32>
    %320 = vector.extract_strided_slice %308 {offsets = [0, 64], sizes = [8, 64], strides = [1, 1]} : vector<8x192xf32> to vector<8x64xf32>
    %321 = arith.addf %319, %320 : vector<8x64xf32>
    %322 = arith.negf %321 : vector<8x64xf32>
    %323 = math.exp %322 : vector<8x64xf32>
    %cst_62 = arith.constant 1.000000e+00 : f32
    %324 = vector.broadcast %cst_62 : f32 to vector<8x64xf32>
    %325 = arith.addf %324, %323 : vector<8x64xf32>
    %326 = arith.divf %324, %325 : vector<8x64xf32>
    %327 = vector.extract_strided_slice %44 {offsets = [6, 0, 0], sizes = [1, 8, 64], strides = [1, 1, 1]} : vector<8x8x64xf32> to vector<1x8x64xf32>
    %328 = vector.shape_cast %327 : vector<1x8x64xf32> to vector<8x64xf32>
    %329 = vector.extract_strided_slice %308 {offsets = [0, 128], sizes = [8, 64], strides = [1, 1]} : vector<8x192xf32> to vector<8x64xf32>
    %330 = arith.addf %329, %48 : vector<8x64xf32>
    %331 = arith.mulf %317, %330 : vector<8x64xf32>
    %332 = arith.addf %328, %331 : vector<8x64xf32>
    %333 = math.tanh %332 : vector<8x64xf32>
    %334 = arith.subf %299, %333 : vector<8x64xf32>
    %335 = arith.mulf %326, %334 : vector<8x64xf32>
    %336 = arith.addf %333, %335 : vector<8x64xf32>
    %337 = vector.extract_strided_slice %0 {offsets = [6, 0, 0], sizes = [1, 8, 64], strides = [1, 1, 1]} : vector<8x8x64xf32> to vector<1x8x64xf32>
    %338 = vector.shape_cast %337 : vector<1x8x64xf32> to vector<8x64xf32>
    %339 = arith.mulf %338, %336 : vector<8x64xf32>
    %340 = arith.subf %336, %299 : vector<8x64xf32>
    %341 = arith.mulf %338, %340 : vector<8x64xf32>
    %342 = arith.addf %299, %341 : vector<8x64xf32>
    %343 = vector.extract_strided_slice %339 {offsets = [0, 0], sizes = [8, 32], strides = [1, 1]} : vector<8x64xf32> to vector<8x32xf32>
    %c6_63 = arith.constant 6 : index
    %c0_64 = arith.constant 0 : index
    %c0_65 = arith.constant 0 : index
    %344 = vector.load %arg15[%c6_63, %c0_64, %c0_65] : memref<8x8x64xf32, #tpu.memory_space<vmem>>, vector<1x8x32xf32>
    %345 = vector.shape_cast %344 : vector<1x8x32xf32> to vector<8x32xf32>
    %346 = vector.shape_cast %343 : vector<8x32xf32> to vector<1x8x32xf32>
    tpu.vector_store %arg15[%c6_63, %c0_64, %c0_65], %346 {strides = array<i32>} : memref<8x8x64xf32, #tpu.memory_space<vmem>>, vector<1x8x32xf32>,
    %347 = vector.extract_strided_slice %339 {offsets = [0, 32], sizes = [8, 32], strides = [1, 1]} : vector<8x64xf32> to vector<8x32xf32>
    %c1_66 = arith.constant 1 : index
    %c0_67 = arith.constant 0 : index
    %c32_68 = arith.constant 32 : index
    %348 = vector.load %arg15[%c1_66, %c0_67, %c32_68] : memref<8x8x64xf32, #tpu.memory_space<vmem>>, vector<1x8x32xf32>
    %349 = vector.shape_cast %348 : vector<1x8x32xf32> to vector<8x32xf32>
    %350 = vector.shape_cast %347 : vector<8x32xf32> to vector<1x8x32xf32>
    tpu.vector_store %arg15[%c1_66, %c0_67, %c32_68], %350 {strides = array<i32>} : memref<8x8x64xf32, #tpu.memory_space<vmem>>, vector<1x8x32xf32>,
    %cst_69 = arith.constant dense<0.000000e+00> : vector<8x192xf32>
    %351 = tpu.matmul %342, %45, %cst_69 {dimension_numbers = #tpu.dot_dimension_numbers<[1], [0], [0], [1], [0, 0, 1, 1], [], []>} : vector<8x64xf32>, vector<64x192xf32>, vector<8x192xf32> -> vector<8x192xf32>
    %352 = vector.extract_strided_slice %38 {offsets = [7, 0, 0], sizes = [1, 8, 64], strides = [1, 1, 1]} : vector<8x8x64xf32> to vector<1x8x64xf32>
    %353 = vector.shape_cast %352 : vector<1x8x64xf32> to vector<8x64xf32>
    %354 = vector.extract_strided_slice %351 {offsets = [0, 0], sizes = [8, 64], strides = [1, 1]} : vector<8x192xf32> to vector<8x64xf32>
    %355 = arith.addf %353, %354 : vector<8x64xf32>
    %356 = arith.negf %355 : vector<8x64xf32>
    %357 = math.exp %356 : vector<8x64xf32>
    %cst_70 = arith.constant 1.000000e+00 : f32
    %358 = vector.broadcast %cst_70 : f32 to vector<8x64xf32>
    %359 = arith.addf %358, %357 : vector<8x64xf32>
    %360 = arith.divf %358, %359 : vector<8x64xf32>
    %361 = vector.extract_strided_slice %41 {offsets = [7, 0, 0], sizes = [1, 8, 64], strides = [1, 1, 1]} : vector<8x8x64xf32> to vector<1x8x64xf32>
    %362 = vector.shape_cast %361 : vector<1x8x64xf32> to vector<8x64xf32>
    %363 = vector.extract_strided_slice %351 {offsets = [0, 64], sizes = [8, 64], strides = [1, 1]} : vector<8x192xf32> to vector<8x64xf32>
    %364 = arith.addf %362, %363 : vector<8x64xf32>
    %365 = arith.negf %364 : vector<8x64xf32>
    %366 = math.exp %365 : vector<8x64xf32>
    %cst_71 = arith.constant 1.000000e+00 : f32
    %367 = vector.broadcast %cst_71 : f32 to vector<8x64xf32>
    %368 = arith.addf %367, %366 : vector<8x64xf32>
    %369 = arith.divf %367, %368 : vector<8x64xf32>
    %370 = vector.extract_strided_slice %44 {offsets = [7, 0, 0], sizes = [1, 8, 64], strides = [1, 1, 1]} : vector<8x8x64xf32> to vector<1x8x64xf32>
    %371 = vector.shape_cast %370 : vector<1x8x64xf32> to vector<8x64xf32>
    %372 = vector.extract_strided_slice %351 {offsets = [0, 128], sizes = [8, 64], strides = [1, 1]} : vector<8x192xf32> to vector<8x64xf32>
    %373 = arith.addf %372, %48 : vector<8x64xf32>
    %374 = arith.mulf %360, %373 : vector<8x64xf32>
    %375 = arith.addf %371, %374 : vector<8x64xf32>
    %376 = math.tanh %375 : vector<8x64xf32>
    %377 = arith.subf %342, %376 : vector<8x64xf32>
    %378 = arith.mulf %369, %377 : vector<8x64xf32>
    %379 = arith.addf %376, %378 : vector<8x64xf32>
    %380 = vector.extract_strided_slice %0 {offsets = [7, 0, 0], sizes = [1, 8, 64], strides = [1, 1, 1]} : vector<8x8x64xf32> to vector<1x8x64xf32>
    %381 = vector.shape_cast %380 : vector<1x8x64xf32> to vector<8x64xf32>
    %382 = arith.mulf %381, %379 : vector<8x64xf32>
    %383 = vector.extract_strided_slice %382 {offsets = [0, 0], sizes = [8, 32], strides = [1, 1]} : vector<8x64xf32> to vector<8x32xf32>
    %c7_72 = arith.constant 7 : index
    %c0_73 = arith.constant 0 : index
    %c0_74 = arith.constant 0 : index
    %384 = vector.load %arg15[%c7_72, %c0_73, %c0_74] : memref<8x8x64xf32, #tpu.memory_space<vmem>>, vector<1x8x32xf32>
    %385 = vector.shape_cast %384 : vector<1x8x32xf32> to vector<8x32xf32>
    %386 = vector.shape_cast %383 : vector<8x32xf32> to vector<1x8x32xf32>
    tpu.vector_store %arg15[%c7_72, %c0_73, %c0_74], %386 {strides = array<i32>} : memref<8x8x64xf32, #tpu.memory_space<vmem>>, vector<1x8x32xf32>,
    %387 = vector.extract_strided_slice %382 {offsets = [0, 32], sizes = [8, 32], strides = [1, 1]} : vector<8x64xf32> to vector<8x32xf32>
    %c0_75 = arith.constant 0 : index
    %c0_76 = arith.constant 0 : index
    %c32_77 = arith.constant 32 : index
    %388 = vector.load %arg15[%c0_75, %c0_76, %c32_77] : memref<8x8x64xf32, #tpu.memory_space<vmem>>, vector<1x8x32xf32>
    %389 = vector.shape_cast %388 : vector<1x8x32xf32> to vector<8x32xf32>
    %390 = vector.shape_cast %387 : vector<8x32xf32> to vector<1x8x32xf32>
    tpu.vector_store %arg15[%c0_75, %c0_76, %c32_77], %390 {strides = array<i32>} : memref<8x8x64xf32, #tpu.memory_space<vmem>>, vector<1x8x32xf32>,
    %c0_78 = arith.constant 0 : index
    %c0_79 = arith.constant 0 : index
    %c0_80 = arith.constant 0 : index
    %391 = vector.load %arg15[%c0_78, %c0_79, %c0_80] : memref<8x8x64xf32, #tpu.memory_space<vmem>>, vector<8x8x64xf32>
    %392 = vector.shape_cast %391 : vector<8x8x64xf32> to vector<64x64xf32>
    %c0_81 = arith.constant 0 : index
    %c0_82 = arith.constant 0 : index
    %393 = vector.load %arg6[%c0_81, %c0_82] : memref<64x192xf32, #tpu.memory_space<vmem>>, vector<64x192xf32>
    %cst_83 = arith.constant dense<0.000000e+00> : vector<64x192xf32>
    %394 = tpu.matmul %392, %393, %cst_83 {dimension_numbers = #tpu.dot_dimension_numbers<[1], [0], [0], [1], [0, 0, 1, 1], [], []>} : vector<64x64xf32>, vector<64x192xf32>, vector<64x192xf32> -> vector<64x192xf32>
    %c0_84 = arith.constant 0 : index
    %c0_85 = arith.constant 0 : index
    %395 = vector.load %arg7[%c0_84, %c0_85] : memref<1x192xf32, #tpu.memory_space<vmem>>, vector<1x192xf32>
    %396 = vector.broadcast %395 : vector<1x192xf32> to vector<64x192xf32>
    %397 = arith.addf %394, %396 : vector<64x192xf32>
    %398 = vector.shape_cast %397 : vector<64x192xf32> to vector<8x8x192xf32>
    %399 = vector.extract_strided_slice %398 {offsets = [0, 0, 0], sizes = [8, 8, 96], strides = [1, 1, 1]} : vector<8x8x192xf32> to vector<8x8x96xf32>
    %400 = vector.extract_strided_slice %398 {offsets = [0, 0, 96], sizes = [8, 8, 96], strides = [1, 1, 1]} : vector<8x8x192xf32> to vector<8x8x96xf32>
    %401 = vector.extract_strided_slice %400 {offsets = [7, 0, 0], sizes = [1, 8, 96], strides = [1, 1, 1]} : vector<8x8x96xf32> to vector<1x8x96xf32>
    %402 = vector.shape_cast %401 : vector<1x8x96xf32> to vector<8x96xf32>
    %403 = vector.extract_strided_slice %400 {offsets = [6, 0, 0], sizes = [1, 8, 96], strides = [1, 1, 1]} : vector<8x8x96xf32> to vector<1x8x96xf32>
    %404 = vector.shape_cast %403 : vector<1x8x96xf32> to vector<8x96xf32>
    %405 = vector.extract_strided_slice %400 {offsets = [5, 0, 0], sizes = [1, 8, 96], strides = [1, 1, 1]} : vector<8x8x96xf32> to vector<1x8x96xf32>
    %406 = vector.shape_cast %405 : vector<1x8x96xf32> to vector<8x96xf32>
    %407 = vector.extract_strided_slice %400 {offsets = [4, 0, 0], sizes = [1, 8, 96], strides = [1, 1, 1]} : vector<8x8x96xf32> to vector<1x8x96xf32>
    %408 = vector.shape_cast %407 : vector<1x8x96xf32> to vector<8x96xf32>
    %409 = vector.extract_strided_slice %400 {offsets = [3, 0, 0], sizes = [1, 8, 96], strides = [1, 1, 1]} : vector<8x8x96xf32> to vector<1x8x96xf32>
    %410 = vector.shape_cast %409 : vector<1x8x96xf32> to vector<8x96xf32>
    %411 = vector.extract_strided_slice %400 {offsets = [2, 0, 0], sizes = [1, 8, 96], strides = [1, 1, 1]} : vector<8x8x96xf32> to vector<1x8x96xf32>
    %412 = vector.shape_cast %411 : vector<1x8x96xf32> to vector<8x96xf32>
    %413 = vector.extract_strided_slice %400 {offsets = [1, 0, 0], sizes = [1, 8, 96], strides = [1, 1, 1]} : vector<8x8x96xf32> to vector<1x8x96xf32>
    %414 = vector.shape_cast %413 : vector<1x8x96xf32> to vector<8x96xf32>
    %415 = vector.extract_strided_slice %400 {offsets = [0, 0, 0], sizes = [1, 8, 96], strides = [1, 1, 1]} : vector<8x8x96xf32> to vector<1x8x96xf32>
    %416 = vector.shape_cast %415 : vector<1x8x96xf32> to vector<8x96xf32>
    %417 = vector.shape_cast %402 : vector<8x96xf32> to vector<1x8x96xf32>
    %418 = vector.shape_cast %404 : vector<8x96xf32> to vector<1x8x96xf32>
    %419 = vector.shape_cast %406 : vector<8x96xf32> to vector<1x8x96xf32>
    %420 = vector.shape_cast %408 : vector<8x96xf32> to vector<1x8x96xf32>
    %421 = vector.shape_cast %410 : vector<8x96xf32> to vector<1x8x96xf32>
    %422 = vector.shape_cast %412 : vector<8x96xf32> to vector<1x8x96xf32>
    %423 = vector.shape_cast %414 : vector<8x96xf32> to vector<1x8x96xf32>
    %424 = vector.shape_cast %416 : vector<8x96xf32> to vector<1x8x96xf32>
    %425 = tpu.concatenate %417, %418, %419, %420, %421, %422, %423, %424 in 0 : vector<1x8x96xf32>, vector<1x8x96xf32>, vector<1x8x96xf32>, vector<1x8x96xf32>, vector<1x8x96xf32>, vector<1x8x96xf32>, vector<1x8x96xf32>, vector<1x8x96xf32> -> vector<8x8x96xf32>
    %426 = vector.extract_strided_slice %399 {offsets = [0, 0, 0], sizes = [8, 8, 32], strides = [1, 1, 1]} : vector<8x8x96xf32> to vector<8x8x32xf32>
    %427 = vector.extract_strided_slice %425 {offsets = [0, 0, 0], sizes = [8, 8, 32], strides = [1, 1, 1]} : vector<8x8x96xf32> to vector<8x8x32xf32>
    %428 = tpu.concatenate %426, %427 in 2 : vector<8x8x32xf32>, vector<8x8x32xf32> -> vector<8x8x64xf32>
    %429 = vector.extract_strided_slice %399 {offsets = [0, 0, 32], sizes = [8, 8, 32], strides = [1, 1, 1]} : vector<8x8x96xf32> to vector<8x8x32xf32>
    %430 = vector.extract_strided_slice %425 {offsets = [0, 0, 32], sizes = [8, 8, 32], strides = [1, 1, 1]} : vector<8x8x96xf32> to vector<8x8x32xf32>
    %431 = tpu.concatenate %429, %430 in 2 : vector<8x8x32xf32>, vector<8x8x32xf32> -> vector<8x8x64xf32>
    %432 = vector.extract_strided_slice %399 {offsets = [0, 0, 64], sizes = [8, 8, 32], strides = [1, 1, 1]} : vector<8x8x96xf32> to vector<8x8x32xf32>
    %433 = vector.extract_strided_slice %425 {offsets = [0, 0, 64], sizes = [8, 8, 32], strides = [1, 1, 1]} : vector<8x8x96xf32> to vector<8x8x32xf32>
    %434 = tpu.concatenate %432, %433 in 2 : vector<8x8x32xf32>, vector<8x8x32xf32> -> vector<8x8x64xf32>
    %c0_86 = arith.constant 0 : index
    %c0_87 = arith.constant 0 : index
    %435 = vector.load %arg8[%c0_86, %c0_87] : memref<64x192xf32, #tpu.memory_space<vmem>>, vector<64x192xf32>
    %c0_88 = arith.constant 0 : index
    %c0_89 = arith.constant 0 : index
    %436 = vector.load %arg9[%c0_88, %c0_89] : memref<1x64xf32, #tpu.memory_space<vmem>>, vector<1x64xf32>
    %437 = vector.shape_cast %436 : vector<1x64xf32> to vector<1x64xf32>
    %438 = vector.broadcast %437 : vector<1x64xf32> to vector<8x64xf32>
    %cst_90 = arith.constant 0.000000e+00 : f32
    %439 = vector.broadcast %cst_90 : f32 to vector<8x64xf32>
    %cst_91 = arith.constant dense<0.000000e+00> : vector<8x192xf32>
    %440 = tpu.matmul %439, %435, %cst_91 {dimension_numbers = #tpu.dot_dimension_numbers<[1], [0], [0], [1], [0, 0, 1, 1], [], []>} : vector<8x64xf32>, vector<64x192xf32>, vector<8x192xf32> -> vector<8x192xf32>
    %441 = vector.extract_strided_slice %428 {offsets = [0, 0, 0], sizes = [1, 8, 64], strides = [1, 1, 1]} : vector<8x8x64xf32> to vector<1x8x64xf32>
    %442 = vector.shape_cast %441 : vector<1x8x64xf32> to vector<8x64xf32>
    %443 = vector.extract_strided_slice %440 {offsets = [0, 0], sizes = [8, 64], strides = [1, 1]} : vector<8x192xf32> to vector<8x64xf32>
    %444 = arith.addf %442, %443 : vector<8x64xf32>
    %445 = arith.negf %444 : vector<8x64xf32>
    %446 = math.exp %445 : vector<8x64xf32>
    %cst_92 = arith.constant 1.000000e+00 : f32
    %447 = vector.broadcast %cst_92 : f32 to vector<8x64xf32>
    %448 = arith.addf %447, %446 : vector<8x64xf32>
    %449 = arith.divf %447, %448 : vector<8x64xf32>
    %450 = vector.extract_strided_slice %431 {offsets = [0, 0, 0], sizes = [1, 8, 64], strides = [1, 1, 1]} : vector<8x8x64xf32> to vector<1x8x64xf32>
    %451 = vector.shape_cast %450 : vector<1x8x64xf32> to vector<8x64xf32>
    %452 = vector.extract_strided_slice %440 {offsets = [0, 64], sizes = [8, 64], strides = [1, 1]} : vector<8x192xf32> to vector<8x64xf32>
    %453 = arith.addf %451, %452 : vector<8x64xf32>
    %454 = arith.negf %453 : vector<8x64xf32>
    %455 = math.exp %454 : vector<8x64xf32>
    %cst_93 = arith.constant 1.000000e+00 : f32
    %456 = vector.broadcast %cst_93 : f32 to vector<8x64xf32>
    %457 = arith.addf %456, %455 : vector<8x64xf32>
    %458 = arith.divf %456, %457 : vector<8x64xf32>
    %459 = vector.extract_strided_slice %434 {offsets = [0, 0, 0], sizes = [1, 8, 64], strides = [1, 1, 1]} : vector<8x8x64xf32> to vector<1x8x64xf32>
    %460 = vector.shape_cast %459 : vector<1x8x64xf32> to vector<8x64xf32>
    %461 = vector.extract_strided_slice %440 {offsets = [0, 128], sizes = [8, 64], strides = [1, 1]} : vector<8x192xf32> to vector<8x64xf32>
    %462 = arith.addf %461, %438 : vector<8x64xf32>
    %463 = arith.mulf %449, %462 : vector<8x64xf32>
    %464 = arith.addf %460, %463 : vector<8x64xf32>
    %465 = math.tanh %464 : vector<8x64xf32>
    %466 = arith.subf %439, %465 : vector<8x64xf32>
    %467 = arith.mulf %458, %466 : vector<8x64xf32>
    %468 = arith.addf %465, %467 : vector<8x64xf32>
    %469 = vector.extract_strided_slice %0 {offsets = [0, 0, 0], sizes = [1, 8, 64], strides = [1, 1, 1]} : vector<8x8x64xf32> to vector<1x8x64xf32>
    %470 = vector.shape_cast %469 : vector<1x8x64xf32> to vector<8x64xf32>
    %471 = arith.mulf %470, %468 : vector<8x64xf32>
    %472 = arith.subf %468, %439 : vector<8x64xf32>
    %473 = arith.mulf %470, %472 : vector<8x64xf32>
    %474 = arith.addf %439, %473 : vector<8x64xf32>
    %475 = vector.extract_strided_slice %471 {offsets = [0, 0], sizes = [8, 32], strides = [1, 1]} : vector<8x64xf32> to vector<8x32xf32>
    %c0_94 = arith.constant 0 : index
    %c0_95 = arith.constant 0 : index
    %c0_96 = arith.constant 0 : index
    %476 = vector.load %arg15[%c0_94, %c0_95, %c0_96] : memref<8x8x64xf32, #tpu.memory_space<vmem>>, vector<1x8x32xf32>
    %477 = vector.shape_cast %476 : vector<1x8x32xf32> to vector<8x32xf32>
    %478 = vector.shape_cast %475 : vector<8x32xf32> to vector<1x8x32xf32>
    tpu.vector_store %arg15[%c0_94, %c0_95, %c0_96], %478 {strides = array<i32>} : memref<8x8x64xf32, #tpu.memory_space<vmem>>, vector<1x8x32xf32>,
    %479 = vector.extract_strided_slice %471 {offsets = [0, 32], sizes = [8, 32], strides = [1, 1]} : vector<8x64xf32> to vector<8x32xf32>
    %c7_97 = arith.constant 7 : index
    %c0_98 = arith.constant 0 : index
    %c32_99 = arith.constant 32 : index
    %480 = vector.load %arg15[%c7_97, %c0_98, %c32_99] : memref<8x8x64xf32, #tpu.memory_space<vmem>>, vector<1x8x32xf32>
    %481 = vector.shape_cast %480 : vector<1x8x32xf32> to vector<8x32xf32>
    %482 = vector.shape_cast %479 : vector<8x32xf32> to vector<1x8x32xf32>
    tpu.vector_store %arg15[%c7_97, %c0_98, %c32_99], %482 {strides = array<i32>} : memref<8x8x64xf32, #tpu.memory_space<vmem>>, vector<1x8x32xf32>,
    %cst_100 = arith.constant dense<0.000000e+00> : vector<8x192xf32>
    %483 = tpu.matmul %474, %435, %cst_100 {dimension_numbers = #tpu.dot_dimension_numbers<[1], [0], [0], [1], [0, 0, 1, 1], [], []>} : vector<8x64xf32>, vector<64x192xf32>, vector<8x192xf32> -> vector<8x192xf32>
    %484 = vector.extract_strided_slice %428 {offsets = [1, 0, 0], sizes = [1, 8, 64], strides = [1, 1, 1]} : vector<8x8x64xf32> to vector<1x8x64xf32>
    %485 = vector.shape_cast %484 : vector<1x8x64xf32> to vector<8x64xf32>
    %486 = vector.extract_strided_slice %483 {offsets = [0, 0], sizes = [8, 64], strides = [1, 1]} : vector<8x192xf32> to vector<8x64xf32>
    %487 = arith.addf %485, %486 : vector<8x64xf32>
    %488 = arith.negf %487 : vector<8x64xf32>
    %489 = math.exp %488 : vector<8x64xf32>
    %cst_101 = arith.constant 1.000000e+00 : f32
    %490 = vector.broadcast %cst_101 : f32 to vector<8x64xf32>
    %491 = arith.addf %490, %489 : vector<8x64xf32>
    %492 = arith.divf %490, %491 : vector<8x64xf32>
    %493 = vector.extract_strided_slice %431 {offsets = [1, 0, 0], sizes = [1, 8, 64], strides = [1, 1, 1]} : vector<8x8x64xf32> to vector<1x8x64xf32>
    %494 = vector.shape_cast %493 : vector<1x8x64xf32> to vector<8x64xf32>
    %495 = vector.extract_strided_slice %483 {offsets = [0, 64], sizes = [8, 64], strides = [1, 1]} : vector<8x192xf32> to vector<8x64xf32>
    %496 = arith.addf %494, %495 : vector<8x64xf32>
    %497 = arith.negf %496 : vector<8x64xf32>
    %498 = math.exp %497 : vector<8x64xf32>
    %cst_102 = arith.constant 1.000000e+00 : f32
    %499 = vector.broadcast %cst_102 : f32 to vector<8x64xf32>
    %500 = arith.addf %499, %498 : vector<8x64xf32>
    %501 = arith.divf %499, %500 : vector<8x64xf32>
    %502 = vector.extract_strided_slice %434 {offsets = [1, 0, 0], sizes = [1, 8, 64], strides = [1, 1, 1]} : vector<8x8x64xf32> to vector<1x8x64xf32>
    %503 = vector.shape_cast %502 : vector<1x8x64xf32> to vector<8x64xf32>
    %504 = vector.extract_strided_slice %483 {offsets = [0, 128], sizes = [8, 64], strides = [1, 1]} : vector<8x192xf32> to vector<8x64xf32>
    %505 = arith.addf %504, %438 : vector<8x64xf32>
    %506 = arith.mulf %492, %505 : vector<8x64xf32>
    %507 = arith.addf %503, %506 : vector<8x64xf32>
    %508 = math.tanh %507 : vector<8x64xf32>
    %509 = arith.subf %474, %508 : vector<8x64xf32>
    %510 = arith.mulf %501, %509 : vector<8x64xf32>
    %511 = arith.addf %508, %510 : vector<8x64xf32>
    %512 = vector.extract_strided_slice %0 {offsets = [1, 0, 0], sizes = [1, 8, 64], strides = [1, 1, 1]} : vector<8x8x64xf32> to vector<1x8x64xf32>
    %513 = vector.shape_cast %512 : vector<1x8x64xf32> to vector<8x64xf32>
    %514 = arith.mulf %513, %511 : vector<8x64xf32>
    %515 = arith.subf %511, %474 : vector<8x64xf32>
    %516 = arith.mulf %513, %515 : vector<8x64xf32>
    %517 = arith.addf %474, %516 : vector<8x64xf32>
    %518 = vector.extract_strided_slice %514 {offsets = [0, 0], sizes = [8, 32], strides = [1, 1]} : vector<8x64xf32> to vector<8x32xf32>
    %c1_103 = arith.constant 1 : index
    %c0_104 = arith.constant 0 : index
    %c0_105 = arith.constant 0 : index
    %519 = vector.load %arg15[%c1_103, %c0_104, %c0_105] : memref<8x8x64xf32, #tpu.memory_space<vmem>>, vector<1x8x32xf32>
    %520 = vector.shape_cast %519 : vector<1x8x32xf32> to vector<8x32xf32>
    %521 = vector.shape_cast %518 : vector<8x32xf32> to vector<1x8x32xf32>
    tpu.vector_store %arg15[%c1_103, %c0_104, %c0_105], %521 {strides = array<i32>} : memref<8x8x64xf32, #tpu.memory_space<vmem>>, vector<1x8x32xf32>,
    %522 = vector.extract_strided_slice %514 {offsets = [0, 32], sizes = [8, 32], strides = [1, 1]} : vector<8x64xf32> to vector<8x32xf32>
    %c6_106 = arith.constant 6 : index
    %c0_107 = arith.constant 0 : index
    %c32_108 = arith.constant 32 : index
    %523 = vector.load %arg15[%c6_106, %c0_107, %c32_108] : memref<8x8x64xf32, #tpu.memory_space<vmem>>, vector<1x8x32xf32>
    %524 = vector.shape_cast %523 : vector<1x8x32xf32> to vector<8x32xf32>
    %525 = vector.shape_cast %522 : vector<8x32xf32> to vector<1x8x32xf32>
    tpu.vector_store %arg15[%c6_106, %c0_107, %c32_108], %525 {strides = array<i32>} : memref<8x8x64xf32, #tpu.memory_space<vmem>>, vector<1x8x32xf32>,
    %cst_109 = arith.constant dense<0.000000e+00> : vector<8x192xf32>
    %526 = tpu.matmul %517, %435, %cst_109 {dimension_numbers = #tpu.dot_dimension_numbers<[1], [0], [0], [1], [0, 0, 1, 1], [], []>} : vector<8x64xf32>, vector<64x192xf32>, vector<8x192xf32> -> vector<8x192xf32>
    %527 = vector.extract_strided_slice %428 {offsets = [2, 0, 0], sizes = [1, 8, 64], strides = [1, 1, 1]} : vector<8x8x64xf32> to vector<1x8x64xf32>
    %528 = vector.shape_cast %527 : vector<1x8x64xf32> to vector<8x64xf32>
    %529 = vector.extract_strided_slice %526 {offsets = [0, 0], sizes = [8, 64], strides = [1, 1]} : vector<8x192xf32> to vector<8x64xf32>
    %530 = arith.addf %528, %529 : vector<8x64xf32>
    %531 = arith.negf %530 : vector<8x64xf32>
    %532 = math.exp %531 : vector<8x64xf32>
    %cst_110 = arith.constant 1.000000e+00 : f32
    %533 = vector.broadcast %cst_110 : f32 to vector<8x64xf32>
    %534 = arith.addf %533, %532 : vector<8x64xf32>
    %535 = arith.divf %533, %534 : vector<8x64xf32>
    %536 = vector.extract_strided_slice %431 {offsets = [2, 0, 0], sizes = [1, 8, 64], strides = [1, 1, 1]} : vector<8x8x64xf32> to vector<1x8x64xf32>
    %537 = vector.shape_cast %536 : vector<1x8x64xf32> to vector<8x64xf32>
    %538 = vector.extract_strided_slice %526 {offsets = [0, 64], sizes = [8, 64], strides = [1, 1]} : vector<8x192xf32> to vector<8x64xf32>
    %539 = arith.addf %537, %538 : vector<8x64xf32>
    %540 = arith.negf %539 : vector<8x64xf32>
    %541 = math.exp %540 : vector<8x64xf32>
    %cst_111 = arith.constant 1.000000e+00 : f32
    %542 = vector.broadcast %cst_111 : f32 to vector<8x64xf32>
    %543 = arith.addf %542, %541 : vector<8x64xf32>
    %544 = arith.divf %542, %543 : vector<8x64xf32>
    %545 = vector.extract_strided_slice %434 {offsets = [2, 0, 0], sizes = [1, 8, 64], strides = [1, 1, 1]} : vector<8x8x64xf32> to vector<1x8x64xf32>
    %546 = vector.shape_cast %545 : vector<1x8x64xf32> to vector<8x64xf32>
    %547 = vector.extract_strided_slice %526 {offsets = [0, 128], sizes = [8, 64], strides = [1, 1]} : vector<8x192xf32> to vector<8x64xf32>
    %548 = arith.addf %547, %438 : vector<8x64xf32>
    %549 = arith.mulf %535, %548 : vector<8x64xf32>
    %550 = arith.addf %546, %549 : vector<8x64xf32>
    %551 = math.tanh %550 : vector<8x64xf32>
    %552 = arith.subf %517, %551 : vector<8x64xf32>
    %553 = arith.mulf %544, %552 : vector<8x64xf32>
    %554 = arith.addf %551, %553 : vector<8x64xf32>
    %555 = vector.extract_strided_slice %0 {offsets = [2, 0, 0], sizes = [1, 8, 64], strides = [1, 1, 1]} : vector<8x8x64xf32> to vector<1x8x64xf32>
    %556 = vector.shape_cast %555 : vector<1x8x64xf32> to vector<8x64xf32>
    %557 = arith.mulf %556, %554 : vector<8x64xf32>
    %558 = arith.subf %554, %517 : vector<8x64xf32>
    %559 = arith.mulf %556, %558 : vector<8x64xf32>
    %560 = arith.addf %517, %559 : vector<8x64xf32>
    %561 = vector.extract_strided_slice %557 {offsets = [0, 0], sizes = [8, 32], strides = [1, 1]} : vector<8x64xf32> to vector<8x32xf32>
    %c2_112 = arith.constant 2 : index
    %c0_113 = arith.constant 0 : index
    %c0_114 = arith.constant 0 : index
    %562 = vector.load %arg15[%c2_112, %c0_113, %c0_114] : memref<8x8x64xf32, #tpu.memory_space<vmem>>, vector<1x8x32xf32>
    %563 = vector.shape_cast %562 : vector<1x8x32xf32> to vector<8x32xf32>
    %564 = vector.shape_cast %561 : vector<8x32xf32> to vector<1x8x32xf32>
    tpu.vector_store %arg15[%c2_112, %c0_113, %c0_114], %564 {strides = array<i32>} : memref<8x8x64xf32, #tpu.memory_space<vmem>>, vector<1x8x32xf32>,
    %565 = vector.extract_strided_slice %557 {offsets = [0, 32], sizes = [8, 32], strides = [1, 1]} : vector<8x64xf32> to vector<8x32xf32>
    %c5_115 = arith.constant 5 : index
    %c0_116 = arith.constant 0 : index
    %c32_117 = arith.constant 32 : index
    %566 = vector.load %arg15[%c5_115, %c0_116, %c32_117] : memref<8x8x64xf32, #tpu.memory_space<vmem>>, vector<1x8x32xf32>
    %567 = vector.shape_cast %566 : vector<1x8x32xf32> to vector<8x32xf32>
    %568 = vector.shape_cast %565 : vector<8x32xf32> to vector<1x8x32xf32>
    tpu.vector_store %arg15[%c5_115, %c0_116, %c32_117], %568 {strides = array<i32>} : memref<8x8x64xf32, #tpu.memory_space<vmem>>, vector<1x8x32xf32>,
    %cst_118 = arith.constant dense<0.000000e+00> : vector<8x192xf32>
    %569 = tpu.matmul %560, %435, %cst_118 {dimension_numbers = #tpu.dot_dimension_numbers<[1], [0], [0], [1], [0, 0, 1, 1], [], []>} : vector<8x64xf32>, vector<64x192xf32>, vector<8x192xf32> -> vector<8x192xf32>
    %570 = vector.extract_strided_slice %428 {offsets = [3, 0, 0], sizes = [1, 8, 64], strides = [1, 1, 1]} : vector<8x8x64xf32> to vector<1x8x64xf32>
    %571 = vector.shape_cast %570 : vector<1x8x64xf32> to vector<8x64xf32>
    %572 = vector.extract_strided_slice %569 {offsets = [0, 0], sizes = [8, 64], strides = [1, 1]} : vector<8x192xf32> to vector<8x64xf32>
    %573 = arith.addf %571, %572 : vector<8x64xf32>
    %574 = arith.negf %573 : vector<8x64xf32>
    %575 = math.exp %574 : vector<8x64xf32>
    %cst_119 = arith.constant 1.000000e+00 : f32
    %576 = vector.broadcast %cst_119 : f32 to vector<8x64xf32>
    %577 = arith.addf %576, %575 : vector<8x64xf32>
    %578 = arith.divf %576, %577 : vector<8x64xf32>
    %579 = vector.extract_strided_slice %431 {offsets = [3, 0, 0], sizes = [1, 8, 64], strides = [1, 1, 1]} : vector<8x8x64xf32> to vector<1x8x64xf32>
    %580 = vector.shape_cast %579 : vector<1x8x64xf32> to vector<8x64xf32>
    %581 = vector.extract_strided_slice %569 {offsets = [0, 64], sizes = [8, 64], strides = [1, 1]} : vector<8x192xf32> to vector<8x64xf32>
    %582 = arith.addf %580, %581 : vector<8x64xf32>
    %583 = arith.negf %582 : vector<8x64xf32>
    %584 = math.exp %583 : vector<8x64xf32>
    %cst_120 = arith.constant 1.000000e+00 : f32
    %585 = vector.broadcast %cst_120 : f32 to vector<8x64xf32>
    %586 = arith.addf %585, %584 : vector<8x64xf32>
    %587 = arith.divf %585, %586 : vector<8x64xf32>
    %588 = vector.extract_strided_slice %434 {offsets = [3, 0, 0], sizes = [1, 8, 64], strides = [1, 1, 1]} : vector<8x8x64xf32> to vector<1x8x64xf32>
    %589 = vector.shape_cast %588 : vector<1x8x64xf32> to vector<8x64xf32>
    %590 = vector.extract_strided_slice %569 {offsets = [0, 128], sizes = [8, 64], strides = [1, 1]} : vector<8x192xf32> to vector<8x64xf32>
    %591 = arith.addf %590, %438 : vector<8x64xf32>
    %592 = arith.mulf %578, %591 : vector<8x64xf32>
    %593 = arith.addf %589, %592 : vector<8x64xf32>
    %594 = math.tanh %593 : vector<8x64xf32>
    %595 = arith.subf %560, %594 : vector<8x64xf32>
    %596 = arith.mulf %587, %595 : vector<8x64xf32>
    %597 = arith.addf %594, %596 : vector<8x64xf32>
    %598 = vector.extract_strided_slice %0 {offsets = [3, 0, 0], sizes = [1, 8, 64], strides = [1, 1, 1]} : vector<8x8x64xf32> to vector<1x8x64xf32>
    %599 = vector.shape_cast %598 : vector<1x8x64xf32> to vector<8x64xf32>
    %600 = arith.mulf %599, %597 : vector<8x64xf32>
    %601 = arith.subf %597, %560 : vector<8x64xf32>
    %602 = arith.mulf %599, %601 : vector<8x64xf32>
    %603 = arith.addf %560, %602 : vector<8x64xf32>
    %604 = vector.extract_strided_slice %600 {offsets = [0, 0], sizes = [8, 32], strides = [1, 1]} : vector<8x64xf32> to vector<8x32xf32>
    %c3_121 = arith.constant 3 : index
    %c0_122 = arith.constant 0 : index
    %c0_123 = arith.constant 0 : index
    %605 = vector.load %arg15[%c3_121, %c0_122, %c0_123] : memref<8x8x64xf32, #tpu.memory_space<vmem>>, vector<1x8x32xf32>
    %606 = vector.shape_cast %605 : vector<1x8x32xf32> to vector<8x32xf32>
    %607 = vector.shape_cast %604 : vector<8x32xf32> to vector<1x8x32xf32>
    tpu.vector_store %arg15[%c3_121, %c0_122, %c0_123], %607 {strides = array<i32>} : memref<8x8x64xf32, #tpu.memory_space<vmem>>, vector<1x8x32xf32>,
    %608 = vector.extract_strided_slice %600 {offsets = [0, 32], sizes = [8, 32], strides = [1, 1]} : vector<8x64xf32> to vector<8x32xf32>
    %c4_124 = arith.constant 4 : index
    %c0_125 = arith.constant 0 : index
    %c32_126 = arith.constant 32 : index
    %609 = vector.load %arg15[%c4_124, %c0_125, %c32_126] : memref<8x8x64xf32, #tpu.memory_space<vmem>>, vector<1x8x32xf32>
    %610 = vector.shape_cast %609 : vector<1x8x32xf32> to vector<8x32xf32>
    %611 = vector.shape_cast %608 : vector<8x32xf32> to vector<1x8x32xf32>
    tpu.vector_store %arg15[%c4_124, %c0_125, %c32_126], %611 {strides = array<i32>} : memref<8x8x64xf32, #tpu.memory_space<vmem>>, vector<1x8x32xf32>,
    %cst_127 = arith.constant dense<0.000000e+00> : vector<8x192xf32>
    %612 = tpu.matmul %603, %435, %cst_127 {dimension_numbers = #tpu.dot_dimension_numbers<[1], [0], [0], [1], [0, 0, 1, 1], [], []>} : vector<8x64xf32>, vector<64x192xf32>, vector<8x192xf32> -> vector<8x192xf32>
    %613 = vector.extract_strided_slice %428 {offsets = [4, 0, 0], sizes = [1, 8, 64], strides = [1, 1, 1]} : vector<8x8x64xf32> to vector<1x8x64xf32>
    %614 = vector.shape_cast %613 : vector<1x8x64xf32> to vector<8x64xf32>
    %615 = vector.extract_strided_slice %612 {offsets = [0, 0], sizes = [8, 64], strides = [1, 1]} : vector<8x192xf32> to vector<8x64xf32>
    %616 = arith.addf %614, %615 : vector<8x64xf32>
    %617 = arith.negf %616 : vector<8x64xf32>
    %618 = math.exp %617 : vector<8x64xf32>
    %cst_128 = arith.constant 1.000000e+00 : f32
    %619 = vector.broadcast %cst_128 : f32 to vector<8x64xf32>
    %620 = arith.addf %619, %618 : vector<8x64xf32>
    %621 = arith.divf %619, %620 : vector<8x64xf32>
    %622 = vector.extract_strided_slice %431 {offsets = [4, 0, 0], sizes = [1, 8, 64], strides = [1, 1, 1]} : vector<8x8x64xf32> to vector<1x8x64xf32>
    %623 = vector.shape_cast %622 : vector<1x8x64xf32> to vector<8x64xf32>
    %624 = vector.extract_strided_slice %612 {offsets = [0, 64], sizes = [8, 64], strides = [1, 1]} : vector<8x192xf32> to vector<8x64xf32>
    %625 = arith.addf %623, %624 : vector<8x64xf32>
    %626 = arith.negf %625 : vector<8x64xf32>
    %627 = math.exp %626 : vector<8x64xf32>
    %cst_129 = arith.constant 1.000000e+00 : f32
    %628 = vector.broadcast %cst_129 : f32 to vector<8x64xf32>
    %629 = arith.addf %628, %627 : vector<8x64xf32>
    %630 = arith.divf %628, %629 : vector<8x64xf32>
    %631 = vector.extract_strided_slice %434 {offsets = [4, 0, 0], sizes = [1, 8, 64], strides = [1, 1, 1]} : vector<8x8x64xf32> to vector<1x8x64xf32>
    %632 = vector.shape_cast %631 : vector<1x8x64xf32> to vector<8x64xf32>
    %633 = vector.extract_strided_slice %612 {offsets = [0, 128], sizes = [8, 64], strides = [1, 1]} : vector<8x192xf32> to vector<8x64xf32>
    %634 = arith.addf %633, %438 : vector<8x64xf32>
    %635 = arith.mulf %621, %634 : vector<8x64xf32>
    %636 = arith.addf %632, %635 : vector<8x64xf32>
    %637 = math.tanh %636 : vector<8x64xf32>
    %638 = arith.subf %603, %637 : vector<8x64xf32>
    %639 = arith.mulf %630, %638 : vector<8x64xf32>
    %640 = arith.addf %637, %639 : vector<8x64xf32>
    %641 = vector.extract_strided_slice %0 {offsets = [4, 0, 0], sizes = [1, 8, 64], strides = [1, 1, 1]} : vector<8x8x64xf32> to vector<1x8x64xf32>
    %642 = vector.shape_cast %641 : vector<1x8x64xf32> to vector<8x64xf32>
    %643 = arith.mulf %642, %640 : vector<8x64xf32>
    %644 = arith.subf %640, %603 : vector<8x64xf32>
    %645 = arith.mulf %642, %644 : vector<8x64xf32>
    %646 = arith.addf %603, %645 : vector<8x64xf32>
    %647 = vector.extract_strided_slice %643 {offsets = [0, 0], sizes = [8, 32], strides = [1, 1]} : vector<8x64xf32> to vector<8x32xf32>
    %c4_130 = arith.constant 4 : index
    %c0_131 = arith.constant 0 : index
    %c0_132 = arith.constant 0 : index
    %648 = vector.load %arg15[%c4_130, %c0_131, %c0_132] : memref<8x8x64xf32, #tpu.memory_space<vmem>>, vector<1x8x32xf32>
    %649 = vector.shape_cast %648 : vector<1x8x32xf32> to vector<8x32xf32>
    %650 = vector.shape_cast %647 : vector<8x32xf32> to vector<1x8x32xf32>
    tpu.vector_store %arg15[%c4_130, %c0_131, %c0_132], %650 {strides = array<i32>} : memref<8x8x64xf32, #tpu.memory_space<vmem>>, vector<1x8x32xf32>,
    %651 = vector.extract_strided_slice %643 {offsets = [0, 32], sizes = [8, 32], strides = [1, 1]} : vector<8x64xf32> to vector<8x32xf32>
    %c3_133 = arith.constant 3 : index
    %c0_134 = arith.constant 0 : index
    %c32_135 = arith.constant 32 : index
    %652 = vector.load %arg15[%c3_133, %c0_134, %c32_135] : memref<8x8x64xf32, #tpu.memory_space<vmem>>, vector<1x8x32xf32>
    %653 = vector.shape_cast %652 : vector<1x8x32xf32> to vector<8x32xf32>
    %654 = vector.shape_cast %651 : vector<8x32xf32> to vector<1x8x32xf32>
    tpu.vector_store %arg15[%c3_133, %c0_134, %c32_135], %654 {strides = array<i32>} : memref<8x8x64xf32, #tpu.memory_space<vmem>>, vector<1x8x32xf32>,
    %cst_136 = arith.constant dense<0.000000e+00> : vector<8x192xf32>
    %655 = tpu.matmul %646, %435, %cst_136 {dimension_numbers = #tpu.dot_dimension_numbers<[1], [0], [0], [1], [0, 0, 1, 1], [], []>} : vector<8x64xf32>, vector<64x192xf32>, vector<8x192xf32> -> vector<8x192xf32>
    %656 = vector.extract_strided_slice %428 {offsets = [5, 0, 0], sizes = [1, 8, 64], strides = [1, 1, 1]} : vector<8x8x64xf32> to vector<1x8x64xf32>
    %657 = vector.shape_cast %656 : vector<1x8x64xf32> to vector<8x64xf32>
    %658 = vector.extract_strided_slice %655 {offsets = [0, 0], sizes = [8, 64], strides = [1, 1]} : vector<8x192xf32> to vector<8x64xf32>
    %659 = arith.addf %657, %658 : vector<8x64xf32>
    %660 = arith.negf %659 : vector<8x64xf32>
    %661 = math.exp %660 : vector<8x64xf32>
    %cst_137 = arith.constant 1.000000e+00 : f32
    %662 = vector.broadcast %cst_137 : f32 to vector<8x64xf32>
    %663 = arith.addf %662, %661 : vector<8x64xf32>
    %664 = arith.divf %662, %663 : vector<8x64xf32>
    %665 = vector.extract_strided_slice %431 {offsets = [5, 0, 0], sizes = [1, 8, 64], strides = [1, 1, 1]} : vector<8x8x64xf32> to vector<1x8x64xf32>
    %666 = vector.shape_cast %665 : vector<1x8x64xf32> to vector<8x64xf32>
    %667 = vector.extract_strided_slice %655 {offsets = [0, 64], sizes = [8, 64], strides = [1, 1]} : vector<8x192xf32> to vector<8x64xf32>
    %668 = arith.addf %666, %667 : vector<8x64xf32>
    %669 = arith.negf %668 : vector<8x64xf32>
    %670 = math.exp %669 : vector<8x64xf32>
    %cst_138 = arith.constant 1.000000e+00 : f32
    %671 = vector.broadcast %cst_138 : f32 to vector<8x64xf32>
    %672 = arith.addf %671, %670 : vector<8x64xf32>
    %673 = arith.divf %671, %672 : vector<8x64xf32>
    %674 = vector.extract_strided_slice %434 {offsets = [5, 0, 0], sizes = [1, 8, 64], strides = [1, 1, 1]} : vector<8x8x64xf32> to vector<1x8x64xf32>
    %675 = vector.shape_cast %674 : vector<1x8x64xf32> to vector<8x64xf32>
    %676 = vector.extract_strided_slice %655 {offsets = [0, 128], sizes = [8, 64], strides = [1, 1]} : vector<8x192xf32> to vector<8x64xf32>
    %677 = arith.addf %676, %438 : vector<8x64xf32>
    %678 = arith.mulf %664, %677 : vector<8x64xf32>
    %679 = arith.addf %675, %678 : vector<8x64xf32>
    %680 = math.tanh %679 : vector<8x64xf32>
    %681 = arith.subf %646, %680 : vector<8x64xf32>
    %682 = arith.mulf %673, %681 : vector<8x64xf32>
    %683 = arith.addf %680, %682 : vector<8x64xf32>
    %684 = vector.extract_strided_slice %0 {offsets = [5, 0, 0], sizes = [1, 8, 64], strides = [1, 1, 1]} : vector<8x8x64xf32> to vector<1x8x64xf32>
    %685 = vector.shape_cast %684 : vector<1x8x64xf32> to vector<8x64xf32>
    %686 = arith.mulf %685, %683 : vector<8x64xf32>
    %687 = arith.subf %683, %646 : vector<8x64xf32>
    %688 = arith.mulf %685, %687 : vector<8x64xf32>
    %689 = arith.addf %646, %688 : vector<8x64xf32>
    %690 = vector.extract_strided_slice %686 {offsets = [0, 0], sizes = [8, 32], strides = [1, 1]} : vector<8x64xf32> to vector<8x32xf32>
    %c5_139 = arith.constant 5 : index
    %c0_140 = arith.constant 0 : index
    %c0_141 = arith.constant 0 : index
    %691 = vector.load %arg15[%c5_139, %c0_140, %c0_141] : memref<8x8x64xf32, #tpu.memory_space<vmem>>, vector<1x8x32xf32>
    %692 = vector.shape_cast %691 : vector<1x8x32xf32> to vector<8x32xf32>
    %693 = vector.shape_cast %690 : vector<8x32xf32> to vector<1x8x32xf32>
    tpu.vector_store %arg15[%c5_139, %c0_140, %c0_141], %693 {strides = array<i32>} : memref<8x8x64xf32, #tpu.memory_space<vmem>>, vector<1x8x32xf32>,
    %694 = vector.extract_strided_slice %686 {offsets = [0, 32], sizes = [8, 32], strides = [1, 1]} : vector<8x64xf32> to vector<8x32xf32>
    %c2_142 = arith.constant 2 : index
    %c0_143 = arith.constant 0 : index
    %c32_144 = arith.constant 32 : index
    %695 = vector.load %arg15[%c2_142, %c0_143, %c32_144] : memref<8x8x64xf32, #tpu.memory_space<vmem>>, vector<1x8x32xf32>
    %696 = vector.shape_cast %695 : vector<1x8x32xf32> to vector<8x32xf32>
    %697 = vector.shape_cast %694 : vector<8x32xf32> to vector<1x8x32xf32>
    tpu.vector_store %arg15[%c2_142, %c0_143, %c32_144], %697 {strides = array<i32>} : memref<8x8x64xf32, #tpu.memory_space<vmem>>, vector<1x8x32xf32>,
    %cst_145 = arith.constant dense<0.000000e+00> : vector<8x192xf32>
    %698 = tpu.matmul %689, %435, %cst_145 {dimension_numbers = #tpu.dot_dimension_numbers<[1], [0], [0], [1], [0, 0, 1, 1], [], []>} : vector<8x64xf32>, vector<64x192xf32>, vector<8x192xf32> -> vector<8x192xf32>
    %699 = vector.extract_strided_slice %428 {offsets = [6, 0, 0], sizes = [1, 8, 64], strides = [1, 1, 1]} : vector<8x8x64xf32> to vector<1x8x64xf32>
    %700 = vector.shape_cast %699 : vector<1x8x64xf32> to vector<8x64xf32>
    %701 = vector.extract_strided_slice %698 {offsets = [0, 0], sizes = [8, 64], strides = [1, 1]} : vector<8x192xf32> to vector<8x64xf32>
    %702 = arith.addf %700, %701 : vector<8x64xf32>
    %703 = arith.negf %702 : vector<8x64xf32>
    %704 = math.exp %703 : vector<8x64xf32>
    %cst_146 = arith.constant 1.000000e+00 : f32
    %705 = vector.broadcast %cst_146 : f32 to vector<8x64xf32>
    %706 = arith.addf %705, %704 : vector<8x64xf32>
    %707 = arith.divf %705, %706 : vector<8x64xf32>
    %708 = vector.extract_strided_slice %431 {offsets = [6, 0, 0], sizes = [1, 8, 64], strides = [1, 1, 1]} : vector<8x8x64xf32> to vector<1x8x64xf32>
    %709 = vector.shape_cast %708 : vector<1x8x64xf32> to vector<8x64xf32>
    %710 = vector.extract_strided_slice %698 {offsets = [0, 64], sizes = [8, 64], strides = [1, 1]} : vector<8x192xf32> to vector<8x64xf32>
    %711 = arith.addf %709, %710 : vector<8x64xf32>
    %712 = arith.negf %711 : vector<8x64xf32>
    %713 = math.exp %712 : vector<8x64xf32>
    %cst_147 = arith.constant 1.000000e+00 : f32
    %714 = vector.broadcast %cst_147 : f32 to vector<8x64xf32>
    %715 = arith.addf %714, %713 : vector<8x64xf32>
    %716 = arith.divf %714, %715 : vector<8x64xf32>
    %717 = vector.extract_strided_slice %434 {offsets = [6, 0, 0], sizes = [1, 8, 64], strides = [1, 1, 1]} : vector<8x8x64xf32> to vector<1x8x64xf32>
    %718 = vector.shape_cast %717 : vector<1x8x64xf32> to vector<8x64xf32>
    %719 = vector.extract_strided_slice %698 {offsets = [0, 128], sizes = [8, 64], strides = [1, 1]} : vector<8x192xf32> to vector<8x64xf32>
    %720 = arith.addf %719, %438 : vector<8x64xf32>
    %721 = arith.mulf %707, %720 : vector<8x64xf32>
    %722 = arith.addf %718, %721 : vector<8x64xf32>
    %723 = math.tanh %722 : vector<8x64xf32>
    %724 = arith.subf %689, %723 : vector<8x64xf32>
    %725 = arith.mulf %716, %724 : vector<8x64xf32>
    %726 = arith.addf %723, %725 : vector<8x64xf32>
    %727 = vector.extract_strided_slice %0 {offsets = [6, 0, 0], sizes = [1, 8, 64], strides = [1, 1, 1]} : vector<8x8x64xf32> to vector<1x8x64xf32>
    %728 = vector.shape_cast %727 : vector<1x8x64xf32> to vector<8x64xf32>
    %729 = arith.mulf %728, %726 : vector<8x64xf32>
    %730 = arith.subf %726, %689 : vector<8x64xf32>
    %731 = arith.mulf %728, %730 : vector<8x64xf32>
    %732 = arith.addf %689, %731 : vector<8x64xf32>
    %733 = vector.extract_strided_slice %729 {offsets = [0, 0], sizes = [8, 32], strides = [1, 1]} : vector<8x64xf32> to vector<8x32xf32>
    %c6_148 = arith.constant 6 : index
    %c0_149 = arith.constant 0 : index
    %c0_150 = arith.constant 0 : index
    %734 = vector.load %arg15[%c6_148, %c0_149, %c0_150] : memref<8x8x64xf32, #tpu.memory_space<vmem>>, vector<1x8x32xf32>
    %735 = vector.shape_cast %734 : vector<1x8x32xf32> to vector<8x32xf32>
    %736 = vector.shape_cast %733 : vector<8x32xf32> to vector<1x8x32xf32>
    tpu.vector_store %arg15[%c6_148, %c0_149, %c0_150], %736 {strides = array<i32>} : memref<8x8x64xf32, #tpu.memory_space<vmem>>, vector<1x8x32xf32>,
    %737 = vector.extract_strided_slice %729 {offsets = [0, 32], sizes = [8, 32], strides = [1, 1]} : vector<8x64xf32> to vector<8x32xf32>
    %c1_151 = arith.constant 1 : index
    %c0_152 = arith.constant 0 : index
    %c32_153 = arith.constant 32 : index
    %738 = vector.load %arg15[%c1_151, %c0_152, %c32_153] : memref<8x8x64xf32, #tpu.memory_space<vmem>>, vector<1x8x32xf32>
    %739 = vector.shape_cast %738 : vector<1x8x32xf32> to vector<8x32xf32>
    %740 = vector.shape_cast %737 : vector<8x32xf32> to vector<1x8x32xf32>
    tpu.vector_store %arg15[%c1_151, %c0_152, %c32_153], %740 {strides = array<i32>} : memref<8x8x64xf32, #tpu.memory_space<vmem>>, vector<1x8x32xf32>,
    %cst_154 = arith.constant dense<0.000000e+00> : vector<8x192xf32>
    %741 = tpu.matmul %732, %435, %cst_154 {dimension_numbers = #tpu.dot_dimension_numbers<[1], [0], [0], [1], [0, 0, 1, 1], [], []>} : vector<8x64xf32>, vector<64x192xf32>, vector<8x192xf32> -> vector<8x192xf32>
    %742 = vector.extract_strided_slice %428 {offsets = [7, 0, 0], sizes = [1, 8, 64], strides = [1, 1, 1]} : vector<8x8x64xf32> to vector<1x8x64xf32>
    %743 = vector.shape_cast %742 : vector<1x8x64xf32> to vector<8x64xf32>
    %744 = vector.extract_strided_slice %741 {offsets = [0, 0], sizes = [8, 64], strides = [1, 1]} : vector<8x192xf32> to vector<8x64xf32>
    %745 = arith.addf %743, %744 : vector<8x64xf32>
    %746 = arith.negf %745 : vector<8x64xf32>
    %747 = math.exp %746 : vector<8x64xf32>
    %cst_155 = arith.constant 1.000000e+00 : f32
    %748 = vector.broadcast %cst_155 : f32 to vector<8x64xf32>
    %749 = arith.addf %748, %747 : vector<8x64xf32>
    %750 = arith.divf %748, %749 : vector<8x64xf32>
    %751 = vector.extract_strided_slice %431 {offsets = [7, 0, 0], sizes = [1, 8, 64], strides = [1, 1, 1]} : vector<8x8x64xf32> to vector<1x8x64xf32>
    %752 = vector.shape_cast %751 : vector<1x8x64xf32> to vector<8x64xf32>
    %753 = vector.extract_strided_slice %741 {offsets = [0, 64], sizes = [8, 64], strides = [1, 1]} : vector<8x192xf32> to vector<8x64xf32>
    %754 = arith.addf %752, %753 : vector<8x64xf32>
    %755 = arith.negf %754 : vector<8x64xf32>
    %756 = math.exp %755 : vector<8x64xf32>
    %cst_156 = arith.constant 1.000000e+00 : f32
    %757 = vector.broadcast %cst_156 : f32 to vector<8x64xf32>
    %758 = arith.addf %757, %756 : vector<8x64xf32>
    %759 = arith.divf %757, %758 : vector<8x64xf32>
    %760 = vector.extract_strided_slice %434 {offsets = [7, 0, 0], sizes = [1, 8, 64], strides = [1, 1, 1]} : vector<8x8x64xf32> to vector<1x8x64xf32>
    %761 = vector.shape_cast %760 : vector<1x8x64xf32> to vector<8x64xf32>
    %762 = vector.extract_strided_slice %741 {offsets = [0, 128], sizes = [8, 64], strides = [1, 1]} : vector<8x192xf32> to vector<8x64xf32>
    %763 = arith.addf %762, %438 : vector<8x64xf32>
    %764 = arith.mulf %750, %763 : vector<8x64xf32>
    %765 = arith.addf %761, %764 : vector<8x64xf32>
    %766 = math.tanh %765 : vector<8x64xf32>
    %767 = arith.subf %732, %766 : vector<8x64xf32>
    %768 = arith.mulf %759, %767 : vector<8x64xf32>
    %769 = arith.addf %766, %768 : vector<8x64xf32>
    %770 = vector.extract_strided_slice %0 {offsets = [7, 0, 0], sizes = [1, 8, 64], strides = [1, 1, 1]} : vector<8x8x64xf32> to vector<1x8x64xf32>
    %771 = vector.shape_cast %770 : vector<1x8x64xf32> to vector<8x64xf32>
    %772 = arith.mulf %771, %769 : vector<8x64xf32>
    %773 = vector.extract_strided_slice %772 {offsets = [0, 0], sizes = [8, 32], strides = [1, 1]} : vector<8x64xf32> to vector<8x32xf32>
    %c7_157 = arith.constant 7 : index
    %c0_158 = arith.constant 0 : index
    %c0_159 = arith.constant 0 : index
    %774 = vector.load %arg15[%c7_157, %c0_158, %c0_159] : memref<8x8x64xf32, #tpu.memory_space<vmem>>, vector<1x8x32xf32>
    %775 = vector.shape_cast %774 : vector<1x8x32xf32> to vector<8x32xf32>
    %776 = vector.shape_cast %773 : vector<8x32xf32> to vector<1x8x32xf32>
    tpu.vector_store %arg15[%c7_157, %c0_158, %c0_159], %776 {strides = array<i32>} : memref<8x8x64xf32, #tpu.memory_space<vmem>>, vector<1x8x32xf32>,
    %777 = vector.extract_strided_slice %772 {offsets = [0, 32], sizes = [8, 32], strides = [1, 1]} : vector<8x64xf32> to vector<8x32xf32>
    %c0_160 = arith.constant 0 : index
    %c0_161 = arith.constant 0 : index
    %c32_162 = arith.constant 32 : index
    %778 = vector.load %arg15[%c0_160, %c0_161, %c32_162] : memref<8x8x64xf32, #tpu.memory_space<vmem>>, vector<1x8x32xf32>
    %779 = vector.shape_cast %778 : vector<1x8x32xf32> to vector<8x32xf32>
    %780 = vector.shape_cast %777 : vector<8x32xf32> to vector<1x8x32xf32>
    tpu.vector_store %arg15[%c0_160, %c0_161, %c32_162], %780 {strides = array<i32>} : memref<8x8x64xf32, #tpu.memory_space<vmem>>, vector<1x8x32xf32>,
    %c0_163 = arith.constant 0 : index
    %c0_164 = arith.constant 0 : index
    %c0_165 = arith.constant 0 : index
    %781 = vector.load %arg15[%c0_163, %c0_164, %c0_165] : memref<8x8x64xf32, #tpu.memory_space<vmem>>, vector<8x8x64xf32>
    %782 = vector.shape_cast %781 : vector<8x8x64xf32> to vector<64x64xf32>
    %c0_166 = arith.constant 0 : index
    %c0_167 = arith.constant 0 : index
    %783 = vector.load %arg10[%c0_166, %c0_167] : memref<64x32xf32, #tpu.memory_space<vmem>>, vector<64x32xf32>
    %cst_168 = arith.constant dense<0.000000e+00> : vector<64x32xf32>
    %784 = tpu.matmul %782, %783, %cst_168 {dimension_numbers = #tpu.dot_dimension_numbers<[1], [0], [0], [1], [0, 0, 1, 1], [], []>} : vector<64x64xf32>, vector<64x32xf32>, vector<64x32xf32> -> vector<64x32xf32>
    %c0_169 = arith.constant 0 : index
    %c0_170 = arith.constant 0 : index
    %785 = vector.load %arg11[%c0_169, %c0_170] : memref<1x32xf32, #tpu.memory_space<vmem>>, vector<1x32xf32>
    %786 = vector.broadcast %785 : vector<1x32xf32> to vector<64x32xf32>
    %787 = arith.addf %784, %786 : vector<64x32xf32>
    %788 = math.tanh %787 : vector<64x32xf32>
    %c0_171 = arith.constant 0 : index
    %c0_172 = arith.constant 0 : index
    %789 = vector.load %arg12[%c0_171, %c0_172] : memref<1x32xf32, #tpu.memory_space<vmem>>, vector<1x32xf32>
    %790 = vector.broadcast %789 : vector<1x32xf32> to vector<64x32xf32>
    %791 = arith.mulf %788, %790 : vector<64x32xf32>
    %cst_173 = arith.constant dense<0.000000e+00> : vector<64xf32>
    %792 = vector.multi_reduction <add>, %791, %cst_173 [1] : vector<64x32xf32> to vector<64xf32>
    %793 = vector.shape_cast %792 : vector<64xf32> to vector<64x1xf32>
    %794 = vector.extract_strided_slice %0 {offsets = [0, 0, 0], sizes = [8, 8, 1], strides = [1, 1, 1]} : vector<8x8x64xf32> to vector<8x8x1xf32>
    %795 = vector.shape_cast %794 : vector<8x8x1xf32> to vector<64x1xf32>
    %cst_174 = arith.constant 0.000000e+00 : f32
    %796 = vector.broadcast %cst_174 : f32 to vector<64x1xf32>
    %797 = arith.cmpf ogt, %795, %796 : vector<64x1xf32>
    %cst_175 = arith.constant -1.000000e+30 : f32
    %798 = vector.broadcast %cst_175 : f32 to vector<64x1xf32>
    %799 = arith.select %797, %793, %798 : vector<64x1xi1>, vector<64x1xf32>
    %800 = vector.shape_cast %799 : vector<64x1xf32> to vector<1x64x1xf32>
    %cst_176 = arith.constant dense<0xFF800000> : vector<1xf32>
    %801 = vector.multi_reduction <maximumf>, %800, %cst_176 [1, 2] : vector<1x64x1xf32> to vector<1xf32>
    %802 = vector.shape_cast %801 : vector<1xf32> to vector<1x1x1xf32>
    %803 = vector.extract %802[0, 0, 0] : f32 from vector<1x1x1xf32>
    %804 = vector.broadcast %803 : f32 to vector<64x1xf32>
    %805 = arith.subf %793, %804 : vector<64x1xf32>
    %cst_177 = arith.constant 0.000000e+00 : f32
    %806 = vector.broadcast %cst_177 : f32 to vector<64x1xf32>
    %807 = arith.minimumf %805, %806 : vector<64x1xf32>
    %808 = math.exp %807 : vector<64x1xf32>
    %809 = arith.mulf %808, %795 : vector<64x1xf32>
    %810 = vector.shape_cast %809 : vector<64x1xf32> to vector<1x64x1xf32>
    %cst_178 = arith.constant dense<0.000000e+00> : vector<1xf32>
    %811 = vector.multi_reduction <add>, %810, %cst_178 [1, 2] : vector<1x64x1xf32> to vector<1xf32>
    %812 = vector.shape_cast %811 : vector<1xf32> to vector<1x1x1xf32>
    %813 = vector.extract %812[0, 0, 0] : f32 from vector<1x1x1xf32>
    %814 = vector.broadcast %813 : f32 to vector<1x1xf32>
    %815 = tpu.reciprocal %814 {approx = true} : vector<1x1xf32> -> vector<1x1xf32>
    %816 = vector.broadcast %815 : vector<1x1xf32> to vector<64x1xf32>
    %817 = arith.mulf %809, %816 : vector<64x1xf32>
    %818 = vector.shape_cast %817 : vector<64x1xf32> to vector<8x8x1xf32>
    %c0_179 = arith.constant 0 : index
    %c0_180 = arith.constant 0 : index
    %c0_181 = arith.constant 0 : index
    %819 = vector.load %arg14[%c0_179, %c0_180, %c0_181] : memref<8x8x1xf32, #tpu.memory_space<vmem>>, vector<8x8x1xf32>
    tpu.vector_store %arg14[%c0_179, %c0_180, %c0_181], %818 {strides = array<i32>} : memref<8x8x1xf32, #tpu.memory_space<vmem>>, vector<8x8x1xf32>,
    %820 = vector.broadcast %818 : vector<8x8x1xf32> to vector<8x8x64xf32>
    %821 = arith.mulf %820, %781 : vector<8x8x64xf32>
    %cst_182 = arith.constant dense<0.000000e+00> : vector<8x64xf32>
    %822 = vector.multi_reduction <add>, %821, %cst_182 [0] : vector<8x8x64xf32> to vector<8x64xf32>
    %c0_183 = arith.constant 0 : index
    %c0_184 = arith.constant 0 : index
    %823 = vector.load %arg13[%c0_183, %c0_184] : memref<8x64xf32, #tpu.memory_space<vmem>>, vector<8x64xf32>
    tpu.vector_store %arg13[%c0_183, %c0_184], %822 {strides = array<i32>} : memref<8x64xf32, #tpu.memory_space<vmem>>, vector<8x64xf32>,
    return
  }
}

</mosaic_0001>

<llo_original>
// kernel: neg.2
$region0: #{neg.2}
  #allocation0 [shape = 's32[1]{0}', space=sflag, size = 0x4, scoped, tag = 'scoped memory for neg.2']
  %s0 = inlined_call_operand.vmem [shape: s32[2], index: 0, kind: input, shape index: {}]
  %s1 = inlined_call_operand.vmem [shape: s32[2], index: 1, kind: output, shape index: {}]
  %v2 = vld [vmem:[%s0] sm:$0x1]
  %3 = xla_tuple %v2
  %4 = xla_tuple %3
  %v5 = vsub.s32 0, %v2
  %6 = xla_tuple %v5
  %7 = vst [vmem:[%s1] sm:$0x1] %v5

// kernel: neg.3
$region0: #{neg.3}
  #allocation0 [shape = 's32[1]{0}', space=sflag, size = 0x4, scoped, tag = 'scoped memory for neg.3']
  %s0 = inlined_call_operand.vmem [shape: s32[8], index: 0, kind: input, shape index: {}]
  %s1 = inlined_call_operand.vmem [shape: s32[8], index: 1, kind: output, shape index: {}]
  %v2 = vld [vmem:[%s0] sm:$0x1]
  %3 = xla_tuple %v2
  %4 = xla_tuple %3
  %v5 = vsub.s32 0, %v2
  %6 = xla_tuple %v5
  %7 = vst [vmem:[%s1] sm:$0x1] %v5

// kernel: han_forward.3
$region0: #{han_forward.3}
  #allocation0 [shape = 'u32[]', space=smem, size = 0x4, offset = 0x4, fixed_abs, tag = 'smem constant byte address 0x4 - core index']
  #allocation1 [shape = 'u32[72,128]{1,0:T(1,128)}', space=vmem, size = 0x9000, scoped, tag = 'internal scratch']
  #allocation2 [shape = 'f32[4,8,64]{2,1,0:T(8,128)}', space=vmem, size = 0x4000, scoped, tag = 'scratch operand']
  %s0 = inlined_call_operand.vmem [shape: f32[4,8,64], index: 0, kind: input, shape index: {}]
  %s1 = inlined_call_operand.vmem [shape: f32[4,8,64], index: 1, kind: input, shape index: {}]
  %s2 = inlined_call_operand.vmem [shape: f32[64,192], index: 2, kind: input, shape index: {}]
  %s3 = inlined_call_operand.vmem [shape: f32[1,192], index: 3, kind: input, shape index: {}]
  %s4 = inlined_call_operand.vmem [shape: f32[64,192], index: 4, kind: input, shape index: {}]
  %s5 = inlined_call_operand.vmem [shape: f32[1,64], index: 5, kind: input, shape index: {}]
  %s6 = inlined_call_operand.vmem [shape: f32[64,32], index: 6, kind: input, shape index: {}]
  %s7 = inlined_call_operand.vmem [shape: f32[1,32], index: 7, kind: input, shape index: {}]
  %s8 = inlined_call_operand.vmem [shape: f32[1,32], index: 8, kind: input, shape index: {}]
  %s9 = inlined_call_operand.vmem [shape: f32[64,5], index: 9, kind: input, shape index: {}]
  %s10 = inlined_call_operand.vmem [shape: f32[1,5], index: 10, kind: input, shape index: {}]
  %s11 = inlined_call_operand.vmem [shape: f32[8,5], index: 11, kind: output, shape index: {0}]
  %s12 = inlined_call_operand.vmem [shape: f32[4,8,1], index: 12, kind: output, shape index: {1}]
  %13 = xla_tuple %s11, %s12
  %s14 = sld [smem:[#allocation0]]
  $region62: #{han_forward.3} parent=0
    _
  %s16 = ssub.s32 1, %s14
  %s17 = scalar_select 0, %s16, %s14
  // Predicated region
  $region2: #{han_forward.3} parent=0 // pred_check
    _
  $region3: #{han_forward.3} parent=0 // pred_check_branch
    %19 = sbr.rel (0) target = $region5
  $region4: #{han_forward.3} parent=0 // pred_region
    _
  $region5: #{han_forward.3} parent=0 // pred_fallthru
    _
  // Predicated region
  $region6: #{han_forward.3} parent=0 // pred_check
    _
  $region7: #{han_forward.3} parent=0 // pred_check_branch
    %21 = sbr.rel (0) target = $region9
  $region8: #{han_forward.3} parent=0 // pred_region
    _
  $region9: #{han_forward.3} parent=0 // pred_fallthru
    _
  // Predicated region
  $region10: #{han_forward.3} parent=0 // pred_check
    _
  $region11: #{han_forward.3} parent=0 // pred_check_branch
    %23 = sbr.rel (0) target = $region13
  $region12: #{han_forward.3} parent=0 // pred_region
    _
  $region13: #{han_forward.3} parent=0 // pred_fallthru
    _
  // Predicated region
  $region14: #{han_forward.3} parent=0 // pred_check
    _
  $region15: #{han_forward.3} parent=0 // pred_check_branch
    %25 = sbr.rel (0) target = $region17
  $region16: #{han_forward.3} parent=0 // pred_region
    _
  $region17: #{han_forward.3} parent=0 // pred_fallthru
    _
  // Predicated region
  $region18: #{han_forward.3} parent=0 // pred_check
    _
  $region19: #{han_forward.3} parent=0 // pred_check_branch
    %27 = sbr.rel (0) target = $region21
  $region20: #{han_forward.3} parent=0 // pred_region
    _
  $region21: #{han_forward.3} parent=0 // pred_fallthru
    _
  // Predicated region
  $region22: #{han_forward.3} parent=0 // pred_check
    _
  $region23: #{han_forward.3} parent=0 // pred_check_branch
    %29 = sbr.rel (0) target = $region25
  $region24: #{han_forward.3} parent=0 // pred_region
    _
  $region25: #{han_forward.3} parent=0 // pred_fallthru
    _
  // Predicated region
  $region26: #{han_forward.3} parent=0 // pred_check
    _
  $region27: #{han_forward.3} parent=0 // pred_check_branch
    %31 = sbr.rel (0) target = $region29
  $region28: #{han_forward.3} parent=0 // pred_region
    _
  $region29: #{han_forward.3} parent=0 // pred_fallthru
    _
  // Predicated region
  $region30: #{han_forward.3} parent=0 // pred_check
    _
  $region31: #{han_forward.3} parent=0 // pred_check_branch
    %33 = sbr.rel (0) target = $region33
  $region32: #{han_forward.3} parent=0 // pred_region
    _
  $region33: #{han_forward.3} parent=0 // pred_fallthru
    _
  // Predicated region
  $region34: #{han_forward.3} parent=0 // pred_check
    _
  $region35: #{han_forward.3} parent=0 // pred_check_branch
    %35 = sbr.rel (0) target = $region37
  $region36: #{han_forward.3} parent=0 // pred_region
    _
  $region37: #{han_forward.3} parent=0 // pred_fallthru
    _
  // Predicated region
  $region38: #{han_forward.3} parent=0 // pred_check
    _
  $region39: #{han_forward.3} parent=0 // pred_check_branch
    %37 = sbr.rel (0) target = $region41
  $region40: #{han_forward.3} parent=0 // pred_region
    _
  $region41: #{han_forward.3} parent=0 // pred_fallthru
    _
  // Predicated region
  $region42: #{han_forward.3} parent=0 // pred_check
    _
  $region43: #{han_forward.3} parent=0 // pred_check_branch
    %39 = sbr.rel (0) target = $region45
  $region44: #{han_forward.3} parent=0 // pred_region
    _
  $region45: #{han_forward.3} parent=0 // pred_fallthru
    _
  %v40 = vld [vmem:[%s1] sm:$0xff]
  %v41 = vld [vmem:[%s1 + $0x8] sm:$0xff]
  %v42 = vld [vmem:[%s1 + $0x10] sm:$0xff]
  %v43 = vld [vmem:[%s1 + $0x18] sm:$0xff]
  %v44 = vld [vmem:[%s0] sm:$0xff]
  %v45 = vld [vmem:[%s0 + $0x8] sm:$0xff]
  %v46 = vld [vmem:[%s0 + $0x10] sm:$0xff]
  %v47 = vld [vmem:[%s0 + $0x18] sm:$0xff]
  %v48 = vld [vmem:[%s2] sm:$0xff]
  %v49 = vld [vmem:[%s2 + $0x8] sm:$0xff]
  %v50 = vld [vmem:[%s2 + $0x10] sm:$0xff]
  %v51 = vld [vmem:[%s2 + $0x18] sm:$0xff]
  %v52 = vld [vmem:[%s2 + $0x20] sm:$0xff]
  %v53 = vld [vmem:[%s2 + $0x28] sm:$0xff]
  %v54 = vld [vmem:[%s2 + $0x30] sm:$0xff]
  %v55 = vld [vmem:[%s2 + $0x38] sm:$0xff]
  %v56 = vld [vmem:[%s2 + $0x40] sm:$0xff]
  %v57 = vld [vmem:[%s2 + $0x48] sm:$0xff]
  %v58 = vld [vmem:[%s2 + $0x50] sm:$0xff]
  %v59 = vld [vmem:[%s2 + $0x58] sm:$0xff]
  %v60 = vld [vmem:[%s2 + $0x60] sm:$0xff]
  %v61 = vld [vmem:[%s2 + $0x68] sm:$0xff]
  %v62 = vld [vmem:[%s2 + $0x70] sm:$0xff]
  %v63 = vld [vmem:[%s2 + $0x78] sm:$0xff]
  %v64 = vld [vmem:[%s3] sm:$0x3]
  %v66 = vperm.slane %v64, 0
  %v67 = vperm.slane %v64, 1
  %vm70 = vcmask 523264
  %v72 = vsel %vm70, %v44, 0
  %v75 = vsel %vm70, %v45, 0
  %v78 = vsel %vm70, %v46, 0
  %v81 = vsel %vm70, %v47, 0
  %83 = vmatpush.msra.mxu0 0.0
  %84 = vmatpush.msra.mxu0 0.0
  %85 = vmatpush.msra.mxu0 0.0
  %86 = vmatpush.msra.mxu0 0.0
  %87 = vmatpush.msra.mxu0 0.0
  %88 = vmatpush.msra.mxu0 0.0
  %89 = vmatpush.msra.mxu0 0.0
  %90 = vmatpush.msra.mxu0 0.0
  %91 = vmatpush.msra.mxu0 %v62
  %92 = vmatpush.msra.mxu0 %v60
  %93 = vmatpush.msra.mxu0 %v58
  %94 = vmatpush.msra.mxu0 %v56
  %95 = vmatpush.msra.mxu0 %v54
  %96 = vmatpush.msra.mxu0 %v52
  %97 = vmatpush.msra.mxu0 %v50
  %98 = vmatpush.msra.mxu0 %v48
  %99 = vmatmul.f32.gmra.mxu0 %v72
  %v100 = vpop.f32.mrf.mxu0
  %v101 = vadd.f32 %v66, %v100
  %102 = vmatmul.f32.gmra.mxu0 %v75
  %v103 = vpop.f32.mrf.mxu0
  %v104 = vadd.f32 %v66, %v103
  %105 = vmatmul.f32.gmra.mxu0 %v78
  %v106 = vpop.f32.mrf.mxu0
  %v107 = vadd.f32 %v66, %v106
  %108 = vmatmul.f32.gmra.mxu0 %v81
  %v109 = vpop.f32.mrf.mxu0
  %v110 = vadd.f32 %v66, %v109
  %111 = vdwg.mxu0
  %112 = vmatpush.msra.mxu0 0.0
  %113 = vmatpush.msra.mxu0 0.0
  %114 = vmatpush.msra.mxu0 0.0
  %115 = vmatpush.msra.mxu0 0.0
  %116 = vmatpush.msra.mxu0 0.0
  %117 = vmatpush.msra.mxu0 0.0
  %118 = vmatpush.msra.mxu0 0.0
  %119 = vmatpush.msra.mxu0 0.0
  %120 = vmatpush.msra.mxu0 %v63
  %121 = vmatpush.msra.mxu0 %v61
  %122 = vmatpush.msra.mxu0 %v59
  %123 = vmatpush.msra.mxu0 %v57
  %124 = vmatpush.msra.mxu0 %v55
  %125 = vmatpush.msra.mxu0 %v53
  %126 = vmatpush.msra.mxu0 %v51
  %127 = vmatpush.msra.mxu0 %v49
  %128 = vmatmul.f32.gmra.mxu0 %v72
  %v129 = vpop.f32.mrf.mxu0
  %v130 = vadd.f32 %v67, %v129
  %131 = vmatmul.f32.gmra.mxu0 %v75
  %v132 = vpop.f32.mrf.mxu0
  %v133 = vadd.f32 %v67, %v132
  %134 = vmatmul.f32.gmra.mxu0 %v78
  %v135 = vpop.f32.mrf.mxu0
  %v136 = vadd.f32 %v67, %v135
  %137 = vmatmul.f32.gmra.mxu0 %v81
  %v138 = vpop.f32.mrf.mxu0
  %v139 = vadd.f32 %v67, %v138
  %140 = vdwg.mxu0
  %145 = vrot.lane.b32.xlu0 %v110, 64
  %v146 = vpop.permute.xlu0 %145
  %147 = vrot.lane.b32.xlu0 %v107, 64
  %v148 = vpop.permute.xlu0 %147
  %149 = vrot.lane.b32.xlu0 %v104, 64
  %v150 = vpop.permute.xlu0 %149
  %151 = vrot.lane.b32.xlu0 %v101, 64
  %v152 = vpop.permute.xlu0 %151
  %vm157 = vcmask 261120
  %v158 = vsel %vm157, %v101, %v146
  %v159 = vsel %vm157, %v104, %v148
  %v160 = vsel %vm157, %v107, %v150
  %v161 = vsel %vm157, %v110, %v152
  %162 = vrot.lane.b32.xlu0 %v101, 96
  %v163 = vpop.permute.xlu0 %162
  %164 = vrot.lane.b32.xlu0 %v104, 96
  %v165 = vpop.permute.xlu0 %164
  %166 = vrot.lane.b32.xlu0 %v107, 96
  %v167 = vpop.permute.xlu0 %166
  %168 = vrot.lane.b32.xlu0 %v110, 96
  %v169 = vpop.permute.xlu0 %168
  %178 = vrot.lane.b32.xlu0 %v139, 32
  %v179 = vpop.permute.xlu0 %178
  %180 = vrot.lane.b32.xlu0 %v136, 32
  %v181 = vpop.permute.xlu0 %180
  %182 = vrot.lane.b32.xlu0 %v133, 32
  %v183 = vpop.permute.xlu0 %182
  %184 = vrot.lane.b32.xlu0 %v130, 32
  %v185 = vpop.permute.xlu0 %184
  %v190 = vsel %vm157, %v163, %v179
  %v191 = vsel %vm157, %v165, %v181
  %v192 = vsel %vm157, %v167, %v183
  %v193 = vsel %vm157, %v169, %v185
  %v194 = vsel %vm157, %v152, %v139
  %v195 = vsel %vm157, %v150, %v136
  %v196 = vsel %vm157, %v148, %v133
  %v197 = vsel %vm157, %v146, %v130
  %v198 = vld [vmem:[%s4] sm:$0xff]
  %v199 = vld [vmem:[%s4 + $0x8] sm:$0xff]
  %v200 = vld [vmem:[%s4 + $0x10] sm:$0xff]
  %v201 = vld [vmem:[%s4 + $0x18] sm:$0xff]
  %v202 = vld [vmem:[%s4 + $0x20] sm:$0xff]
  %v203 = vld [vmem:[%s4 + $0x28] sm:$0xff]
  %v204 = vld [vmem:[%s4 + $0x30] sm:$0xff]
  %v205 = vld [vmem:[%s4 + $0x38] sm:$0xff]
  %v206 = vld [vmem:[%s4 + $0x40] sm:$0xff]
  %v207 = vld [vmem:[%s4 + $0x48] sm:$0xff]
  %v208 = vld [vmem:[%s4 + $0x50] sm:$0xff]
  %v209 = vld [vmem:[%s4 + $0x58] sm:$0xff]
  %v210 = vld [vmem:[%s4 + $0x60] sm:$0xff]
  %v211 = vld [vmem:[%s4 + $0x68] sm:$0xff]
  %v212 = vld [vmem:[%s4 + $0x70] sm:$0xff]
  %v213 = vld [vmem:[%s4 + $0x78] sm:$0xff]
  %v214 = vld [vmem:[%s5] sm:$0x1]
  %v216 = vperm.slane %v214, 0
  %v219 = vsel %vm70, 0.0, 0
  %221 = vmatpush.msra.mxu0 0.0
  %222 = vmatpush.msra.mxu0 0.0
  %223 = vmatpush.msra.mxu0 0.0
  %224 = vmatpush.msra.mxu0 0.0
  %225 = vmatpush.msra.mxu0 0.0
  %226 = vmatpush.msra.mxu0 0.0
  %227 = vmatpush.msra.mxu0 0.0
  %228 = vmatpush.msra.mxu0 0.0
  %229 = vmatpush.msra.mxu0 %v212
  %230 = vmatpush.msra.mxu0 %v210
  %231 = vmatpush.msra.mxu0 %v208
  %232 = vmatpush.msra.mxu0 %v206
  %233 = vmatpush.msra.mxu0 %v204
  %234 = vmatpush.msra.mxu0 %v202
  %235 = vmatpush.msra.mxu0 %v200
  %236 = vmatpush.msra.mxu0 %v198
  %237 = vmatmul.f32.gmra.mxu0 %v219
  %v238 = vpop.f32.mrf.mxu0
  %v239 = vadd.f32 0.0, %v238
  %240 = vdwg.mxu0
  %241 = vmatpush.msra.mxu0 0.0
  %242 = vmatpush.msra.mxu0 0.0
  %243 = vmatpush.msra.mxu0 0.0
  %244 = vmatpush.msra.mxu0 0.0
  %245 = vmatpush.msra.mxu0 0.0
  %246 = vmatpush.msra.mxu0 0.0
  %247 = vmatpush.msra.mxu0 0.0
  %248 = vmatpush.msra.mxu0 0.0
  %249 = vmatpush.msra.mxu0 %v213
  %250 = vmatpush.msra.mxu0 %v211
  %251 = vmatpush.msra.mxu0 %v209
  %252 = vmatpush.msra.mxu0 %v207
  %253 = vmatpush.msra.mxu0 %v205
  %254 = vmatpush.msra.mxu0 %v203
  %255 = vmatpush.msra.mxu0 %v201
  %256 = vmatpush.msra.mxu0 %v199
  %257 = vmatmul.f32.gmra.mxu0 %v219
  %v258 = vpop.f32.mrf.mxu0
  %v259 = vadd.f32 0.0, %v258
  %260 = vdwg.mxu0
  %v261 = vadd.f32 %v158, %v239
  %v262 = vxor.u32 %v261, 2147483648
  %v263 = vmul.f32 %v262, 1.442695
  %v264 = vpow.pop %v263
  %v265 = vadd.f32 %v264, 1.0
  %v266 = vrcp.pop %v265
  %v267 = vmul.f32 %v265, %v266
  %v268 = vsub.f32 1.0, %v267
  %v269 = vmul.f32 %v266, %v268
  %v270 = vadd.f32 %v266, %v269
  %vm271 = vweird.f32 %v265
  %vm272 = vweird.f32 %v266
  %vm273 = vmor %vm271, %vm272
  %v274 = vsel %vm273, %v266, %v270
  %v275 = vand.u32 2147483647, %v265
  %vm276 = vcmp.eq.f32.partialorder %v275, 8.507059e+37
  %v277 = vand.u32 %v265, 2147483648
  %v278 = vor.u32 1.1754944e-38, %v277
  %v279 = vsel %vm276, %v278, %v274
  %v280 = vmul.f32 1.0, %v279
  %282 = vrot.lane.b32.xlu0 %v239, 64
  %v283 = vpop.permute.xlu0 %282
  %v285 = vadd.f32 %v190, %v283
  %v286 = vxor.u32 %v285, 2147483648
  %v287 = vmul.f32 %v286, 1.442695
  %v288 = vpow.pop %v287
  %v289 = vadd.f32 %v288, 1.0
  %v290 = vrcp.pop %v289
  %v291 = vmul.f32 %v289, %v290
  %v292 = vsub.f32 1.0, %v291
  %v293 = vmul.f32 %v290, %v292
  %v294 = vadd.f32 %v290, %v293
  %vm295 = vweird.f32 %v289
  %vm296 = vweird.f32 %v290
  %vm297 = vmor %vm295, %vm296
  %v298 = vsel %vm297, %v290, %v294
  %v299 = vand.u32 2147483647, %v289
  %vm300 = vcmp.eq.f32.partialorder %v299, 8.507059e+37
  %v301 = vand.u32 %v289, 2147483648
  %v302 = vor.u32 1.1754944e-38, %v301
  %v303 = vsel %vm300, %v302, %v298
  %v304 = vmul.f32 1.0, %v303
  %v305 = vadd.f32 %v259, %v216
  %v306 = vmul.f32 %v280, %v305
  %v307 = vadd.f32 %v194, %v306
  %v308 = vtanh.pop %v307
  %v309 = vsub.f32 0.0, %v308
  %v310 = vmul.f32 %v304, %v309
  %v311 = vadd.f32 %v308, %v310
  %v312 = vmul.f32 %v40, %v311
  %v313 = vadd.f32 %v312, 0.0
  %314 = vst.msk [vmem:[#allocation2] sm:$0xff] %vm157, %v312
  %s315 = scalar_lea.vmem [#allocation2], 24
  %vm316 = vcmask 523520
  %317 = vst.msk [vmem:[%s315] sm:$0xff] %vm316, %v312
  %v319 = vsel %vm70, %v313, 0
  %321 = vmatpush.msra.mxu0 0.0
  %322 = vmatpush.msra.mxu0 0.0
  %323 = vmatpush.msra.mxu0 0.0
  %324 = vmatpush.msra.mxu0 0.0
  %325 = vmatpush.msra.mxu0 0.0
  %326 = vmatpush.msra.mxu0 0.0
  %327 = vmatpush.msra.mxu0 0.0
  %328 = vmatpush.msra.mxu0 0.0
  %329 = vmatpush.msra.mxu0 %v212
  %330 = vmatpush.msra.mxu0 %v210
  %331 = vmatpush.msra.mxu0 %v208
  %332 = vmatpush.msra.mxu0 %v206
  %333 = vmatpush.msra.mxu0 %v204
  %334 = vmatpush.msra.mxu0 %v202
  %335 = vmatpush.msra.mxu0 %v200
  %336 = vmatpush.msra.mxu0 %v198
  %337 = vmatmul.f32.gmra.mxu0 %v319
  %v338 = vpop.f32.mrf.mxu0
  %v339 = vadd.f32 0.0, %v338
  %340 = vdwg.mxu0
  %341 = vmatpush.msra.mxu0 0.0
  %342 = vmatpush.msra.mxu0 0.0
  %343 = vmatpush.msra.mxu0 0.0
  %344 = vmatpush.msra.mxu0 0.0
  %345 = vmatpush.msra.mxu0 0.0
  %346 = vmatpush.msra.mxu0 0.0
  %347 = vmatpush.msra.mxu0 0.0
  %348 = vmatpush.msra.mxu0 0.0
  %349 = vmatpush.msra.mxu0 %v213
  %350 = vmatpush.msra.mxu0 %v211
  %351 = vmatpush.msra.mxu0 %v209
  %352 = vmatpush.msra.mxu0 %v207
  %353 = vmatpush.msra.mxu0 %v205
  %354 = vmatpush.msra.mxu0 %v203
  %355 = vmatpush.msra.mxu0 %v201
  %356 = vmatpush.msra.mxu0 %v199
  %357 = vmatmul.f32.gmra.mxu0 %v319
  %v358 = vpop.f32.mrf.mxu0
  %v359 = vadd.f32 0.0, %v358
  %360 = vdwg.mxu0
  %v361 = vadd.f32 %v159, %v339
  %v362 = vxor.u32 %v361, 2147483648
  %v363 = vmul.f32 %v362, 1.442695
  %v364 = vpow.pop %v363
  %v365 = vadd.f32 %v364, 1.0
  %v366 = vrcp.pop %v365
  %v367 = vmul.f32 %v365, %v366
  %v368 = vsub.f32 1.0, %v367
  %v369 = vmul.f32 %v366, %v368
  %v370 = vadd.f32 %v366, %v369
  %vm371 = vweird.f32 %v365
  %vm372 = vweird.f32 %v366
  %vm373 = vmor %vm371, %vm372
  %v374 = vsel %vm373, %v366, %v370
  %v375 = vand.u32 2147483647, %v365
  %vm376 = vcmp.eq.f32.partialorder %v375, 8.507059e+37
  %v377 = vand.u32 %v365, 2147483648
  %v378 = vor.u32 1.1754944e-38, %v377
  %v379 = vsel %vm376, %v378, %v374
  %v380 = vmul.f32 1.0, %v379
  %382 = vrot.lane.b32.xlu0 %v339, 64
  %v383 = vpop.permute.xlu0 %382
  %v385 = vadd.f32 %v191, %v383
  %v386 = vxor.u32 %v385, 2147483648
  %v387 = vmul.f32 %v386, 1.442695
  %v388 = vpow.pop %v387
  %v389 = vadd.f32 %v388, 1.0
  %v390 = vrcp.pop %v389
  %v391 = vmul.f32 %v389, %v390
  %v392 = vsub.f32 1.0, %v391
  %v393 = vmul.f32 %v390, %v392
  %v394 = vadd.f32 %v390, %v393
  %vm395 = vweird.f32 %v389
  %vm396 = vweird.f32 %v390
  %vm397 = vmor %vm395, %vm396
  %v398 = vsel %vm397, %v390, %v394
  %v399 = vand.u32 2147483647, %v389
  %vm400 = vcmp.eq.f32.partialorder %v399, 8.507059e+37
  %v401 = vand.u32 %v389, 2147483648
  %v402 = vor.u32 1.1754944e-38, %v401
  %v403 = vsel %vm400, %v402, %v398
  %v404 = vmul.f32 1.0, %v403
  %v405 = vadd.f32 %v359, %v216
  %v406 = vmul.f32 %v380, %v405
  %v407 = vadd.f32 %v195, %v406
  %v408 = vtanh.pop %v407
  %v409 = vsub.f32 %v313, %v408
  %v410 = vmul.f32 %v404, %v409
  %v411 = vadd.f32 %v408, %v410
  %v412 = vmul.f32 %v41, %v411
  %v413 = vsub.f32 %v411, %v313
  %v414 = vmul.f32 %v41, %v413
  %v415 = vadd.f32 %v313, %v414
  %s416 = scalar_lea.vmem [#allocation2], 8
  %417 = vst.msk [vmem:[%s416] sm:$0xff] %vm157, %v412
  %s418 = scalar_lea.vmem [#allocation2], 16
  %419 = vst.msk [vmem:[%s418] sm:$0xff] %vm316, %v412
  %v421 = vsel %vm70, %v415, 0
  %423 = vmatpush.msra.mxu0 0.0
  %424 = vmatpush.msra.mxu0 0.0
  %425 = vmatpush.msra.mxu0 0.0
  %426 = vmatpush.msra.mxu0 0.0
  %427 = vmatpush.msra.mxu0 0.0
  %428 = vmatpush.msra.mxu0 0.0
  %429 = vmatpush.msra.mxu0 0.0
  %430 = vmatpush.msra.mxu0 0.0
  %431 = vmatpush.msra.mxu0 %v212
  %432 = vmatpush.msra.mxu0 %v210
  %433 = vmatpush.msra.mxu0 %v208
  %434 = vmatpush.msra.mxu0 %v206
  %435 = vmatpush.msra.mxu0 %v204
  %436 = vmatpush.msra.mxu0 %v202
  %437 = vmatpush.msra.mxu0 %v200
  %438 = vmatpush.msra.mxu0 %v198
  %439 = vmatmul.f32.gmra.mxu0 %v421
  %v440 = vpop.f32.mrf.mxu0
  %v441 = vadd.f32 0.0, %v440
  %442 = vdwg.mxu0
  %443 = vmatpush.msra.mxu0 0.0
  %444 = vmatpush.msra.mxu0 0.0
  %445 = vmatpush.msra.mxu0 0.0
  %446 = vmatpush.msra.mxu0 0.0
  %447 = vmatpush.msra.mxu0 0.0
  %448 = vmatpush.msra.mxu0 0.0
  %449 = vmatpush.msra.mxu0 0.0
  %450 = vmatpush.msra.mxu0 0.0
  %451 = vmatpush.msra.mxu0 %v213
  %452 = vmatpush.msra.mxu0 %v211
  %453 = vmatpush.msra.mxu0 %v209
  %454 = vmatpush.msra.mxu0 %v207
  %455 = vmatpush.msra.mxu0 %v205
  %456 = vmatpush.msra.mxu0 %v203
  %457 = vmatpush.msra.mxu0 %v201
  %458 = vmatpush.msra.mxu0 %v199
  %459 = vmatmul.f32.gmra.mxu0 %v421
  %v460 = vpop.f32.mrf.mxu0
  %v461 = vadd.f32 0.0, %v460
  %462 = vdwg.mxu0
  %v463 = vadd.f32 %v160, %v441
  %v464 = vxor.u32 %v463, 2147483648
  %v465 = vmul.f32 %v464, 1.442695
  %v466 = vpow.pop %v465
  %v467 = vadd.f32 %v466, 1.0
  %v468 = vrcp.pop %v467
  %v469 = vmul.f32 %v467, %v468
  %v470 = vsub.f32 1.0, %v469
  %v471 = vmul.f32 %v468, %v470
  %v472 = vadd.f32 %v468, %v471
  %vm473 = vweird.f32 %v467
  %vm474 = vweird.f32 %v468
  %vm475 = vmor %vm473, %vm474
  %v476 = vsel %vm475, %v468, %v472
  %v477 = vand.u32 2147483647, %v467
  %vm478 = vcmp.eq.f32.partialorder %v477, 8.507059e+37
  %v479 = vand.u32 %v467, 2147483648
  %v480 = vor.u32 1.1754944e-38, %v479
  %v481 = vsel %vm478, %v480, %v476
  %v482 = vmul.f32 1.0, %v481
  %484 = vrot.lane.b32.xlu0 %v441, 64
  %v485 = vpop.permute.xlu0 %484
  %v487 = vadd.f32 %v192, %v485
  %v488 = vxor.u32 %v487, 2147483648
  %v489 = vmul.f32 %v488, 1.442695
  %v490 = vpow.pop %v489
  %v491 = vadd.f32 %v490, 1.0
  %v492 = vrcp.pop %v491
  %v493 = vmul.f32 %v491, %v492
  %v494 = vsub.f32 1.0, %v493
  %v495 = vmul.f32 %v492, %v494
  %v496 = vadd.f32 %v492, %v495
  %vm497 = vweird.f32 %v491
  %vm498 = vweird.f32 %v492
  %vm499 = vmor %vm497, %vm498
  %v500 = vsel %vm499, %v492, %v496
  %v501 = vand.u32 2147483647, %v491
  %vm502 = vcmp.eq.f32.partialorder %v501, 8.507059e+37
  %v503 = vand.u32 %v491, 2147483648
  %v504 = vor.u32 1.1754944e-38, %v503
  %v505 = vsel %vm502, %v504, %v500
  %v506 = vmul.f32 1.0, %v505
  %v507 = vadd.f32 %v461, %v216
  %v508 = vmul.f32 %v482, %v507
  %v509 = vadd.f32 %v196, %v508
  %v510 = vtanh.pop %v509
  %v511 = vsub.f32 %v415, %v510
  %v512 = vmul.f32 %v506, %v511
  %v513 = vadd.f32 %v510, %v512
  %v514 = vmul.f32 %v42, %v513
  %v515 = vsub.f32 %v513, %v415
  %v516 = vmul.f32 %v42, %v515
  %v517 = vadd.f32 %v415, %v516
  %518 = vst.msk [vmem:[%s418] sm:$0xff] %vm157, %v514
  %519 = vst.msk [vmem:[%s416] sm:$0xff] %vm316, %v514
  %v521 = vsel %vm70, %v517, 0
  %523 = vmatpush.msra.mxu0 0.0
  %524 = vmatpush.msra.mxu0 0.0
  %525 = vmatpush.msra.mxu0 0.0
  %526 = vmatpush.msra.mxu0 0.0
  %527 = vmatpush.msra.mxu0 0.0
  %528 = vmatpush.msra.mxu0 0.0
  %529 = vmatpush.msra.mxu0 0.0
  %530 = vmatpush.msra.mxu0 0.0
  %531 = vmatpush.msra.mxu0 %v212
  %532 = vmatpush.msra.mxu0 %v210
  %533 = vmatpush.msra.mxu0 %v208
  %534 = vmatpush.msra.mxu0 %v206
  %535 = vmatpush.msra.mxu0 %v204
  %536 = vmatpush.msra.mxu0 %v202
  %537 = vmatpush.msra.mxu0 %v200
  %538 = vmatpush.msra.mxu0 %v198
  %539 = vmatmul.f32.gmra.mxu0 %v521
  %v540 = vpop.f32.mrf.mxu0
  %v541 = vadd.f32 0.0, %v540
  %542 = vdwg.mxu0
  %543 = vmatpush.msra.mxu0 0.0
  %544 = vmatpush.msra.mxu0 0.0
  %545 = vmatpush.msra.mxu0 0.0
  %546 = vmatpush.msra.mxu0 0.0
  %547 = vmatpush.msra.mxu0 0.0
  %548 = vmatpush.msra.mxu0 0.0
  %549 = vmatpush.msra.mxu0 0.0
  %550 = vmatpush.msra.mxu0 0.0
  %551 = vmatpush.msra.mxu0 %v213
  %552 = vmatpush.msra.mxu0 %v211
  %553 = vmatpush.msra.mxu0 %v209
  %554 = vmatpush.msra.mxu0 %v207
  %555 = vmatpush.msra.mxu0 %v205
  %556 = vmatpush.msra.mxu0 %v203
  %557 = vmatpush.msra.mxu0 %v201
  %558 = vmatpush.msra.mxu0 %v199
  %559 = vmatmul.f32.gmra.mxu0 %v521
  %v560 = vpop.f32.mrf.mxu0
  %v561 = vadd.f32 0.0, %v560
  %562 = vdwg.mxu0
  %v563 = vadd.f32 %v161, %v541
  %v564 = vxor.u32 %v563, 2147483648
  %v565 = vmul.f32 %v564, 1.442695
  %v566 = vpow.pop %v565
  %v567 = vadd.f32 %v566, 1.0
  %v568 = vrcp.pop %v567
  %v569 = vmul.f32 %v567, %v568
  %v570 = vsub.f32 1.0, %v569
  %v571 = vmul.f32 %v568, %v570
  %v572 = vadd.f32 %v568, %v571
  %vm573 = vweird.f32 %v567
  %vm574 = vweird.f32 %v568
  %vm575 = vmor %vm573, %vm574
  %v576 = vsel %vm575, %v568, %v572
  %v577 = vand.u32 2147483647, %v567
  %vm578 = vcmp.eq.f32.partialorder %v577, 8.507059e+37
  %v579 = vand.u32 %v567, 2147483648
  %v580 = vor.u32 1.1754944e-38, %v579
  %v581 = vsel %vm578, %v580, %v576
  %v582 = vmul.f32 1.0, %v581
  %584 = vrot.lane.b32.xlu0 %v541, 64
  %v585 = vpop.permute.xlu0 %584
  %v587 = vadd.f32 %v193, %v585
  %v588 = vxor.u32 %v587, 2147483648
  %v589 = vmul.f32 %v588, 1.442695
  %v590 = vpow.pop %v589
  %v591 = vadd.f32 %v590, 1.0
  %v592 = vrcp.pop %v591
  %v593 = vmul.f32 %v591, %v592
  %v594 = vsub.f32 1.0, %v593
  %v595 = vmul.f32 %v592, %v594
  %v596 = vadd.f32 %v592, %v595
  %vm597 = vweird.f32 %v591
  %vm598 = vweird.f32 %v592
  %vm599 = vmor %vm597, %vm598
  %v600 = vsel %vm599, %v592, %v596
  %v601 = vand.u32 2147483647, %v591
  %vm602 = vcmp.eq.f32.partialorder %v601, 8.507059e+37
  %v603 = vand.u32 %v591, 2147483648
  %v604 = vor.u32 1.1754944e-38, %v603
  %v605 = vsel %vm602, %v604, %v600
  %v606 = vmul.f32 1.0, %v605
  %v607 = vadd.f32 %v561, %v216
  %v608 = vmul.f32 %v582, %v607
  %v609 = vadd.f32 %v197, %v608
  %v610 = vtanh.pop %v609
  %v611 = vsub.f32 %v517, %v610
  %v612 = vmul.f32 %v606, %v611
  %v613 = vadd.f32 %v610, %v612
  %v614 = vmul.f32 %v43, %v613
  %615 = vst.msk [vmem:[%s315] sm:$0xff] %vm157, %v614
  %616 = vst.msk [vmem:[#allocation2] sm:$0xff] %vm316, %v614
  %v617 = vld [vmem:[#allocation2] sm:$0xff]
  %v618 = vld [vmem:[#allocation2 + $0x8] sm:$0xff]
  %v619 = vld [vmem:[#allocation2 + $0x10] sm:$0xff]
  %v620 = vld [vmem:[#allocation2 + $0x18] sm:$0xff]
  %v621 = vld [vmem:[%s6] sm:$0xff]
  %v622 = vld [vmem:[%s6 + $0x8] sm:$0xff]
  %v623 = vld [vmem:[%s6 + $0x10] sm:$0xff]
  %v624 = vld [vmem:[%s6 + $0x18] sm:$0xff]
  %v625 = vld [vmem:[%s6 + $0x20] sm:$0xff]
  %v626 = vld [vmem:[%s6 + $0x28] sm:$0xff]
  %v627 = vld [vmem:[%s6 + $0x30] sm:$0xff]
  %v628 = vld [vmem:[%s6 + $0x38] sm:$0xff]
  %v629 = vld [vmem:[%s7] sm:$0x1]
  %v631 = vperm.slane %v629, 0
  %v634 = vsel %vm70, %v617, 0
  %v637 = vsel %vm70, %v618, 0
  %v640 = vsel %vm70, %v619, 0
  %v643 = vsel %vm70, %v620, 0
  %645 = vmatpush.msra.mxu0 0.0
  %646 = vmatpush.msra.mxu0 0.0
  %647 = vmatpush.msra.mxu0 0.0
  %648 = vmatpush.msra.mxu0 0.0
  %649 = vmatpush.msra.mxu0 0.0
  %650 = vmatpush.msra.mxu0 0.0
  %651 = vmatpush.msra.mxu0 0.0
  %652 = vmatpush.msra.mxu0 0.0
  %653 = vmatpush.msra.mxu0 %v628
  %654 = vmatpush.msra.mxu0 %v627
  %655 = vmatpush.msra.mxu0 %v626
  %656 = vmatpush.msra.mxu0 %v625
  %657 = vmatpush.msra.mxu0 %v624
  %658 = vmatpush.msra.mxu0 %v623
  %659 = vmatpush.msra.mxu0 %v622
  %660 = vmatpush.msra.mxu0 %v621
  %661 = vmatmul.f32.gmra.mxu0 %v634
  %v662 = vpop.f32.mrf.mxu0
  %v663 = vadd.f32 %v631, %v662
  %664 = vmatmul.f32.gmra.mxu0 %v637
  %v665 = vpop.f32.mrf.mxu0
  %v666 = vadd.f32 %v631, %v665
  %667 = vmatmul.f32.gmra.mxu0 %v640
  %v668 = vpop.f32.mrf.mxu0
  %v669 = vadd.f32 %v631, %v668
  %670 = vmatmul.f32.gmra.mxu0 %v643
  %v671 = vpop.f32.mrf.mxu0
  %v672 = vadd.f32 %v631, %v671
  %673 = vdwg.mxu0
  %v674 = vtanh.pop %v663
  %v675 = vtanh.pop %v666
  %v676 = vtanh.pop %v669
  %v677 = vtanh.pop %v672
  %v678 = vld [vmem:[%s8] sm:$0x1]
  %v680 = vperm.slane %v678, 0
  %v682 = vmul.f32 %v674, %v680
  %v683 = vmul.f32 %v675, %v680
  %v684 = vmul.f32 %v676, %v680
  %v685 = vmul.f32 %v677, %v680
  %v686 = vsel %vm157, %v682, 0.0
  %687 = vadd.xlane.f32.xlu0 %v686
  %v688 = vpop.xlane.xlu0 %687
  %v689 = vsel %vm157, %v683, 0.0
  %690 = vadd.xlane.f32.xlu0 %v689
  %v691 = vpop.xlane.xlu0 %690
  %v692 = vsel %vm157, %v684, 0.0
  %693 = vadd.xlane.f32.xlu0 %v692
  %v694 = vpop.xlane.xlu0 %693
  %v695 = vsel %vm157, %v685, 0.0
  %696 = vadd.xlane.f32.xlu0 %v695
  %v697 = vpop.xlane.xlu0 %696
  %vm698 = vcmp.gt.f32.partialorder %v40, 0.0
  %vm699 = vcmp.gt.f32.partialorder %v41, 0.0
  %vm700 = vcmp.gt.f32.partialorder %v42, 0.0
  %vm701 = vcmp.gt.f32.partialorder %v43, 0.0
  %v702 = vsel %vm698, %v688, -1e+30
  %v703 = vsel %vm699, %v691, -1e+30
  %v704 = vsel %vm700, %v694, -1e+30
  %v705 = vsel %vm701, %v697, -1e+30
  %vm706 = vcmask 7168
  %v707 = vsel %vm706, %v702, -inf
  %v708 = vsel %vm706, %v703, -inf
  %v709 = vsel %vm706, %v704, -inf
  %v710 = vsel %vm706, %v705, -inf
  %v711 = vmax.f32 %v707, %v708
  %v712 = vmax.f32 %v709, %v710
  %v713 = vmax.f32 %v711, %v712
  %714 = vmax.xlane.f32.xlu0 %v713
  %v715 = vpop.xlane.xlu0 %714
  %v716 = vrot.slane %v715, 4
  %v717 = vmax.f32 %v715, %v716
  %v718 = vrot.slane %v717, 2
  %v719 = vmax.f32 %v717, %v718
  %v720 = vrot.slane %v719, 1
  %v721 = vmax.f32 %v719, %v720
  %s722 = vtos %v721
  %v723 = vstv %s722
  %v724 = vsub.f32 %v688, %v723
  %v725 = vsub.f32 %v691, %v723
  %v726 = vsub.f32 %v694, %v723
  %v727 = vsub.f32 %v697, %v723
  %v728 = vmin.f32 %v724, 0.0
  %v729 = vmin.f32 %v725, 0.0
  %v730 = vmin.f32 %v726, 0.0
  %v731 = vmin.f32 %v727, 0.0
  %v732 = vmul.f32 %v728, 1.442695
  %v733 = vpow.pop %v732
  %v734 = vmul.f32 %v729, 1.442695
  %v735 = vpow.pop %v734
  %v736 = vmul.f32 %v730, 1.442695
  %v737 = vpow.pop %v736
  %v738 = vmul.f32 %v731, 1.442695
  %v739 = vpow.pop %v738
  %v740 = vmul.f32 %v733, %v40
  %v741 = vmul.f32 %v735, %v41
  %v742 = vmul.f32 %v737, %v42
  %v743 = vmul.f32 %v739, %v43
  %v744 = vsel %vm706, %v740, 0.0
  %v745 = vsel %vm706, %v741, 0.0
  %v746 = vadd.f32 %v744, %v745
  %v747 = vsel %vm706, %v742, 0.0
  %v748 = vadd.f32 %v746, %v747
  %v749 = vsel %vm706, %v743, 0.0
  %v750 = vadd.f32 %v748, %v749
  %751 = vadd.xlane.f32.xlu0 %v750
  %v752 = vpop.xlane.xlu0 %751
  %v753 = vrot.slane %v752, 4
  %v754 = vadd.f32 %v752, %v753
  %v755 = vrot.slane %v754, 2
  %v756 = vadd.f32 %v754, %v755
  %v757 = vrot.slane %v756, 1
  %v758 = vadd.f32 %v756, %v757
  %s759 = vtos %v758
  %v760 = vstv %s759
  %v761 = vrcp.pop %v760
  %v762 = vmul.f32 %v740, %v761
  %v763 = vmul.f32 %v741, %v761
  %v764 = vmul.f32 %v742, %v761
  %v765 = vmul.f32 %v743, %v761
  %766 = vst.msk [vmem:[%s12] sm:$0xff] %vm706, %v762
  %767 = vst.msk [vmem:[%s12 + $0x8] sm:$0xff] %vm706, %v763
  %768 = vst.msk [vmem:[%s12 + $0x10] sm:$0xff] %vm706, %v764
  %769 = vst.msk [vmem:[%s12 + $0x18] sm:$0xff] %vm706, %v765
  %771 = vset.pattern.permute.xlu0 0
  %772 = vperm.xlu0 %771, %v762
  %v773 = vpop.permute.xlu0 %772
  %776 = vset.pattern.permute.xlu0 0
  %777 = vperm.xlu0 %776, %v763
  %v778 = vpop.permute.xlu0 %777
  %781 = vset.pattern.permute.xlu0 0
  %782 = vperm.xlu0 %781, %v764
  %v783 = vpop.permute.xlu0 %782
  %786 = vset.pattern.permute.xlu0 0
  %787 = vperm.xlu0 %786, %v765
  %v788 = vpop.permute.xlu0 %787
  %v790 = vmul.f32 %v773, %v617
  %v791 = vmul.f32 %v778, %v618
  %v792 = vmul.f32 %v783, %v619
  %v793 = vmul.f32 %v788, %v620
  %v794 = vsel %vm70, %v790, 0.0
  %v795 = vsel %vm70, %v791, 0.0
  %v796 = vadd.f32 %v794, %v795
  %v797 = vsel %vm70, %v792, 0.0
  %v798 = vadd.f32 %v796, %v797
  %v799 = vsel %vm70, %v793, 0.0
  %v800 = vadd.f32 %v798, %v799
  %v801 = vld [vmem:[%s9] sm:$0xff]
  %v802 = vld [vmem:[%s9 + $0x8] sm:$0xff]
  %v803 = vld [vmem:[%s9 + $0x10] sm:$0xff]
  %v804 = vld [vmem:[%s9 + $0x18] sm:$0xff]
  %v805 = vld [vmem:[%s9 + $0x20] sm:$0xff]
  %v806 = vld [vmem:[%s9 + $0x28] sm:$0xff]
  %v807 = vld [vmem:[%s9 + $0x30] sm:$0xff]
  %v808 = vld [vmem:[%s9 + $0x38] sm:$0xff]
  %v809 = vld [vmem:[%s10] sm:$0x1]
  %v811 = vperm.slane %v809, 0
  %v814 = vsel %vm70, %v800, 0
  %816 = vmatpush.msra.mxu0 0.0
  %817 = vmatpush.msra.mxu0 0.0
  %818 = vmatpush.msra.mxu0 0.0
  %819 = vmatpush.msra.mxu0 0.0
  %820 = vmatpush.msra.mxu0 0.0
  %821 = vmatpush.msra.mxu0 0.0
  %822 = vmatpush.msra.mxu0 0.0
  %823 = vmatpush.msra.mxu0 0.0
  %824 = vmatpush.msra.mxu0 %v808
  %825 = vmatpush.msra.mxu0 %v807
  %826 = vmatpush.msra.mxu0 %v806
  %827 = vmatpush.msra.mxu0 %v805
  %828 = vmatpush.msra.mxu0 %v804
  %829 = vmatpush.msra.mxu0 %v803
  %830 = vmatpush.msra.mxu0 %v802
  %831 = vmatpush.msra.mxu0 %v801
  %832 = vmatmul.f32.gmra.mxu0 %v814
  %v833 = vpop.f32.mrf.mxu0
  %v834 = vadd.f32 %v811, %v833
  %835 = vdwg.mxu0
  %vm836 = vcmask 39936
  %v837 = vsel %vm836, %v834, -inf
  %838 = vmax.xlane.f32.xlu0 %v837
  %v839 = vpop.xlane.xlu0 %838
  %v840 = vsub.f32 %v834, %v839
  %v841 = vmul.f32 %v840, 1.442695
  %v842 = vpow.pop %v841
  %v843 = vsel %vm836, %v842, 0.0
  %844 = vadd.xlane.f32.xlu0 %v843
  %v845 = vpop.xlane.xlu0 %844
  %v846 = vlog2.pop %v845
  %v847 = vmul.f32 %v846, 0.6931472
  %v848 = vsub.f32 %v840, %v847
  %849 = vst.msk [vmem:[%s11] sm:$0xff] %vm836, %v848
  // Predicated region
  $region46: #{han_forward.3} parent=0 // pred_check
    _
  $region47: #{han_forward.3} parent=0 // pred_check_branch
    %851 = sbr.rel (0) target = $region49
  $region48: #{han_forward.3} parent=0 // pred_region
    _
  $region49: #{han_forward.3} parent=0 // pred_fallthru
    _
  // Predicated region
  $region50: #{han_forward.3} parent=0 // pred_check
    _
  $region51: #{han_forward.3} parent=0 // pred_check_branch
    %853 = sbr.rel (0) target = $region53
  $region52: #{han_forward.3} parent=0 // pred_region
    _
  $region53: #{han_forward.3} parent=0 // pred_fallthru
    _
  // Predicated region
  $region54: #{han_forward.3} parent=0 // pred_check
    _
  $region55: #{han_forward.3} parent=0 // pred_check_branch
    %855 = sbr.rel (0) target = $region57
  $region56: #{han_forward.3} parent=0 // pred_region
    _
  $region57: #{han_forward.3} parent=0 // pred_fallthru
    _
  // Predicated region
  $region58: #{han_forward.3} parent=0 // pred_check
    _
  $region59: #{han_forward.3} parent=0 // pred_check_branch
    %857 = sbr.rel (0) target = $region61
  $region60: #{han_forward.3} parent=0 // pred_region
    _
  $region61: #{han_forward.3} parent=0 // pred_fallthru
    _

// kernel: han_forward.2
$region0: #{han_forward.2}
  #allocation0 [shape = 'u32[]', space=smem, size = 0x4, offset = 0x4, fixed_abs, tag = 'smem constant byte address 0x4 - core index']
  #allocation1 [shape = 'u32[72,128]{1,0:T(1,128)}', space=vmem, size = 0x9000, scoped, tag = 'internal scratch']
  #allocation2 [shape = 'f32[8,8,64]{2,1,0:T(8,128)}', space=vmem, size = 0x8000, scoped, tag = 'scratch operand']
  %s0 = inlined_call_operand.vmem [shape: f32[8,8,32], index: 0, kind: input, shape index: {}]
  %s1 = inlined_call_operand.vmem [shape: f32[8,8,64], index: 1, kind: input, shape index: {}]
  %s2 = inlined_call_operand.vmem [shape: f32[32,192], index: 2, kind: input, shape index: {}]
  %s3 = inlined_call_operand.vmem [shape: f32[1,192], index: 3, kind: input, shape index: {}]
  %s4 = inlined_call_operand.vmem [shape: f32[64,192], index: 4, kind: input, shape index: {}]
  %s5 = inlined_call_operand.vmem [shape: f32[1,64], index: 5, kind: input, shape index: {}]
  %s6 = inlined_call_operand.vmem [shape: f32[64,192], index: 6, kind: input, shape index: {}]
  %s7 = inlined_call_operand.vmem [shape: f32[1,192], index: 7, kind: input, shape index: {}]
  %s8 = inlined_call_operand.vmem [shape: f32[64,192], index: 8, kind: input, shape index: {}]
  %s9 = inlined_call_operand.vmem [shape: f32[1,64], index: 9, kind: input, shape index: {}]
  %s10 = inlined_call_operand.vmem [shape: f32[64,32], index: 10, kind: input, shape index: {}]
  %s11 = inlined_call_operand.vmem [shape: f32[1,32], index: 11, kind: input, shape index: {}]
  %s12 = inlined_call_operand.vmem [shape: f32[1,32], index: 12, kind: input, shape index: {}]
  %s13 = inlined_call_operand.vmem [shape: f32[8,64], index: 13, kind: output, shape index: {0}]
  %s14 = inlined_call_operand.vmem [shape: f32[8,8,1], index: 14, kind: output, shape index: {1}]
  %15 = xla_tuple %s13, %s14
  %s16 = sld [smem:[#allocation0]]
  $region70: #{han_forward.2} parent=0
    _
  %s18 = ssub.s32 1, %s16
  %s19 = scalar_select 0, %s18, %s16
  // Predicated region
  $region2: #{han_forward.2} parent=0 // pred_check
    _
  $region3: #{han_forward.2} parent=0 // pred_check_branch
    %21 = sbr.rel (0) target = $region5
  $region4: #{han_forward.2} parent=0 // pred_region
    _
  $region5: #{han_forward.2} parent=0 // pred_fallthru
    _
  // Predicated region
  $region6: #{han_forward.2} parent=0 // pred_check
    _
  $region7: #{han_forward.2} parent=0 // pred_check_branch
    %23 = sbr.rel (0) target = $region9
  $region8: #{han_forward.2} parent=0 // pred_region
    _
  $region9: #{han_forward.2} parent=0 // pred_fallthru
    _
  // Predicated region
  $region10: #{han_forward.2} parent=0 // pred_check
    _
  $region11: #{han_forward.2} parent=0 // pred_check_branch
    %25 = sbr.rel (0) target = $region13
  $region12: #{han_forward.2} parent=0 // pred_region
    _
  $region13: #{han_forward.2} parent=0 // pred_fallthru
    _
  // Predicated region
  $region14: #{han_forward.2} parent=0 // pred_check
    _
  $region15: #{han_forward.2} parent=0 // pred_check_branch
    %27 = sbr.rel (0) target = $region17
  $region16: #{han_forward.2} parent=0 // pred_region
    _
  $region17: #{han_forward.2} parent=0 // pred_fallthru
    _
  // Predicated region
  $region18: #{han_forward.2} parent=0 // pred_check
    _
  $region19: #{han_forward.2} parent=0 // pred_check_branch
    %29 = sbr.rel (0) target = $region21
  $region20: #{han_forward.2} parent=0 // pred_region
    _
  $region21: #{han_forward.2} parent=0 // pred_fallthru
    _
  // Predicated region
  $region22: #{han_forward.2} parent=0 // pred_check
    _
  $region23: #{han_forward.2} parent=0 // pred_check_branch
    %31 = sbr.rel (0) target = $region25
  $region24: #{han_forward.2} parent=0 // pred_region
    _
  $region25: #{han_forward.2} parent=0 // pred_fallthru
    _
  // Predicated region
  $region26: #{han_forward.2} parent=0 // pred_check
    _
  $region27: #{han_forward.2} parent=0 // pred_check_branch
    %33 = sbr.rel (0) target = $region29
  $region28: #{han_forward.2} parent=0 // pred_region
    _
  $region29: #{han_forward.2} parent=0 // pred_fallthru
    _
  // Predicated region
  $region30: #{han_forward.2} parent=0 // pred_check
    _
  $region31: #{han_forward.2} parent=0 // pred_check_branch
    %35 = sbr.rel (0) target = $region33
  $region32: #{han_forward.2} parent=0 // pred_region
    _
  $region33: #{han_forward.2} parent=0 // pred_fallthru
    _
  // Predicated region
  $region34: #{han_forward.2} parent=0 // pred_check
    _
  $region35: #{han_forward.2} parent=0 // pred_check_branch
    %37 = sbr.rel (0) target = $region37
  $region36: #{han_forward.2} parent=0 // pred_region
    _
  $region37: #{han_forward.2} parent=0 // pred_fallthru
    _
  // Predicated region
  $region38: #{han_forward.2} parent=0 // pred_check
    _
  $region39: #{han_forward.2} parent=0 // pred_check_branch
    %39 = sbr.rel (0) target = $region41
  $region40: #{han_forward.2} parent=0 // pred_region
    _
  $region41: #{han_forward.2} parent=0 // pred_fallthru
    _
  // Predicated region
  $region42: #{han_forward.2} parent=0 // pred_check
    _
  $region43: #{han_forward.2} parent=0 // pred_check_branch
    %41 = sbr.rel (0) target = $region45
  $region44: #{han_forward.2} parent=0 // pred_region
    _
  $region45: #{han_forward.2} parent=0 // pred_fallthru
    _
  // Predicated region
  $region46: #{han_forward.2} parent=0 // pred_check
    _
  $region47: #{han_forward.2} parent=0 // pred_check_branch
    %43 = sbr.rel (0) target = $region49
  $region48: #{han_forward.2} parent=0 // pred_region
    _
  $region49: #{han_forward.2} parent=0 // pred_fallthru
    _
  // Predicated region
  $region50: #{han_forward.2} parent=0 // pred_check
    _
  $region51: #{han_forward.2} parent=0 // pred_check_branch
    %45 = sbr.rel (0) target = $region53
  $region52: #{han_forward.2} parent=0 // pred_region
    _
  $region53: #{han_forward.2} parent=0 // pred_fallthru
    _
  %v46 = vld [vmem:[%s1] sm:$0xff]
  %v47 = vld [vmem:[%s1 + $0x8] sm:$0xff]
  %v48 = vld [vmem:[%s1 + $0x10] sm:$0xff]
  %v49 = vld [vmem:[%s1 + $0x18] sm:$0xff]
  %v50 = vld [vmem:[%s1 + $0x20] sm:$0xff]
  %v51 = vld [vmem:[%s1 + $0x28] sm:$0xff]
  %v52 = vld [vmem:[%s1 + $0x30] sm:$0xff]
  %v53 = vld [vmem:[%s1 + $0x38] sm:$0xff]
  %v54 = vld [vmem:[%s0] sm:$0xff]
  %v55 = vld [vmem:[%s0 + $0x8] sm:$0xff]
  %v56 = vld [vmem:[%s0 + $0x10] sm:$0xff]
  %v57 = vld [vmem:[%s0 + $0x18] sm:$0xff]
  %v58 = vld [vmem:[%s0 + $0x20] sm:$0xff]
  %v59 = vld [vmem:[%s0 + $0x28] sm:$0xff]
  %v60 = vld [vmem:[%s0 + $0x30] sm:$0xff]
  %v61 = vld [vmem:[%s0 + $0x38] sm:$0xff]
  %v62 = vld [vmem:[%s2] sm:$0xff]
  %v63 = vld [vmem:[%s2 + $0x8] sm:$0xff]
  %v64 = vld [vmem:[%s2 + $0x10] sm:$0xff]
  %v65 = vld [vmem:[%s2 + $0x18] sm:$0xff]
  %v66 = vld [vmem:[%s2 + $0x20] sm:$0xff]
  %v67 = vld [vmem:[%s2 + $0x28] sm:$0xff]
  %v68 = vld [vmem:[%s2 + $0x30] sm:$0xff]
  %v69 = vld [vmem:[%s2 + $0x38] sm:$0xff]
  %v70 = vld [vmem:[%s3] sm:$0x3]
  %v72 = vperm.slane %v70, 0
  %v73 = vperm.slane %v70, 1
  %vm76 = vcmask 261120
  %v78 = vsel %vm76, %v54, 0
  %v81 = vsel %vm76, %v55, 0
  %v84 = vsel %vm76, %v56, 0
  %v87 = vsel %vm76, %v57, 0
  %v90 = vsel %vm76, %v58, 0
  %v93 = vsel %vm76, %v59, 0
  %v96 = vsel %vm76, %v60, 0
  %v99 = vsel %vm76, %v61, 0
  %101 = vmatpush.msra.mxu0 0.0
  %102 = vmatpush.msra.mxu0 0.0
  %103 = vmatpush.msra.mxu0 0.0
  %104 = vmatpush.msra.mxu0 0.0
  %105 = vmatpush.msra.mxu0 0.0
  %106 = vmatpush.msra.mxu0 0.0
  %107 = vmatpush.msra.mxu0 0.0
  %108 = vmatpush.msra.mxu0 0.0
  %109 = vmatpush.msra.mxu0 0.0
  %110 = vmatpush.msra.mxu0 0.0
  %111 = vmatpush.msra.mxu0 0.0
  %112 = vmatpush.msra.mxu0 0.0
  %113 = vmatpush.msra.mxu0 %v68
  %114 = vmatpush.msra.mxu0 %v66
  %115 = vmatpush.msra.mxu0 %v64
  %116 = vmatpush.msra.mxu0 %v62
  %117 = vmatmul.f32.gmra.mxu0 %v78
  %v118 = vpop.f32.mrf.mxu0
  %v119 = vadd.f32 %v72, %v118
  %120 = vmatmul.f32.gmra.mxu0 %v81
  %v121 = vpop.f32.mrf.mxu0
  %v122 = vadd.f32 %v72, %v121
  %123 = vmatmul.f32.gmra.mxu0 %v84
  %v124 = vpop.f32.mrf.mxu0
  %v125 = vadd.f32 %v72, %v124
  %126 = vmatmul.f32.gmra.mxu0 %v87
  %v127 = vpop.f32.mrf.mxu0
  %v128 = vadd.f32 %v72, %v127
  %129 = vmatmul.f32.gmra.mxu0 %v90
  %v130 = vpop.f32.mrf.mxu0
  %v131 = vadd.f32 %v72, %v130
  %132 = vmatmul.f32.gmra.mxu0 %v93
  %v133 = vpop.f32.mrf.mxu0
  %v134 = vadd.f32 %v72, %v133
  %135 = vmatmul.f32.gmra.mxu0 %v96
  %v136 = vpop.f32.mrf.mxu0
  %v137 = vadd.f32 %v72, %v136
  %138 = vmatmul.f32.gmra.mxu0 %v99
  %v139 = vpop.f32.mrf.mxu0
  %v140 = vadd.f32 %v72, %v139
  %141 = vdwg.mxu0
  %142 = vmatpush.msra.mxu0 0.0
  %143 = vmatpush.msra.mxu0 0.0
  %144 = vmatpush.msra.mxu0 0.0
  %145 = vmatpush.msra.mxu0 0.0
  %146 = vmatpush.msra.mxu0 0.0
  %147 = vmatpush.msra.mxu0 0.0
  %148 = vmatpush.msra.mxu0 0.0
  %149 = vmatpush.msra.mxu0 0.0
  %150 = vmatpush.msra.mxu0 0.0
  %151 = vmatpush.msra.mxu0 0.0
  %152 = vmatpush.msra.mxu0 0.0
  %153 = vmatpush.msra.mxu0 0.0
  %154 = vmatpush.msra.mxu0 %v69
  %155 = vmatpush.msra.mxu0 %v67
  %156 = vmatpush.msra.mxu0 %v65
  %157 = vmatpush.msra.mxu0 %v63
  %158 = vmatmul.f32.gmra.mxu0 %v78
  %v159 = vpop.f32.mrf.mxu0
  %v160 = vadd.f32 %v73, %v159
  %161 = vmatmul.f32.gmra.mxu0 %v81
  %v162 = vpop.f32.mrf.mxu0
  %v163 = vadd.f32 %v73, %v162
  %164 = vmatmul.f32.gmra.mxu0 %v84
  %v165 = vpop.f32.mrf.mxu0
  %v166 = vadd.f32 %v73, %v165
  %167 = vmatmul.f32.gmra.mxu0 %v87
  %v168 = vpop.f32.mrf.mxu0
  %v169 = vadd.f32 %v73, %v168
  %170 = vmatmul.f32.gmra.mxu0 %v90
  %v171 = vpop.f32.mrf.mxu0
  %v172 = vadd.f32 %v73, %v171
  %173 = vmatmul.f32.gmra.mxu0 %v93
  %v174 = vpop.f32.mrf.mxu0
  %v175 = vadd.f32 %v73, %v174
  %176 = vmatmul.f32.gmra.mxu0 %v96
  %v177 = vpop.f32.mrf.mxu0
  %v178 = vadd.f32 %v73, %v177
  %179 = vmatmul.f32.gmra.mxu0 %v99
  %v180 = vpop.f32.mrf.mxu0
  %v181 = vadd.f32 %v73, %v180
  %182 = vdwg.mxu0
  %191 = vrot.lane.b32.xlu0 %v140, 64
  %v192 = vpop.permute.xlu0 %191
  %193 = vrot.lane.b32.xlu0 %v137, 64
  %v194 = vpop.permute.xlu0 %193
  %195 = vrot.lane.b32.xlu0 %v134, 64
  %v196 = vpop.permute.xlu0 %195
  %197 = vrot.lane.b32.xlu0 %v131, 64
  %v198 = vpop.permute.xlu0 %197
  %199 = vrot.lane.b32.xlu0 %v128, 64
  %v200 = vpop.permute.xlu0 %199
  %201 = vrot.lane.b32.xlu0 %v125, 64
  %v202 = vpop.permute.xlu0 %201
  %203 = vrot.lane.b32.xlu0 %v122, 64
  %v204 = vpop.permute.xlu0 %203
  %205 = vrot.lane.b32.xlu0 %v119, 64
  %v206 = vpop.permute.xlu0 %205
  %v215 = vsel %vm76, %v119, %v192
  %v216 = vsel %vm76, %v122, %v194
  %v217 = vsel %vm76, %v125, %v196
  %v218 = vsel %vm76, %v128, %v198
  %v219 = vsel %vm76, %v131, %v200
  %v220 = vsel %vm76, %v134, %v202
  %v221 = vsel %vm76, %v137, %v204
  %v222 = vsel %vm76, %v140, %v206
  %223 = vrot.lane.b32.xlu0 %v119, 96
  %v224 = vpop.permute.xlu0 %223
  %225 = vrot.lane.b32.xlu0 %v122, 96
  %v226 = vpop.permute.xlu0 %225
  %227 = vrot.lane.b32.xlu0 %v125, 96
  %v228 = vpop.permute.xlu0 %227
  %229 = vrot.lane.b32.xlu0 %v128, 96
  %v230 = vpop.permute.xlu0 %229
  %231 = vrot.lane.b32.xlu0 %v131, 96
  %v232 = vpop.permute.xlu0 %231
  %233 = vrot.lane.b32.xlu0 %v134, 96
  %v234 = vpop.permute.xlu0 %233
  %235 = vrot.lane.b32.xlu0 %v137, 96
  %v236 = vpop.permute.xlu0 %235
  %237 = vrot.lane.b32.xlu0 %v140, 96
  %v238 = vpop.permute.xlu0 %237
  %255 = vrot.lane.b32.xlu0 %v181, 32
  %v256 = vpop.permute.xlu0 %255
  %257 = vrot.lane.b32.xlu0 %v178, 32
  %v258 = vpop.permute.xlu0 %257
  %259 = vrot.lane.b32.xlu0 %v175, 32
  %v260 = vpop.permute.xlu0 %259
  %261 = vrot.lane.b32.xlu0 %v172, 32
  %v262 = vpop.permute.xlu0 %261
  %263 = vrot.lane.b32.xlu0 %v169, 32
  %v264 = vpop.permute.xlu0 %263
  %265 = vrot.lane.b32.xlu0 %v166, 32
  %v266 = vpop.permute.xlu0 %265
  %267 = vrot.lane.b32.xlu0 %v163, 32
  %v268 = vpop.permute.xlu0 %267
  %269 = vrot.lane.b32.xlu0 %v160, 32
  %v270 = vpop.permute.xlu0 %269
  %v279 = vsel %vm76, %v224, %v256
  %v280 = vsel %vm76, %v226, %v258
  %v281 = vsel %vm76, %v228, %v260
  %v282 = vsel %vm76, %v230, %v262
  %v283 = vsel %vm76, %v232, %v264
  %v284 = vsel %vm76, %v234, %v266
  %v285 = vsel %vm76, %v236, %v268
  %v286 = vsel %vm76, %v238, %v270
  %v287 = vsel %vm76, %v206, %v181
  %v288 = vsel %vm76, %v204, %v178
  %v289 = vsel %vm76, %v202, %v175
  %v290 = vsel %vm76, %v200, %v172
  %v291 = vsel %vm76, %v198, %v169
  %v292 = vsel %vm76, %v196, %v166
  %v293 = vsel %vm76, %v194, %v163
  %v294 = vsel %vm76, %v192, %v160
  %v295 = vld [vmem:[%s4] sm:$0xff]
  %v296 = vld [vmem:[%s4 + $0x8] sm:$0xff]
  %v297 = vld [vmem:[%s4 + $0x10] sm:$0xff]
  %v298 = vld [vmem:[%s4 + $0x18] sm:$0xff]
  %v299 = vld [vmem:[%s4 + $0x20] sm:$0xff]
  %v300 = vld [vmem:[%s4 + $0x28] sm:$0xff]
  %v301 = vld [vmem:[%s4 + $0x30] sm:$0xff]
  %v302 = vld [vmem:[%s4 + $0x38] sm:$0xff]
  %v303 = vld [vmem:[%s4 + $0x40] sm:$0xff]
  %v304 = vld [vmem:[%s4 + $0x48] sm:$0xff]
  %v305 = vld [vmem:[%s4 + $0x50] sm:$0xff]
  %v306 = vld [vmem:[%s4 + $0x58] sm:$0xff]
  %v307 = vld [vmem:[%s4 + $0x60] sm:$0xff]
  %v308 = vld [vmem:[%s4 + $0x68] sm:$0xff]
  %v309 = vld [vmem:[%s4 + $0x70] sm:$0xff]
  %v310 = vld [vmem:[%s4 + $0x78] sm:$0xff]
  %v311 = vld [vmem:[%s5] sm:$0x1]
  %v313 = vperm.slane %v311, 0
  %vm315 = vcmask 523264
  %v317 = vsel %vm315, 0.0, 0
  %319 = vmatpush.msra.mxu0 0.0
  %320 = vmatpush.msra.mxu0 0.0
  %321 = vmatpush.msra.mxu0 0.0
  %322 = vmatpush.msra.mxu0 0.0
  %323 = vmatpush.msra.mxu0 0.0
  %324 = vmatpush.msra.mxu0 0.0
  %325 = vmatpush.msra.mxu0 0.0
  %326 = vmatpush.msra.mxu0 0.0
  %327 = vmatpush.msra.mxu0 %v309
  %328 = vmatpush.msra.mxu0 %v307
  %329 = vmatpush.msra.mxu0 %v305
  %330 = vmatpush.msra.mxu0 %v303
  %331 = vmatpush.msra.mxu0 %v301
  %332 = vmatpush.msra.mxu0 %v299
  %333 = vmatpush.msra.mxu0 %v297
  %334 = vmatpush.msra.mxu0 %v295
  %335 = vmatmul.f32.gmra.mxu0 %v317
  %v336 = vpop.f32.mrf.mxu0
  %v337 = vadd.f32 0.0, %v336
  %338 = vdwg.mxu0
  %339 = vmatpush.msra.mxu0 0.0
  %340 = vmatpush.msra.mxu0 0.0
  %341 = vmatpush.msra.mxu0 0.0
  %342 = vmatpush.msra.mxu0 0.0
  %343 = vmatpush.msra.mxu0 0.0
  %344 = vmatpush.msra.mxu0 0.0
  %345 = vmatpush.msra.mxu0 0.0
  %346 = vmatpush.msra.mxu0 0.0
  %347 = vmatpush.msra.mxu0 %v310
  %348 = vmatpush.msra.mxu0 %v308
  %349 = vmatpush.msra.mxu0 %v306
  %350 = vmatpush.msra.mxu0 %v304
  %351 = vmatpush.msra.mxu0 %v302
  %352 = vmatpush.msra.mxu0 %v300
  %353 = vmatpush.msra.mxu0 %v298
  %354 = vmatpush.msra.mxu0 %v296
  %355 = vmatmul.f32.gmra.mxu0 %v317
  %v356 = vpop.f32.mrf.mxu0
  %v357 = vadd.f32 0.0, %v356
  %358 = vdwg.mxu0
  %v359 = vadd.f32 %v215, %v337
  %v360 = vxor.u32 %v359, 2147483648
  %v361 = vmul.f32 %v360, 1.442695
  %v362 = vpow.pop %v361
  %v363 = vadd.f32 %v362, 1.0
  %v364 = vrcp.pop %v363
  %v365 = vmul.f32 %v363, %v364
  %v366 = vsub.f32 1.0, %v365
  %v367 = vmul.f32 %v364, %v366
  %v368 = vadd.f32 %v364, %v367
  %vm369 = vweird.f32 %v363
  %vm370 = vweird.f32 %v364
  %vm371 = vmor %vm369, %vm370
  %v372 = vsel %vm371, %v364, %v368
  %v373 = vand.u32 2147483647, %v363
  %vm374 = vcmp.eq.f32.partialorder %v373, 8.507059e+37
  %v375 = vand.u32 %v363, 2147483648
  %v376 = vor.u32 1.1754944e-38, %v375
  %v377 = vsel %vm374, %v376, %v372
  %v378 = vmul.f32 1.0, %v377
  %380 = vrot.lane.b32.xlu0 %v337, 64
  %v381 = vpop.permute.xlu0 %380
  %v383 = vadd.f32 %v279, %v381
  %v384 = vxor.u32 %v383, 2147483648
  %v385 = vmul.f32 %v384, 1.442695
  %v386 = vpow.pop %v385
  %v387 = vadd.f32 %v386, 1.0
  %v388 = vrcp.pop %v387
  %v389 = vmul.f32 %v387, %v388
  %v390 = vsub.f32 1.0, %v389
  %v391 = vmul.f32 %v388, %v390
  %v392 = vadd.f32 %v388, %v391
  %vm393 = vweird.f32 %v387
  %vm394 = vweird.f32 %v388
  %vm395 = vmor %vm393, %vm394
  %v396 = vsel %vm395, %v388, %v392
  %v397 = vand.u32 2147483647, %v387
  %vm398 = vcmp.eq.f32.partialorder %v397, 8.507059e+37
  %v399 = vand.u32 %v387, 2147483648
  %v400 = vor.u32 1.1754944e-38, %v399
  %v401 = vsel %vm398, %v400, %v396
  %v402 = vmul.f32 1.0, %v401
  %v403 = vadd.f32 %v357, %v313
  %v404 = vmul.f32 %v378, %v403
  %v405 = vadd.f32 %v287, %v404
  %v406 = vtanh.pop %v405
  %v407 = vsub.f32 0.0, %v406
  %v408 = vmul.f32 %v402, %v407
  %v409 = vadd.f32 %v406, %v408
  %v410 = vmul.f32 %v46, %v409
  %v411 = vadd.f32 %v410, 0.0
  %412 = vst.msk [vmem:[#allocation2] sm:$0xff] %vm76, %v410
  %s413 = scalar_lea.vmem [#allocation2], 56
  %vm414 = vcmask 523520
  %415 = vst.msk [vmem:[%s413] sm:$0xff] %vm414, %v410
  %v417 = vsel %vm315, %v411, 0
  %419 = vmatpush.msra.mxu0 0.0
  %420 = vmatpush.msra.mxu0 0.0
  %421 = vmatpush.msra.mxu0 0.0
  %422 = vmatpush.msra.mxu0 0.0
  %423 = vmatpush.msra.mxu0 0.0
  %424 = vmatpush.msra.mxu0 0.0
  %425 = vmatpush.msra.mxu0 0.0
  %426 = vmatpush.msra.mxu0 0.0
  %427 = vmatpush.msra.mxu0 %v309
  %428 = vmatpush.msra.mxu0 %v307
  %429 = vmatpush.msra.mxu0 %v305
  %430 = vmatpush.msra.mxu0 %v303
  %431 = vmatpush.msra.mxu0 %v301
  %432 = vmatpush.msra.mxu0 %v299
  %433 = vmatpush.msra.mxu0 %v297
  %434 = vmatpush.msra.mxu0 %v295
  %435 = vmatmul.f32.gmra.mxu0 %v417
  %v436 = vpop.f32.mrf.mxu0
  %v437 = vadd.f32 0.0, %v436
  %438 = vdwg.mxu0
  %439 = vmatpush.msra.mxu0 0.0
  %440 = vmatpush.msra.mxu0 0.0
  %441 = vmatpush.msra.mxu0 0.0
  %442 = vmatpush.msra.mxu0 0.0
  %443 = vmatpush.msra.mxu0 0.0
  %444 = vmatpush.msra.mxu0 0.0
  %445 = vmatpush.msra.mxu0 0.0
  %446 = vmatpush.msra.mxu0 0.0
  %447 = vmatpush.msra.mxu0 %v310
  %448 = vmatpush.msra.mxu0 %v308
  %449 = vmatpush.msra.mxu0 %v306
  %450 = vmatpush.msra.mxu0 %v304
  %451 = vmatpush.msra.mxu0 %v302
  %452 = vmatpush.msra.mxu0 %v300
  %453 = vmatpush.msra.mxu0 %v298
  %454 = vmatpush.msra.mxu0 %v296
  %455 = vmatmul.f32.gmra.mxu0 %v417
  %v456 = vpop.f32.mrf.mxu0
  %v457 = vadd.f32 0.0, %v456
  %458 = vdwg.mxu0
  %v459 = vadd.f32 %v216, %v437
  %v460 = vxor.u32 %v459, 2147483648
  %v461 = vmul.f32 %v460, 1.442695
  %v462 = vpow.pop %v461
  %v463 = vadd.f32 %v462, 1.0
  %v464 = vrcp.pop %v463
  %v465 = vmul.f32 %v463, %v464
  %v466 = vsub.f32 1.0, %v465
  %v467 = vmul.f32 %v464, %v466
  %v468 = vadd.f32 %v464, %v467
  %vm469 = vweird.f32 %v463
  %vm470 = vweird.f32 %v464
  %vm471 = vmor %vm469, %vm470
  %v472 = vsel %vm471, %v464, %v468
  %v473 = vand.u32 2147483647, %v463
  %vm474 = vcmp.eq.f32.partialorder %v473, 8.507059e+37
  %v475 = vand.u32 %v463, 2147483648
  %v476 = vor.u32 1.1754944e-38, %v475
  %v477 = vsel %vm474, %v476, %v472
  %v478 = vmul.f32 1.0, %v477
  %480 = vrot.lane.b32.xlu0 %v437, 64
  %v481 = vpop.permute.xlu0 %480
  %v483 = vadd.f32 %v280, %v481
  %v484 = vxor.u32 %v483, 2147483648
  %v485 = vmul.f32 %v484, 1.442695
  %v486 = vpow.pop %v485
  %v487 = vadd.f32 %v486, 1.0
  %v488 = vrcp.pop %v487
  %v489 = vmul.f32 %v487, %v488
  %v490 = vsub.f32 1.0, %v489
  %v491 = vmul.f32 %v488, %v490
  %v492 = vadd.f32 %v488, %v491
  %vm493 = vweird.f32 %v487
  %vm494 = vweird.f32 %v488
  %vm495 = vmor %vm493, %vm494
  %v496 = vsel %vm495, %v488, %v492
  %v497 = vand.u32 2147483647, %v487
  %vm498 = vcmp.eq.f32.partialorder %v497, 8.507059e+37
  %v499 = vand.u32 %v487, 2147483648
  %v500 = vor.u32 1.1754944e-38, %v499
  %v501 = vsel %vm498, %v500, %v496
  %v502 = vmul.f32 1.0, %v501
  %v503 = vadd.f32 %v457, %v313
  %v504 = vmul.f32 %v478, %v503
  %v505 = vadd.f32 %v288, %v504
  %v506 = vtanh.pop %v505
  %v507 = vsub.f32 %v411, %v506
  %v508 = vmul.f32 %v502, %v507
  %v509 = vadd.f32 %v506, %v508
  %v510 = vmul.f32 %v47, %v509
  %v511 = vsub.f32 %v509, %v411
  %v512 = vmul.f32 %v47, %v511
  %v513 = vadd.f32 %v411, %v512
  %s514 = scalar_lea.vmem [#allocation2], 8
  %515 = vst.msk [vmem:[%s514] sm:$0xff] %vm76, %v510
  %s516 = scalar_lea.vmem [#allocation2], 48
  %517 = vst.msk [vmem:[%s516] sm:$0xff] %vm414, %v510
  %v519 = vsel %vm315, %v513, 0
  %521 = vmatpush.msra.mxu0 0.0
  %522 = vmatpush.msra.mxu0 0.0
  %523 = vmatpush.msra.mxu0 0.0
  %524 = vmatpush.msra.mxu0 0.0
  %525 = vmatpush.msra.mxu0 0.0
  %526 = vmatpush.msra.mxu0 0.0
  %527 = vmatpush.msra.mxu0 0.0
  %528 = vmatpush.msra.mxu0 0.0
  %529 = vmatpush.msra.mxu0 %v309
  %530 = vmatpush.msra.mxu0 %v307
  %531 = vmatpush.msra.mxu0 %v305
  %532 = vmatpush.msra.mxu0 %v303
  %533 = vmatpush.msra.mxu0 %v301
  %534 = vmatpush.msra.mxu0 %v299
  %535 = vmatpush.msra.mxu0 %v297
  %536 = vmatpush.msra.mxu0 %v295
  %537 = vmatmul.f32.gmra.mxu0 %v519
  %v538 = vpop.f32.mrf.mxu0
  %v539 = vadd.f32 0.0, %v538
  %540 = vdwg.mxu0
  %541 = vmatpush.msra.mxu0 0.0
  %542 = vmatpush.msra.mxu0 0.0
  %543 = vmatpush.msra.mxu0 0.0
  %544 = vmatpush.msra.mxu0 0.0
  %545 = vmatpush.msra.mxu0 0.0
  %546 = vmatpush.msra.mxu0 0.0
  %547 = vmatpush.msra.mxu0 0.0
  %548 = vmatpush.msra.mxu0 0.0
  %549 = vmatpush.msra.mxu0 %v310
  %550 = vmatpush.msra.mxu0 %v308
  %551 = vmatpush.msra.mxu0 %v306
  %552 = vmatpush.msra.mxu0 %v304
  %553 = vmatpush.msra.mxu0 %v302
  %554 = vmatpush.msra.mxu0 %v300
  %555 = vmatpush.msra.mxu0 %v298
  %556 = vmatpush.msra.mxu0 %v296
  %557 = vmatmul.f32.gmra.mxu0 %v519
  %v558 = vpop.f32.mrf.mxu0
  %v559 = vadd.f32 0.0, %v558
  %560 = vdwg.mxu0
  %v561 = vadd.f32 %v217, %v539
  %v562 = vxor.u32 %v561, 2147483648
  %v563 = vmul.f32 %v562, 1.442695
  %v564 = vpow.pop %v563
  %v565 = vadd.f32 %v564, 1.0
  %v566 = vrcp.pop %v565
  %v567 = vmul.f32 %v565, %v566
  %v568 = vsub.f32 1.0, %v567
  %v569 = vmul.f32 %v566, %v568
  %v570 = vadd.f32 %v566, %v569
  %vm571 = vweird.f32 %v565
  %vm572 = vweird.f32 %v566
  %vm573 = vmor %vm571, %vm572
  %v574 = vsel %vm573, %v566, %v570
  %v575 = vand.u32 2147483647, %v565
  %vm576 = vcmp.eq.f32.partialorder %v575, 8.507059e+37
  %v577 = vand.u32 %v565, 2147483648
  %v578 = vor.u32 1.1754944e-38, %v577
  %v579 = vsel %vm576, %v578, %v574
  %v580 = vmul.f32 1.0, %v579
  %582 = vrot.lane.b32.xlu0 %v539, 64
  %v583 = vpop.permute.xlu0 %582
  %v585 = vadd.f32 %v281, %v583
  %v586 = vxor.u32 %v585, 2147483648
  %v587 = vmul.f32 %v586, 1.442695
  %v588 = vpow.pop %v587
  %v589 = vadd.f32 %v588, 1.0
  %v590 = vrcp.pop %v589
  %v591 = vmul.f32 %v589, %v590
  %v592 = vsub.f32 1.0, %v591
  %v593 = vmul.f32 %v590, %v592
  %v594 = vadd.f32 %v590, %v593
  %vm595 = vweird.f32 %v589
  %vm596 = vweird.f32 %v590
  %vm597 = vmor %vm595, %vm596
  %v598 = vsel %vm597, %v590, %v594
  %v599 = vand.u32 2147483647, %v589
  %vm600 = vcmp.eq.f32.partialorder %v599, 8.507059e+37
  %v601 = vand.u32 %v589, 2147483648
  %v602 = vor.u32 1.1754944e-38, %v601
  %v603 = vsel %vm600, %v602, %v598
  %v604 = vmul.f32 1.0, %v603
  %v605 = vadd.f32 %v559, %v313
  %v606 = vmul.f32 %v580, %v605
  %v607 = vadd.f32 %v289, %v606
  %v608 = vtanh.pop %v607
  %v609 = vsub.f32 %v513, %v608
  %v610 = vmul.f32 %v604, %v609
  %v611 = vadd.f32 %v608, %v610
  %v612 = vmul.f32 %v48, %v611
  %v613 = vsub.f32 %v611, %v513
  %v614 = vmul.f32 %v48, %v613
  %v615 = vadd.f32 %v513, %v614
  %s616 = scalar_lea.vmem [#allocation2], 16
  %617 = vst.msk [vmem:[%s616] sm:$0xff] %vm76, %v612
  %s618 = scalar_lea.vmem [#allocation2], 40
  %619 = vst.msk [vmem:[%s618] sm:$0xff] %vm414, %v612
  %v621 = vsel %vm315, %v615, 0
  %623 = vmatpush.msra.mxu0 0.0
  %624 = vmatpush.msra.mxu0 0.0
  %625 = vmatpush.msra.mxu0 0.0
  %626 = vmatpush.msra.mxu0 0.0
  %627 = vmatpush.msra.mxu0 0.0
  %628 = vmatpush.msra.mxu0 0.0
  %629 = vmatpush.msra.mxu0 0.0
  %630 = vmatpush.msra.mxu0 0.0
  %631 = vmatpush.msra.mxu0 %v309
  %632 = vmatpush.msra.mxu0 %v307
  %633 = vmatpush.msra.mxu0 %v305
  %634 = vmatpush.msra.mxu0 %v303
  %635 = vmatpush.msra.mxu0 %v301
  %636 = vmatpush.msra.mxu0 %v299
  %637 = vmatpush.msra.mxu0 %v297
  %638 = vmatpush.msra.mxu0 %v295
  %639 = vmatmul.f32.gmra.mxu0 %v621
  %v640 = vpop.f32.mrf.mxu0
  %v641 = vadd.f32 0.0, %v640
  %642 = vdwg.mxu0
  %643 = vmatpush.msra.mxu0 0.0
  %644 = vmatpush.msra.mxu0 0.0
  %645 = vmatpush.msra.mxu0 0.0
  %646 = vmatpush.msra.mxu0 0.0
  %647 = vmatpush.msra.mxu0 0.0
  %648 = vmatpush.msra.mxu0 0.0
  %649 = vmatpush.msra.mxu0 0.0
  %650 = vmatpush.msra.mxu0 0.0
  %651 = vmatpush.msra.mxu0 %v310
  %652 = vmatpush.msra.mxu0 %v308
  %653 = vmatpush.msra.mxu0 %v306
  %654 = vmatpush.msra.mxu0 %v304
  %655 = vmatpush.msra.mxu0 %v302
  %656 = vmatpush.msra.mxu0 %v300
  %657 = vmatpush.msra.mxu0 %v298
  %658 = vmatpush.msra.mxu0 %v296
  %659 = vmatmul.f32.gmra.mxu0 %v621
  %v660 = vpop.f32.mrf.mxu0
  %v661 = vadd.f32 0.0, %v660
  %662 = vdwg.mxu0
  %v663 = vadd.f32 %v218, %v641
  %v664 = vxor.u32 %v663, 2147483648
  %v665 = vmul.f32 %v664, 1.442695
  %v666 = vpow.pop %v665
  %v667 = vadd.f32 %v666, 1.0
  %v668 = vrcp.pop %v667
  %v669 = vmul.f32 %v667, %v668
  %v670 = vsub.f32 1.0, %v669
  %v671 = vmul.f32 %v668, %v670
  %v672 = vadd.f32 %v668, %v671
  %vm673 = vweird.f32 %v667
  %vm674 = vweird.f32 %v668
  %vm675 = vmor %vm673, %vm674
  %v676 = vsel %vm675, %v668, %v672
  %v677 = vand.u32 2147483647, %v667
  %vm678 = vcmp.eq.f32.partialorder %v677, 8.507059e+37
  %v679 = vand.u32 %v667, 2147483648
  %v680 = vor.u32 1.1754944e-38, %v679
  %v681 = vsel %vm678, %v680, %v676
  %v682 = vmul.f32 1.0, %v681
  %684 = vrot.lane.b32.xlu0 %v641, 64
  %v685 = vpop.permute.xlu0 %684
  %v687 = vadd.f32 %v282, %v685
  %v688 = vxor.u32 %v687, 2147483648
  %v689 = vmul.f32 %v688, 1.442695
  %v690 = vpow.pop %v689
  %v691 = vadd.f32 %v690, 1.0
  %v692 = vrcp.pop %v691
  %v693 = vmul.f32 %v691, %v692
  %v694 = vsub.f32 1.0, %v693
  %v695 = vmul.f32 %v692, %v694
  %v696 = vadd.f32 %v692, %v695
  %vm697 = vweird.f32 %v691
  %vm698 = vweird.f32 %v692
  %vm699 = vmor %vm697, %vm698
  %v700 = vsel %vm699, %v692, %v696
  %v701 = vand.u32 2147483647, %v691
  %vm702 = vcmp.eq.f32.partialorder %v701, 8.507059e+37
  %v703 = vand.u32 %v691, 2147483648
  %v704 = vor.u32 1.1754944e-38, %v703
  %v705 = vsel %vm702, %v704, %v700
  %v706 = vmul.f32 1.0, %v705
  %v707 = vadd.f32 %v661, %v313
  %v708 = vmul.f32 %v682, %v707
  %v709 = vadd.f32 %v290, %v708
  %v710 = vtanh.pop %v709
  %v711 = vsub.f32 %v615, %v710
  %v712 = vmul.f32 %v706, %v711
  %v713 = vadd.f32 %v710, %v712
  %v714 = vmul.f32 %v49, %v713
  %v715 = vsub.f32 %v713, %v615
  %v716 = vmul.f32 %v49, %v715
  %v717 = vadd.f32 %v615, %v716
  %s718 = scalar_lea.vmem [#allocation2], 24
  %719 = vst.msk [vmem:[%s718] sm:$0xff] %vm76, %v714
  %s720 = scalar_lea.vmem [#allocation2], 32
  %721 = vst.msk [vmem:[%s720] sm:$0xff] %vm414, %v714
  %v723 = vsel %vm315, %v717, 0
  %725 = vmatpush.msra.mxu0 0.0
  %726 = vmatpush.msra.mxu0 0.0
  %727 = vmatpush.msra.mxu0 0.0
  %728 = vmatpush.msra.mxu0 0.0
  %729 = vmatpush.msra.mxu0 0.0
  %730 = vmatpush.msra.mxu0 0.0
  %731 = vmatpush.msra.mxu0 0.0
  %732 = vmatpush.msra.mxu0 0.0
  %733 = vmatpush.msra.mxu0 %v309
  %734 = vmatpush.msra.mxu0 %v307
  %735 = vmatpush.msra.mxu0 %v305
  %736 = vmatpush.msra.mxu0 %v303
  %737 = vmatpush.msra.mxu0 %v301
  %738 = vmatpush.msra.mxu0 %v299
  %739 = vmatpush.msra.mxu0 %v297
  %740 = vmatpush.msra.mxu0 %v295
  %741 = vmatmul.f32.gmra.mxu0 %v723
  %v742 = vpop.f32.mrf.mxu0
  %v743 = vadd.f32 0.0, %v742
  %744 = vdwg.mxu0
  %745 = vmatpush.msra.mxu0 0.0
  %746 = vmatpush.msra.mxu0 0.0
  %747 = vmatpush.msra.mxu0 0.0
  %748 = vmatpush.msra.mxu0 0.0
  %749 = vmatpush.msra.mxu0 0.0
  %750 = vmatpush.msra.mxu0 0.0
  %751 = vmatpush.msra.mxu0 0.0
  %752 = vmatpush.msra.mxu0 0.0
  %753 = vmatpush.msra.mxu0 %v310
  %754 = vmatpush.msra.mxu0 %v308
  %755 = vmatpush.msra.mxu0 %v306
  %756 = vmatpush.msra.mxu0 %v304
  %757 = vmatpush.msra.mxu0 %v302
  %758 = vmatpush.msra.mxu0 %v300
  %759 = vmatpush.msra.mxu0 %v298
  %760 = vmatpush.msra.mxu0 %v296
  %761 = vmatmul.f32.gmra.mxu0 %v723
  %v762 = vpop.f32.mrf.mxu0
  %v763 = vadd.f32 0.0, %v762
  %764 = vdwg.mxu0
  %v765 = vadd.f32 %v219, %v743
  %v766 = vxor.u32 %v765, 2147483648
  %v767 = vmul.f32 %v766, 1.442695
  %v768 = vpow.pop %v767
  %v769 = vadd.f32 %v768, 1.0
  %v770 = vrcp.pop %v769
  %v771 = vmul.f32 %v769, %v770
  %v772 = vsub.f32 1.0, %v771
  %v773 = vmul.f32 %v770, %v772
  %v774 = vadd.f32 %v770, %v773
  %vm775 = vweird.f32 %v769
  %vm776 = vweird.f32 %v770
  %vm777 = vmor %vm775, %vm776
  %v778 = vsel %vm777, %v770, %v774
  %v779 = vand.u32 2147483647, %v769
  %vm780 = vcmp.eq.f32.partialorder %v779, 8.507059e+37
  %v781 = vand.u32 %v769, 2147483648
  %v782 = vor.u32 1.1754944e-38, %v781
  %v783 = vsel %vm780, %v782, %v778
  %v784 = vmul.f32 1.0, %v783
  %786 = vrot.lane.b32.xlu0 %v743, 64
  %v787 = vpop.permute.xlu0 %786
  %v789 = vadd.f32 %v283, %v787
  %v790 = vxor.u32 %v789, 2147483648
  %v791 = vmul.f32 %v790, 1.442695
  %v792 = vpow.pop %v791
  %v793 = vadd.f32 %v792, 1.0
  %v794 = vrcp.pop %v793
  %v795 = vmul.f32 %v793, %v794
  %v796 = vsub.f32 1.0, %v795
  %v797 = vmul.f32 %v794, %v796
  %v798 = vadd.f32 %v794, %v797
  %vm799 = vweird.f32 %v793
  %vm800 = vweird.f32 %v794
  %vm801 = vmor %vm799, %vm800
  %v802 = vsel %vm801, %v794, %v798
  %v803 = vand.u32 2147483647, %v793
  %vm804 = vcmp.eq.f32.partialorder %v803, 8.507059e+37
  %v805 = vand.u32 %v793, 2147483648
  %v806 = vor.u32 1.1754944e-38, %v805
  %v807 = vsel %vm804, %v806, %v802
  %v808 = vmul.f32 1.0, %v807
  %v809 = vadd.f32 %v763, %v313
  %v810 = vmul.f32 %v784, %v809
  %v811 = vadd.f32 %v291, %v810
  %v812 = vtanh.pop %v811
  %v813 = vsub.f32 %v717, %v812
  %v814 = vmul.f32 %v808, %v813
  %v815 = vadd.f32 %v812, %v814
  %v816 = vmul.f32 %v50, %v815
  %v817 = vsub.f32 %v815, %v717
  %v818 = vmul.f32 %v50, %v817
  %v819 = vadd.f32 %v717, %v818
  %820 = vst.msk [vmem:[%s720] sm:$0xff] %vm76, %v816
  %821 = vst.msk [vmem:[%s718] sm:$0xff] %vm414, %v816
  %v823 = vsel %vm315, %v819, 0
  %825 = vmatpush.msra.mxu0 0.0
  %826 = vmatpush.msra.mxu0 0.0
  %827 = vmatpush.msra.mxu0 0.0
  %828 = vmatpush.msra.mxu0 0.0
  %829 = vmatpush.msra.mxu0 0.0
  %830 = vmatpush.msra.mxu0 0.0
  %831 = vmatpush.msra.mxu0 0.0
  %832 = vmatpush.msra.mxu0 0.0
  %833 = vmatpush.msra.mxu0 %v309
  %834 = vmatpush.msra.mxu0 %v307
  %835 = vmatpush.msra.mxu0 %v305
  %836 = vmatpush.msra.mxu0 %v303
  %837 = vmatpush.msra.mxu0 %v301
  %838 = vmatpush.msra.mxu0 %v299
  %839 = vmatpush.msra.mxu0 %v297
  %840 = vmatpush.msra.mxu0 %v295
  %841 = vmatmul.f32.gmra.mxu0 %v823
  %v842 = vpop.f32.mrf.mxu0
  %v843 = vadd.f32 0.0, %v842
  %844 = vdwg.mxu0
  %845 = vmatpush.msra.mxu0 0.0
  %846 = vmatpush.msra.mxu0 0.0
  %847 = vmatpush.msra.mxu0 0.0
  %848 = vmatpush.msra.mxu0 0.0
  %849 = vmatpush.msra.mxu0 0.0
  %850 = vmatpush.msra.mxu0 0.0
  %851 = vmatpush.msra.mxu0 0.0
  %852 = vmatpush.msra.mxu0 0.0
  %853 = vmatpush.msra.mxu0 %v310
  %854 = vmatpush.msra.mxu0 %v308
  %855 = vmatpush.msra.mxu0 %v306
  %856 = vmatpush.msra.mxu0 %v304
  %857 = vmatpush.msra.mxu0 %v302
  %858 = vmatpush.msra.mxu0 %v300
  %859 = vmatpush.msra.mxu0 %v298
  %860 = vmatpush.msra.mxu0 %v296
  %861 = vmatmul.f32.gmra.mxu0 %v823
  %v862 = vpop.f32.mrf.mxu0
  %v863 = vadd.f32 0.0, %v862
  %864 = vdwg.mxu0
  %v865 = vadd.f32 %v220, %v843
  %v866 = vxor.u32 %v865, 2147483648
  %v867 = vmul.f32 %v866, 1.442695
  %v868 = vpow.pop %v867
  %v869 = vadd.f32 %v868, 1.0
  %v870 = vrcp.pop %v869
  %v871 = vmul.f32 %v869, %v870
  %v872 = vsub.f32 1.0, %v871
  %v873 = vmul.f32 %v870, %v872
  %v874 = vadd.f32 %v870, %v873
  %vm875 = vweird.f32 %v869
  %vm876 = vweird.f32 %v870
  %vm877 = vmor %vm875, %vm876
  %v878 = vsel %vm877, %v870, %v874
  %v879 = vand.u32 2147483647, %v869
  %vm880 = vcmp.eq.f32.partialorder %v879, 8.507059e+37
  %v881 = vand.u32 %v869, 2147483648
  %v882 = vor.u32 1.1754944e-38, %v881
  %v883 = vsel %vm880, %v882, %v878
  %v884 = vmul.f32 1.0, %v883
  %886 = vrot.lane.b32.xlu0 %v843, 64
  %v887 = vpop.permute.xlu0 %886
  %v889 = vadd.f32 %v284, %v887
  %v890 = vxor.u32 %v889, 2147483648
  %v891 = vmul.f32 %v890, 1.442695
  %v892 = vpow.pop %v891
  %v893 = vadd.f32 %v892, 1.0
  %v894 = vrcp.pop %v893
  %v895 = vmul.f32 %v893, %v894
  %v896 = vsub.f32 1.0, %v895
  %v897 = vmul.f32 %v894, %v896
  %v898 = vadd.f32 %v894, %v897
  %vm899 = vweird.f32 %v893
  %vm900 = vweird.f32 %v894
  %vm901 = vmor %vm899, %vm900
  %v902 = vsel %vm901, %v894, %v898
  %v903 = vand.u32 2147483647, %v893
  %vm904 = vcmp.eq.f32.partialorder %v903, 8.507059e+37
  %v905 = vand.u32 %v893, 2147483648
  %v906 = vor.u32 1.1754944e-38, %v905
  %v907 = vsel %vm904, %v906, %v902
  %v908 = vmul.f32 1.0, %v907
  %v909 = vadd.f32 %v863, %v313
  %v910 = vmul.f32 %v884, %v909
  %v911 = vadd.f32 %v292, %v910
  %v912 = vtanh.pop %v911
  %v913 = vsub.f32 %v819, %v912
  %v914 = vmul.f32 %v908, %v913
  %v915 = vadd.f32 %v912, %v914
  %v916 = vmul.f32 %v51, %v915
  %v917 = vsub.f32 %v915, %v819
  %v918 = vmul.f32 %v51, %v917
  %v919 = vadd.f32 %v819, %v918
  %920 = vst.msk [vmem:[%s618] sm:$0xff] %vm76, %v916
  %921 = vst.msk [vmem:[%s616] sm:$0xff] %vm414, %v916
  %v923 = vsel %vm315, %v919, 0
  %925 = vmatpush.msra.mxu0 0.0
  %926 = vmatpush.msra.mxu0 0.0
  %927 = vmatpush.msra.mxu0 0.0
  %928 = vmatpush.msra.mxu0 0.0
  %929 = vmatpush.msra.mxu0 0.0
  %930 = vmatpush.msra.mxu0 0.0
  %931 = vmatpush.msra.mxu0 0.0
  %932 = vmatpush.msra.mxu0 0.0
  %933 = vmatpush.msra.mxu0 %v309
  %934 = vmatpush.msra.mxu0 %v307
  %935 = vmatpush.msra.mxu0 %v305
  %936 = vmatpush.msra.mxu0 %v303
  %937 = vmatpush.msra.mxu0 %v301
  %938 = vmatpush.msra.mxu0 %v299
  %939 = vmatpush.msra.mxu0 %v297
  %940 = vmatpush.msra.mxu0 %v295
  %941 = vmatmul.f32.gmra.mxu0 %v923
  %v942 = vpop.f32.mrf.mxu0
  %v943 = vadd.f32 0.0, %v942
  %944 = vdwg.mxu0
  %945 = vmatpush.msra.mxu0 0.0
  %946 = vmatpush.msra.mxu0 0.0
  %947 = vmatpush.msra.mxu0 0.0
  %948 = vmatpush.msra.mxu0 0.0
  %949 = vmatpush.msra.mxu0 0.0
  %950 = vmatpush.msra.mxu0 0.0
  %951 = vmatpush.msra.mxu0 0.0
  %952 = vmatpush.msra.mxu0 0.0
  %953 = vmatpush.msra.mxu0 %v310
  %954 = vmatpush.msra.mxu0 %v308
  %955 = vmatpush.msra.mxu0 %v306
  %956 = vmatpush.msra.mxu0 %v304
  %957 = vmatpush.msra.mxu0 %v302
  %958 = vmatpush.msra.mxu0 %v300
  %959 = vmatpush.msra.mxu0 %v298
  %960 = vmatpush.msra.mxu0 %v296
  %961 = vmatmul.f32.gmra.mxu0 %v923
  %v962 = vpop.f32.mrf.mxu0
  %v963 = vadd.f32 0.0, %v962
  %964 = vdwg.mxu0
  %v965 = vadd.f32 %v221, %v943
  %v966 = vxor.u32 %v965, 2147483648
  %v967 = vmul.f32 %v966, 1.442695
  %v968 = vpow.pop %v967
  %v969 = vadd.f32 %v968, 1.0
  %v970 = vrcp.pop %v969
  %v971 = vmul.f32 %v969, %v970
  %v972 = vsub.f32 1.0, %v971
  %v973 = vmul.f32 %v970, %v972
  %v974 = vadd.f32 %v970, %v973
  %vm975 = vweird.f32 %v969
  %vm976 = vweird.f32 %v970
  %vm977 = vmor %vm975, %vm976
  %v978 = vsel %vm977, %v970, %v974
  %v979 = vand.u32 2147483647, %v969
  %vm980 = vcmp.eq.f32.partialorder %v979, 8.507059e+37
  %v981 = vand.u32 %v969, 2147483648
  %v982 = vor.u32 1.1754944e-38, %v981
  %v983 = vsel %vm980, %v982, %v978
  %v984 = vmul.f32 1.0, %v983
  %986 = vrot.lane.b32.xlu0 %v943, 64
  %v987 = vpop.permute.xlu0 %986
  %v989 = vadd.f32 %v285, %v987
  %v990 = vxor.u32 %v989, 2147483648
  %v991 = vmul.f32 %v990, 1.442695
  %v992 = vpow.pop %v991
  %v993 = vadd.f32 %v992, 1.0
  %v994 = vrcp.pop %v993
  %v995 = vmul.f32 %v993, %v994
  %v996 = vsub.f32 1.0, %v995
  %v997 = vmul.f32 %v994, %v996
  %v998 = vadd.f32 %v994, %v997
  %vm999 = vweird.f32 %v993
  %vm1000 = vweird.f32 %v994
  %vm1001 = vmor %vm999, %vm1000
  %v1002 = vsel %vm1001, %v994, %v998
  %v1003 = vand.u32 2147483647, %v993
  %vm1004 = vcmp.eq.f32.partialorder %v1003, 8.507059e+37
  %v1005 = vand.u32 %v993, 2147483648
  %v1006 = vor.u32 1.1754944e-38, %v1005
  %v1007 = vsel %vm1004, %v1006, %v1002
  %v1008 = vmul.f32 1.0, %v1007
  %v1009 = vadd.f32 %v963, %v313
  %v1010 = vmul.f32 %v984, %v1009
  %v1011 = vadd.f32 %v293, %v1010
  %v1012 = vtanh.pop %v1011
  %v1013 = vsub.f32 %v919, %v1012
  %v1014 = vmul.f32 %v1008, %v1013
  %v1015 = vadd.f32 %v1012, %v1014
  %v1016 = vmul.f32 %v52, %v1015
  %v1017 = vsub.f32 %v1015, %v919
  %v1018 = vmul.f32 %v52, %v1017
  %v1019 = vadd.f32 %v919, %v1018
  %1020 = vst.msk [vmem:[%s516] sm:$0xff] %vm76, %v1016
  %1021 = vst.msk [vmem:[%s514] sm:$0xff] %vm414, %v1016
  %v1023 = vsel %vm315, %v1019, 0
  %1025 = vmatpush.msra.mxu0 0.0
  %1026 = vmatpush.msra.mxu0 0.0
  %1027 = vmatpush.msra.mxu0 0.0
  %1028 = vmatpush.msra.mxu0 0.0
  %1029 = vmatpush.msra.mxu0 0.0
  %1030 = vmatpush.msra.mxu0 0.0
  %1031 = vmatpush.msra.mxu0 0.0
  %1032 = vmatpush.msra.mxu0 0.0
  %1033 = vmatpush.msra.mxu0 %v309
  %1034 = vmatpush.msra.mxu0 %v307
  %1035 = vmatpush.msra.mxu0 %v305
  %1036 = vmatpush.msra.mxu0 %v303
  %1037 = vmatpush.msra.mxu0 %v301
  %1038 = vmatpush.msra.mxu0 %v299
  %1039 = vmatpush.msra.mxu0 %v297
  %1040 = vmatpush.msra.mxu0 %v295
  %1041 = vmatmul.f32.gmra.mxu0 %v1023
  %v1042 = vpop.f32.mrf.mxu0
  %v1043 = vadd.f32 0.0, %v1042
  %1044 = vdwg.mxu0
  %1045 = vmatpush.msra.mxu0 0.0
  %1046 = vmatpush.msra.mxu0 0.0
  %1047 = vmatpush.msra.mxu0 0.0
  %1048 = vmatpush.msra.mxu0 0.0
  %1049 = vmatpush.msra.mxu0 0.0
  %1050 = vmatpush.msra.mxu0 0.0
  %1051 = vmatpush.msra.mxu0 0.0
  %1052 = vmatpush.msra.mxu0 0.0
  %1053 = vmatpush.msra.mxu0 %v310
  %1054 = vmatpush.msra.mxu0 %v308
  %1055 = vmatpush.msra.mxu0 %v306
  %1056 = vmatpush.msra.mxu0 %v304
  %1057 = vmatpush.msra.mxu0 %v302
  %1058 = vmatpush.msra.mxu0 %v300
  %1059 = vmatpush.msra.mxu0 %v298
  %1060 = vmatpush.msra.mxu0 %v296
  %1061 = vmatmul.f32.gmra.mxu0 %v1023
  %v1062 = vpop.f32.mrf.mxu0
  %v1063 = vadd.f32 0.0, %v1062
  %1064 = vdwg.mxu0
  %v1065 = vadd.f32 %v222, %v1043
  %v1066 = vxor.u32 %v1065, 2147483648
  %v1067 = vmul.f32 %v1066, 1.442695
  %v1068 = vpow.pop %v1067
  %v1069 = vadd.f32 %v1068, 1.0
  %v1070 = vrcp.pop %v1069
  %v1071 = vmul.f32 %v1069, %v1070
  %v1072 = vsub.f32 1.0, %v1071
  %v1073 = vmul.f32 %v1070, %v1072
  %v1074 = vadd.f32 %v1070, %v1073
  %vm1075 = vweird.f32 %v1069
  %vm1076 = vweird.f32 %v1070
  %vm1077 = vmor %vm1075, %vm1076
  %v1078 = vsel %vm1077, %v1070, %v1074
  %v1079 = vand.u32 2147483647, %v1069
  %vm1080 = vcmp.eq.f32.partialorder %v1079, 8.507059e+37
  %v1081 = vand.u32 %v1069, 2147483648
  %v1082 = vor.u32 1.1754944e-38, %v1081
  %v1083 = vsel %vm1080, %v1082, %v1078
  %v1084 = vmul.f32 1.0, %v1083
  %1086 = vrot.lane.b32.xlu0 %v1043, 64
  %v1087 = vpop.permute.xlu0 %1086
  %v1089 = vadd.f32 %v286, %v1087
  %v1090 = vxor.u32 %v1089, 2147483648
  %v1091 = vmul.f32 %v1090, 1.442695
  %v1092 = vpow.pop %v1091
  %v1093 = vadd.f32 %v1092, 1.0
  %v1094 = vrcp.pop %v1093
  %v1095 = vmul.f32 %v1093, %v1094
  %v1096 = vsub.f32 1.0, %v1095
  %v1097 = vmul.f32 %v1094, %v1096
  %v1098 = vadd.f32 %v1094, %v1097
  %vm1099 = vweird.f32 %v1093
  %vm1100 = vweird.f32 %v1094
  %vm1101 = vmor %vm1099, %vm1100
  %v1102 = vsel %vm1101, %v1094, %v1098
  %v1103 = vand.u32 2147483647, %v1093
  %vm1104 = vcmp.eq.f32.partialorder %v1103, 8.507059e+37
  %v1105 = vand.u32 %v1093, 2147483648
  %v1106 = vor.u32 1.1754944e-38, %v1105
  %v1107 = vsel %vm1104, %v1106, %v1102
  %v1108 = vmul.f32 1.0, %v1107
  %v1109 = vadd.f32 %v1063, %v313
  %v1110 = vmul.f32 %v1084, %v1109
  %v1111 = vadd.f32 %v294, %v1110
  %v1112 = vtanh.pop %v1111
  %v1113 = vsub.f32 %v1019, %v1112
  %v1114 = vmul.f32 %v1108, %v1113
  %v1115 = vadd.f32 %v1112, %v1114
  %v1116 = vmul.f32 %v53, %v1115
  %1117 = vst.msk [vmem:[%s413] sm:$0xff] %vm76, %v1116
  %1118 = vst.msk [vmem:[#allocation2] sm:$0xff] %vm414, %v1116
  %v1119 = vld [vmem:[#allocation2] sm:$0xff]
  %v1120 = vld [vmem:[#allocation2 + $0x8] sm:$0xff]
  %v1121 = vld [vmem:[#allocation2 + $0x10] sm:$0xff]
  %v1122 = vld [vmem:[#allocation2 + $0x18] sm:$0xff]
  %v1123 = vld [vmem:[#allocation2 + $0x20] sm:$0xff]
  %v1124 = vld [vmem:[#allocation2 + $0x28] sm:$0xff]
  %v1125 = vld [vmem:[#allocation2 + $0x30] sm:$0xff]
  %v1126 = vld [vmem:[#allocation2 + $0x38] sm:$0xff]
  %v1127 = vld [vmem:[%s6] sm:$0xff]
  %v1128 = vld [vmem:[%s6 + $0x8] sm:$0xff]
  %v1129 = vld [vmem:[%s6 + $0x10] sm:$0xff]
  %v1130 = vld [vmem:[%s6 + $0x18] sm:$0xff]
  %v1131 = vld [vmem:[%s6 + $0x20] sm:$0xff]
  %v1132 = vld [vmem:[%s6 + $0x28] sm:$0xff]
  %v1133 = vld [vmem:[%s6 + $0x30] sm:$0xff]
  %v1134 = vld [vmem:[%s6 + $0x38] sm:$0xff]
  %v1135 = vld [vmem:[%s6 + $0x40] sm:$0xff]
  %v1136 = vld [vmem:[%s6 + $0x48] sm:$0xff]
  %v1137 = vld [vmem:[%s6 + $0x50] sm:$0xff]
  %v1138 = vld [vmem:[%s6 + $0x58] sm:$0xff]
  %v1139 = vld [vmem:[%s6 + $0x60] sm:$0xff]
  %v1140 = vld [vmem:[%s6 + $0x68] sm:$0xff]
  %v1141 = vld [vmem:[%s6 + $0x70] sm:$0xff]
  %v1142 = vld [vmem:[%s6 + $0x78] sm:$0xff]
  %v1143 = vld [vmem:[%s7] sm:$0x3]
  %v1145 = vperm.slane %v1143, 0
  %v1146 = vperm.slane %v1143, 1
  %v1150 = vsel %vm315, %v1119, 0
  %v1153 = vsel %vm315, %v1120, 0
  %v1156 = vsel %vm315, %v1121, 0
  %v1159 = vsel %vm315, %v1122, 0
  %v1162 = vsel %vm315, %v1123, 0
  %v1165 = vsel %vm315, %v1124, 0
  %v1168 = vsel %vm315, %v1125, 0
  %v1171 = vsel %vm315, %v1126, 0
  %1173 = vmatpush.msra.mxu0 0.0
  %1174 = vmatpush.msra.mxu0 0.0
  %1175 = vmatpush.msra.mxu0 0.0
  %1176 = vmatpush.msra.mxu0 0.0
  %1177 = vmatpush.msra.mxu0 0.0
  %1178 = vmatpush.msra.mxu0 0.0
  %1179 = vmatpush.msra.mxu0 0.0
  %1180 = vmatpush.msra.mxu0 0.0
  %1181 = vmatpush.msra.mxu0 %v1141
  %1182 = vmatpush.msra.mxu0 %v1139
  %1183 = vmatpush.msra.mxu0 %v1137
  %1184 = vmatpush.msra.mxu0 %v1135
  %1185 = vmatpush.msra.mxu0 %v1133
  %1186 = vmatpush.msra.mxu0 %v1131
  %1187 = vmatpush.msra.mxu0 %v1129
  %1188 = vmatpush.msra.mxu0 %v1127
  %1189 = vmatmul.f32.gmra.mxu0 %v1150
  %v1190 = vpop.f32.mrf.mxu0
  %v1191 = vadd.f32 %v1145, %v1190
  %1192 = vmatmul.f32.gmra.mxu0 %v1153
  %v1193 = vpop.f32.mrf.mxu0
  %v1194 = vadd.f32 %v1145, %v1193
  %1195 = vmatmul.f32.gmra.mxu0 %v1156
  %v1196 = vpop.f32.mrf.mxu0
  %v1197 = vadd.f32 %v1145, %v1196
  %1198 = vmatmul.f32.gmra.mxu0 %v1159
  %v1199 = vpop.f32.mrf.mxu0
  %v1200 = vadd.f32 %v1145, %v1199
  %1201 = vmatmul.f32.gmra.mxu0 %v1162
  %v1202 = vpop.f32.mrf.mxu0
  %v1203 = vadd.f32 %v1145, %v1202
  %1204 = vmatmul.f32.gmra.mxu0 %v1165
  %v1205 = vpop.f32.mrf.mxu0
  %v1206 = vadd.f32 %v1145, %v1205
  %1207 = vmatmul.f32.gmra.mxu0 %v1168
  %v1208 = vpop.f32.mrf.mxu0
  %v1209 = vadd.f32 %v1145, %v1208
  %1210 = vmatmul.f32.gmra.mxu0 %v1171
  %v1211 = vpop.f32.mrf.mxu0
  %v1212 = vadd.f32 %v1145, %v1211
  %1213 = vdwg.mxu0
  %1214 = vmatpush.msra.mxu0 0.0
  %1215 = vmatpush.msra.mxu0 0.0
  %1216 = vmatpush.msra.mxu0 0.0
  %1217 = vmatpush.msra.mxu0 0.0
  %1218 = vmatpush.msra.mxu0 0.0
  %1219 = vmatpush.msra.mxu0 0.0
  %1220 = vmatpush.msra.mxu0 0.0
  %1221 = vmatpush.msra.mxu0 0.0
  %1222 = vmatpush.msra.mxu0 %v1142
  %1223 = vmatpush.msra.mxu0 %v1140
  %1224 = vmatpush.msra.mxu0 %v1138
  %1225 = vmatpush.msra.mxu0 %v1136
  %1226 = vmatpush.msra.mxu0 %v1134
  %1227 = vmatpush.msra.mxu0 %v1132
  %1228 = vmatpush.msra.mxu0 %v1130
  %1229 = vmatpush.msra.mxu0 %v1128
  %1230 = vmatmul.f32.gmra.mxu0 %v1150
  %v1231 = vpop.f32.mrf.mxu0
  %v1232 = vadd.f32 %v1146, %v1231
  %1233 = vmatmul.f32.gmra.mxu0 %v1153
  %v1234 = vpop.f32.mrf.mxu0
  %v1235 = vadd.f32 %v1146, %v1234
  %1236 = vmatmul.f32.gmra.mxu0 %v1156
  %v1237 = vpop.f32.mrf.mxu0
  %v1238 = vadd.f32 %v1146, %v1237
  %1239 = vmatmul.f32.gmra.mxu0 %v1159
  %v1240 = vpop.f32.mrf.mxu0
  %v1241 = vadd.f32 %v1146, %v1240
  %1242 = vmatmul.f32.gmra.mxu0 %v1162
  %v1243 = vpop.f32.mrf.mxu0
  %v1244 = vadd.f32 %v1146, %v1243
  %1245 = vmatmul.f32.gmra.mxu0 %v1165
  %v1246 = vpop.f32.mrf.mxu0
  %v1247 = vadd.f32 %v1146, %v1246
  %1248 = vmatmul.f32.gmra.mxu0 %v1168
  %v1249 = vpop.f32.mrf.mxu0
  %v1250 = vadd.f32 %v1146, %v1249
  %1251 = vmatmul.f32.gmra.mxu0 %v1171
  %v1252 = vpop.f32.mrf.mxu0
  %v1253 = vadd.f32 %v1146, %v1252
  %1254 = vdwg.mxu0
  %1263 = vrot.lane.b32.xlu0 %v1212, 64
  %v1264 = vpop.permute.xlu0 %1263
  %1265 = vrot.lane.b32.xlu0 %v1209, 64
  %v1266 = vpop.permute.xlu0 %1265
  %1267 = vrot.lane.b32.xlu0 %v1206, 64
  %v1268 = vpop.permute.xlu0 %1267
  %1269 = vrot.lane.b32.xlu0 %v1203, 64
  %v1270 = vpop.permute.xlu0 %1269
  %1271 = vrot.lane.b32.xlu0 %v1200, 64
  %v1272 = vpop.permute.xlu0 %1271
  %1273 = vrot.lane.b32.xlu0 %v1197, 64
  %v1274 = vpop.permute.xlu0 %1273
  %1275 = vrot.lane.b32.xlu0 %v1194, 64
  %v1276 = vpop.permute.xlu0 %1275
  %1277 = vrot.lane.b32.xlu0 %v1191, 64
  %v1278 = vpop.permute.xlu0 %1277
  %v1287 = vsel %vm76, %v1191, %v1264
  %v1288 = vsel %vm76, %v1194, %v1266
  %v1289 = vsel %vm76, %v1197, %v1268
  %v1290 = vsel %vm76, %v1200, %v1270
  %v1291 = vsel %vm76, %v1203, %v1272
  %v1292 = vsel %vm76, %v1206, %v1274
  %v1293 = vsel %vm76, %v1209, %v1276
  %v1294 = vsel %vm76, %v1212, %v1278
  %1295 = vrot.lane.b32.xlu0 %v1191, 96
  %v1296 = vpop.permute.xlu0 %1295
  %1297 = vrot.lane.b32.xlu0 %v1194, 96
  %v1298 = vpop.permute.xlu0 %1297
  %1299 = vrot.lane.b32.xlu0 %v1197, 96
  %v1300 = vpop.permute.xlu0 %1299
  %1301 = vrot.lane.b32.xlu0 %v1200, 96
  %v1302 = vpop.permute.xlu0 %1301
  %1303 = vrot.lane.b32.xlu0 %v1203, 96
  %v1304 = vpop.permute.xlu0 %1303
  %1305 = vrot.lane.b32.xlu0 %v1206, 96
  %v1306 = vpop.permute.xlu0 %1305
  %1307 = vrot.lane.b32.xlu0 %v1209, 96
  %v1308 = vpop.permute.xlu0 %1307
  %1309 = vrot.lane.b32.xlu0 %v1212, 96
  %v1310 = vpop.permute.xlu0 %1309
  %1327 = vrot.lane.b32.xlu0 %v1253, 32
  %v1328 = vpop.permute.xlu0 %1327
  %1329 = vrot.lane.b32.xlu0 %v1250, 32
  %v1330 = vpop.permute.xlu0 %1329
  %1331 = vrot.lane.b32.xlu0 %v1247, 32
  %v1332 = vpop.permute.xlu0 %1331
  %1333 = vrot.lane.b32.xlu0 %v1244, 32
  %v1334 = vpop.permute.xlu0 %1333
  %1335 = vrot.lane.b32.xlu0 %v1241, 32
  %v1336 = vpop.permute.xlu0 %1335
  %1337 = vrot.lane.b32.xlu0 %v1238, 32
  %v1338 = vpop.permute.xlu0 %1337
  %1339 = vrot.lane.b32.xlu0 %v1235, 32
  %v1340 = vpop.permute.xlu0 %1339
  %1341 = vrot.lane.b32.xlu0 %v1232, 32
  %v1342 = vpop.permute.xlu0 %1341
  %v1351 = vsel %vm76, %v1296, %v1328
  %v1352 = vsel %vm76, %v1298, %v1330
  %v1353 = vsel %vm76, %v1300, %v1332
  %v1354 = vsel %vm76, %v1302, %v1334
  %v1355 = vsel %vm76, %v1304, %v1336
  %v1356 = vsel %vm76, %v1306, %v1338
  %v1357 = vsel %vm76, %v1308, %v1340
  %v1358 = vsel %vm76, %v1310, %v1342
  %v1359 = vsel %vm76, %v1278, %v1253
  %v1360 = vsel %vm76, %v1276, %v1250
  %v1361 = vsel %vm76, %v1274, %v1247
  %v1362 = vsel %vm76, %v1272, %v1244
  %v1363 = vsel %vm76, %v1270, %v1241
  %v1364 = vsel %vm76, %v1268, %v1238
  %v1365 = vsel %vm76, %v1266, %v1235
  %v1366 = vsel %vm76, %v1264, %v1232
  %v1367 = vld [vmem:[%s8] sm:$0xff]
  %v1368 = vld [vmem:[%s8 + $0x8] sm:$0xff]
  %v1369 = vld [vmem:[%s8 + $0x10] sm:$0xff]
  %v1370 = vld [vmem:[%s8 + $0x18] sm:$0xff]
  %v1371 = vld [vmem:[%s8 + $0x20] sm:$0xff]
  %v1372 = vld [vmem:[%s8 + $0x28] sm:$0xff]
  %v1373 = vld [vmem:[%s8 + $0x30] sm:$0xff]
  %v1374 = vld [vmem:[%s8 + $0x38] sm:$0xff]
  %v1375 = vld [vmem:[%s8 + $0x40] sm:$0xff]
  %v1376 = vld [vmem:[%s8 + $0x48] sm:$0xff]
  %v1377 = vld [vmem:[%s8 + $0x50] sm:$0xff]
  %v1378 = vld [vmem:[%s8 + $0x58] sm:$0xff]
  %v1379 = vld [vmem:[%s8 + $0x60] sm:$0xff]
  %v1380 = vld [vmem:[%s8 + $0x68] sm:$0xff]
  %v1381 = vld [vmem:[%s8 + $0x70] sm:$0xff]
  %v1382 = vld [vmem:[%s8 + $0x78] sm:$0xff]
  %v1383 = vld [vmem:[%s9] sm:$0x1]
  %v1385 = vperm.slane %v1383, 0
  %1387 = vmatpush.msra.mxu0 0.0
  %1388 = vmatpush.msra.mxu0 0.0
  %1389 = vmatpush.msra.mxu0 0.0
  %1390 = vmatpush.msra.mxu0 0.0
  %1391 = vmatpush.msra.mxu0 0.0
  %1392 = vmatpush.msra.mxu0 0.0
  %1393 = vmatpush.msra.mxu0 0.0
  %1394 = vmatpush.msra.mxu0 0.0
  %1395 = vmatpush.msra.mxu0 %v1381
  %1396 = vmatpush.msra.mxu0 %v1379
  %1397 = vmatpush.msra.mxu0 %v1377
  %1398 = vmatpush.msra.mxu0 %v1375
  %1399 = vmatpush.msra.mxu0 %v1373
  %1400 = vmatpush.msra.mxu0 %v1371
  %1401 = vmatpush.msra.mxu0 %v1369
  %1402 = vmatpush.msra.mxu0 %v1367
  %1403 = vmatmul.f32.gmra.mxu0 %v317
  %v1404 = vpop.f32.mrf.mxu0
  %v1405 = vadd.f32 0.0, %v1404
  %1406 = vdwg.mxu0
  %1407 = vmatpush.msra.mxu0 0.0
  %1408 = vmatpush.msra.mxu0 0.0
  %1409 = vmatpush.msra.mxu0 0.0
  %1410 = vmatpush.msra.mxu0 0.0
  %1411 = vmatpush.msra.mxu0 0.0
  %1412 = vmatpush.msra.mxu0 0.0
  %1413 = vmatpush.msra.mxu0 0.0
  %1414 = vmatpush.msra.mxu0 0.0
  %1415 = vmatpush.msra.mxu0 %v1382
  %1416 = vmatpush.msra.mxu0 %v1380
  %1417 = vmatpush.msra.mxu0 %v1378
  %1418 = vmatpush.msra.mxu0 %v1376
  %1419 = vmatpush.msra.mxu0 %v1374
  %1420 = vmatpush.msra.mxu0 %v1372
  %1421 = vmatpush.msra.mxu0 %v1370
  %1422 = vmatpush.msra.mxu0 %v1368
  %1423 = vmatmul.f32.gmra.mxu0 %v317
  %v1424 = vpop.f32.mrf.mxu0
  %v1425 = vadd.f32 0.0, %v1424
  %1426 = vdwg.mxu0
  %v1427 = vadd.f32 %v1287, %v1405
  %v1428 = vxor.u32 %v1427, 2147483648
  %v1429 = vmul.f32 %v1428, 1.442695
  %v1430 = vpow.pop %v1429
  %v1431 = vadd.f32 %v1430, 1.0
  %v1432 = vrcp.pop %v1431
  %v1433 = vmul.f32 %v1431, %v1432
  %v1434 = vsub.f32 1.0, %v1433
  %v1435 = vmul.f32 %v1432, %v1434
  %v1436 = vadd.f32 %v1432, %v1435
  %vm1437 = vweird.f32 %v1431
  %vm1438 = vweird.f32 %v1432
  %vm1439 = vmor %vm1437, %vm1438
  %v1440 = vsel %vm1439, %v1432, %v1436
  %v1441 = vand.u32 2147483647, %v1431
  %vm1442 = vcmp.eq.f32.partialorder %v1441, 8.507059e+37
  %v1443 = vand.u32 %v1431, 2147483648
  %v1444 = vor.u32 1.1754944e-38, %v1443
  %v1445 = vsel %vm1442, %v1444, %v1440
  %v1446 = vmul.f32 1.0, %v1445
  %1448 = vrot.lane.b32.xlu0 %v1405, 64
  %v1449 = vpop.permute.xlu0 %1448
  %v1451 = vadd.f32 %v1351, %v1449
  %v1452 = vxor.u32 %v1451, 2147483648
  %v1453 = vmul.f32 %v1452, 1.442695
  %v1454 = vpow.pop %v1453
  %v1455 = vadd.f32 %v1454, 1.0
  %v1456 = vrcp.pop %v1455
  %v1457 = vmul.f32 %v1455, %v1456
  %v1458 = vsub.f32 1.0, %v1457
  %v1459 = vmul.f32 %v1456, %v1458
  %v1460 = vadd.f32 %v1456, %v1459
  %vm1461 = vweird.f32 %v1455
  %vm1462 = vweird.f32 %v1456
  %vm1463 = vmor %vm1461, %vm1462
  %v1464 = vsel %vm1463, %v1456, %v1460
  %v1465 = vand.u32 2147483647, %v1455
  %vm1466 = vcmp.eq.f32.partialorder %v1465, 8.507059e+37
  %v1467 = vand.u32 %v1455, 2147483648
  %v1468 = vor.u32 1.1754944e-38, %v1467
  %v1469 = vsel %vm1466, %v1468, %v1464
  %v1470 = vmul.f32 1.0, %v1469
  %v1471 = vadd.f32 %v1425, %v1385
  %v1472 = vmul.f32 %v1446, %v1471
  %v1473 = vadd.f32 %v1359, %v1472
  %v1474 = vtanh.pop %v1473
  %v1475 = vsub.f32 0.0, %v1474
  %v1476 = vmul.f32 %v1470, %v1475
  %v1477 = vadd.f32 %v1474, %v1476
  %v1478 = vmul.f32 %v46, %v1477
  %v1479 = vadd.f32 %v1478, 0.0
  %1480 = vst.msk [vmem:[#allocation2] sm:$0xff] %vm76, %v1478
  %1481 = vst.msk [vmem:[%s413] sm:$0xff] %vm414, %v1478
  %v1483 = vsel %vm315, %v1479, 0
  %1485 = vmatpush.msra.mxu0 0.0
  %1486 = vmatpush.msra.mxu0 0.0
  %1487 = vmatpush.msra.mxu0 0.0
  %1488 = vmatpush.msra.mxu0 0.0
  %1489 = vmatpush.msra.mxu0 0.0
  %1490 = vmatpush.msra.mxu0 0.0
  %1491 = vmatpush.msra.mxu0 0.0
  %1492 = vmatpush.msra.mxu0 0.0
  %1493 = vmatpush.msra.mxu0 %v1381
  %1494 = vmatpush.msra.mxu0 %v1379
  %1495 = vmatpush.msra.mxu0 %v1377
  %1496 = vmatpush.msra.mxu0 %v1375
  %1497 = vmatpush.msra.mxu0 %v1373
  %1498 = vmatpush.msra.mxu0 %v1371
  %1499 = vmatpush.msra.mxu0 %v1369
  %1500 = vmatpush.msra.mxu0 %v1367
  %1501 = vmatmul.f32.gmra.mxu0 %v1483
  %v1502 = vpop.f32.mrf.mxu0
  %v1503 = vadd.f32 0.0, %v1502
  %1504 = vdwg.mxu0
  %1505 = vmatpush.msra.mxu0 0.0
  %1506 = vmatpush.msra.mxu0 0.0
  %1507 = vmatpush.msra.mxu0 0.0
  %1508 = vmatpush.msra.mxu0 0.0
  %1509 = vmatpush.msra.mxu0 0.0
  %1510 = vmatpush.msra.mxu0 0.0
  %1511 = vmatpush.msra.mxu0 0.0
  %1512 = vmatpush.msra.mxu0 0.0
  %1513 = vmatpush.msra.mxu0 %v1382
  %1514 = vmatpush.msra.mxu0 %v1380
  %1515 = vmatpush.msra.mxu0 %v1378
  %1516 = vmatpush.msra.mxu0 %v1376
  %1517 = vmatpush.msra.mxu0 %v1374
  %1518 = vmatpush.msra.mxu0 %v1372
  %1519 = vmatpush.msra.mxu0 %v1370
  %1520 = vmatpush.msra.mxu0 %v1368
  %1521 = vmatmul.f32.gmra.mxu0 %v1483
  %v1522 = vpop.f32.mrf.mxu0
  %v1523 = vadd.f32 0.0, %v1522
  %1524 = vdwg.mxu0
  %v1525 = vadd.f32 %v1288, %v1503
  %v1526 = vxor.u32 %v1525, 2147483648
  %v1527 = vmul.f32 %v1526, 1.442695
  %v1528 = vpow.pop %v1527
  %v1529 = vadd.f32 %v1528, 1.0
  %v1530 = vrcp.pop %v1529
  %v1531 = vmul.f32 %v1529, %v1530
  %v1532 = vsub.f32 1.0, %v1531
  %v1533 = vmul.f32 %v1530, %v1532
  %v1534 = vadd.f32 %v1530, %v1533
  %vm1535 = vweird.f32 %v1529
  %vm1536 = vweird.f32 %v1530
  %vm1537 = vmor %vm1535, %vm1536
  %v1538 = vsel %vm1537, %v1530, %v1534
  %v1539 = vand.u32 2147483647, %v1529
  %vm1540 = vcmp.eq.f32.partialorder %v1539, 8.507059e+37
  %v1541 = vand.u32 %v1529, 2147483648
  %v1542 = vor.u32 1.1754944e-38, %v1541
  %v1543 = vsel %vm1540, %v1542, %v1538
  %v1544 = vmul.f32 1.0, %v1543
  %1546 = vrot.lane.b32.xlu0 %v1503, 64
  %v1547 = vpop.permute.xlu0 %1546
  %v1549 = vadd.f32 %v1352, %v1547
  %v1550 = vxor.u32 %v1549, 2147483648
  %v1551 = vmul.f32 %v1550, 1.442695
  %v1552 = vpow.pop %v1551
  %v1553 = vadd.f32 %v1552, 1.0
  %v1554 = vrcp.pop %v1553
  %v1555 = vmul.f32 %v1553, %v1554
  %v1556 = vsub.f32 1.0, %v1555
  %v1557 = vmul.f32 %v1554, %v1556
  %v1558 = vadd.f32 %v1554, %v1557
  %vm1559 = vweird.f32 %v1553
  %vm1560 = vweird.f32 %v1554
  %vm1561 = vmor %vm1559, %vm1560
  %v1562 = vsel %vm1561, %v1554, %v1558
  %v1563 = vand.u32 2147483647, %v1553
  %vm1564 = vcmp.eq.f32.partialorder %v1563, 8.507059e+37
  %v1565 = vand.u32 %v1553, 2147483648
  %v1566 = vor.u32 1.1754944e-38, %v1565
  %v1567 = vsel %vm1564, %v1566, %v1562
  %v1568 = vmul.f32 1.0, %v1567
  %v1569 = vadd.f32 %v1523, %v1385
  %v1570 = vmul.f32 %v1544, %v1569
  %v1571 = vadd.f32 %v1360, %v1570
  %v1572 = vtanh.pop %v1571
  %v1573 = vsub.f32 %v1479, %v1572
  %v1574 = vmul.f32 %v1568, %v1573
  %v1575 = vadd.f32 %v1572, %v1574
  %v1576 = vmul.f32 %v47, %v1575
  %v1577 = vsub.f32 %v1575, %v1479
  %v1578 = vmul.f32 %v47, %v1577
  %v1579 = vadd.f32 %v1479, %v1578
  %1580 = vst.msk [vmem:[%s514] sm:$0xff] %vm76, %v1576
  %1581 = vst.msk [vmem:[%s516] sm:$0xff] %vm414, %v1576
  %v1583 = vsel %vm315, %v1579, 0
  %1585 = vmatpush.msra.mxu0 0.0
  %1586 = vmatpush.msra.mxu0 0.0
  %1587 = vmatpush.msra.mxu0 0.0
  %1588 = vmatpush.msra.mxu0 0.0
  %1589 = vmatpush.msra.mxu0 0.0
  %1590 = vmatpush.msra.mxu0 0.0
  %1591 = vmatpush.msra.mxu0 0.0
  %1592 = vmatpush.msra.mxu0 0.0
  %1593 = vmatpush.msra.mxu0 %v1381
  %1594 = vmatpush.msra.mxu0 %v1379
  %1595 = vmatpush.msra.mxu0 %v1377
  %1596 = vmatpush.msra.mxu0 %v1375
  %1597 = vmatpush.msra.mxu0 %v1373
  %1598 = vmatpush.msra.mxu0 %v1371
  %1599 = vmatpush.msra.mxu0 %v1369
  %1600 = vmatpush.msra.mxu0 %v1367
  %1601 = vmatmul.f32.gmra.mxu0 %v1583
  %v1602 = vpop.f32.mrf.mxu0
  %v1603 = vadd.f32 0.0, %v1602
  %1604 = vdwg.mxu0
  %1605 = vmatpush.msra.mxu0 0.0
  %1606 = vmatpush.msra.mxu0 0.0
  %1607 = vmatpush.msra.mxu0 0.0
  %1608 = vmatpush.msra.mxu0 0.0
  %1609 = vmatpush.msra.mxu0 0.0
  %1610 = vmatpush.msra.mxu0 0.0
  %1611 = vmatpush.msra.mxu0 0.0
  %1612 = vmatpush.msra.mxu0 0.0
  %1613 = vmatpush.msra.mxu0 %v1382
  %1614 = vmatpush.msra.mxu0 %v1380
  %1615 = vmatpush.msra.mxu0 %v1378
  %1616 = vmatpush.msra.mxu0 %v1376
  %1617 = vmatpush.msra.mxu0 %v1374
  %1618 = vmatpush.msra.mxu0 %v1372
  %1619 = vmatpush.msra.mxu0 %v1370
  %1620 = vmatpush.msra.mxu0 %v1368
  %1621 = vmatmul.f32.gmra.mxu0 %v1583
  %v1622 = vpop.f32.mrf.mxu0
  %v1623 = vadd.f32 0.0, %v1622
  %1624 = vdwg.mxu0
  %v1625 = vadd.f32 %v1289, %v1603
  %v1626 = vxor.u32 %v1625, 2147483648
  %v1627 = vmul.f32 %v1626, 1.442695
  %v1628 = vpow.pop %v1627
  %v1629 = vadd.f32 %v1628, 1.0
  %v1630 = vrcp.pop %v1629
  %v1631 = vmul.f32 %v1629, %v1630
  %v1632 = vsub.f32 1.0, %v1631
  %v1633 = vmul.f32 %v1630, %v1632
  %v1634 = vadd.f32 %v1630, %v1633
  %vm1635 = vweird.f32 %v1629
  %vm1636 = vweird.f32 %v1630
  %vm1637 = vmor %vm1635, %vm1636
  %v1638 = vsel %vm1637, %v1630, %v1634
  %v1639 = vand.u32 2147483647, %v1629
  %vm1640 = vcmp.eq.f32.partialorder %v1639, 8.507059e+37
  %v1641 = vand.u32 %v1629, 2147483648
  %v1642 = vor.u32 1.1754944e-38, %v1641
  %v1643 = vsel %vm1640, %v1642, %v1638
  %v1644 = vmul.f32 1.0, %v1643
  %1646 = vrot.lane.b32.xlu0 %v1603, 64
  %v1647 = vpop.permute.xlu0 %1646
  %v1649 = vadd.f32 %v1353, %v1647
  %v1650 = vxor.u32 %v1649, 2147483648
  %v1651 = vmul.f32 %v1650, 1.442695
  %v1652 = vpow.pop %v1651
  %v1653 = vadd.f32 %v1652, 1.0
  %v1654 = vrcp.pop %v1653
  %v1655 = vmul.f32 %v1653, %v1654
  %v1656 = vsub.f32 1.0, %v1655
  %v1657 = vmul.f32 %v1654, %v1656
  %v1658 = vadd.f32 %v1654, %v1657
  %vm1659 = vweird.f32 %v1653
  %vm1660 = vweird.f32 %v1654
  %vm1661 = vmor %vm1659, %vm1660
  %v1662 = vsel %vm1661, %v1654, %v1658
  %v1663 = vand.u32 2147483647, %v1653
  %vm1664 = vcmp.eq.f32.partialorder %v1663, 8.507059e+37
  %v1665 = vand.u32 %v1653, 2147483648
  %v1666 = vor.u32 1.1754944e-38, %v1665
  %v1667 = vsel %vm1664, %v1666, %v1662
  %v1668 = vmul.f32 1.0, %v1667
  %v1669 = vadd.f32 %v1623, %v1385
  %v1670 = vmul.f32 %v1644, %v1669
  %v1671 = vadd.f32 %v1361, %v1670
  %v1672 = vtanh.pop %v1671
  %v1673 = vsub.f32 %v1579, %v1672
  %v1674 = vmul.f32 %v1668, %v1673
  %v1675 = vadd.f32 %v1672, %v1674
  %v1676 = vmul.f32 %v48, %v1675
  %v1677 = vsub.f32 %v1675, %v1579
  %v1678 = vmul.f32 %v48, %v1677
  %v1679 = vadd.f32 %v1579, %v1678
  %1680 = vst.msk [vmem:[%s616] sm:$0xff] %vm76, %v1676
  %1681 = vst.msk [vmem:[%s618] sm:$0xff] %vm414, %v1676
  %v1683 = vsel %vm315, %v1679, 0
  %1685 = vmatpush.msra.mxu0 0.0
  %1686 = vmatpush.msra.mxu0 0.0
  %1687 = vmatpush.msra.mxu0 0.0
  %1688 = vmatpush.msra.mxu0 0.0
  %1689 = vmatpush.msra.mxu0 0.0
  %1690 = vmatpush.msra.mxu0 0.0
  %1691 = vmatpush.msra.mxu0 0.0
  %1692 = vmatpush.msra.mxu0 0.0
  %1693 = vmatpush.msra.mxu0 %v1381
  %1694 = vmatpush.msra.mxu0 %v1379
  %1695 = vmatpush.msra.mxu0 %v1377
  %1696 = vmatpush.msra.mxu0 %v1375
  %1697 = vmatpush.msra.mxu0 %v1373
  %1698 = vmatpush.msra.mxu0 %v1371
  %1699 = vmatpush.msra.mxu0 %v1369
  %1700 = vmatpush.msra.mxu0 %v1367
  %1701 = vmatmul.f32.gmra.mxu0 %v1683
  %v1702 = vpop.f32.mrf.mxu0
  %v1703 = vadd.f32 0.0, %v1702
  %1704 = vdwg.mxu0
  %1705 = vmatpush.msra.mxu0 0.0
  %1706 = vmatpush.msra.mxu0 0.0
  %1707 = vmatpush.msra.mxu0 0.0
  %1708 = vmatpush.msra.mxu0 0.0
  %1709 = vmatpush.msra.mxu0 0.0
  %1710 = vmatpush.msra.mxu0 0.0
  %1711 = vmatpush.msra.mxu0 0.0
  %1712 = vmatpush.msra.mxu0 0.0
  %1713 = vmatpush.msra.mxu0 %v1382
  %1714 = vmatpush.msra.mxu0 %v1380
  %1715 = vmatpush.msra.mxu0 %v1378
  %1716 = vmatpush.msra.mxu0 %v1376
  %1717 = vmatpush.msra.mxu0 %v1374
  %1718 = vmatpush.msra.mxu0 %v1372
  %1719 = vmatpush.msra.mxu0 %v1370
  %1720 = vmatpush.msra.mxu0 %v1368
  %1721 = vmatmul.f32.gmra.mxu0 %v1683
  %v1722 = vpop.f32.mrf.mxu0
  %v1723 = vadd.f32 0.0, %v1722
  %1724 = vdwg.mxu0
  %v1725 = vadd.f32 %v1290, %v1703
  %v1726 = vxor.u32 %v1725, 2147483648
  %v1727 = vmul.f32 %v1726, 1.442695
  %v1728 = vpow.pop %v1727
  %v1729 = vadd.f32 %v1728, 1.0
  %v1730 = vrcp.pop %v1729
  %v1731 = vmul.f32 %v1729, %v1730
  %v1732 = vsub.f32 1.0, %v1731
  %v1733 = vmul.f32 %v1730, %v1732
  %v1734 = vadd.f32 %v1730, %v1733
  %vm1735 = vweird.f32 %v1729
  %vm1736 = vweird.f32 %v1730
  %vm1737 = vmor %vm1735, %vm1736
  %v1738 = vsel %vm1737, %v1730, %v1734
  %v1739 = vand.u32 2147483647, %v1729
  %vm1740 = vcmp.eq.f32.partialorder %v1739, 8.507059e+37
  %v1741 = vand.u32 %v1729, 2147483648
  %v1742 = vor.u32 1.1754944e-38, %v1741
  %v1743 = vsel %vm1740, %v1742, %v1738
  %v1744 = vmul.f32 1.0, %v1743
  %1746 = vrot.lane.b32.xlu0 %v1703, 64
  %v1747 = vpop.permute.xlu0 %1746
  %v1749 = vadd.f32 %v1354, %v1747
  %v1750 = vxor.u32 %v1749, 2147483648
  %v1751 = vmul.f32 %v1750, 1.442695
  %v1752 = vpow.pop %v1751
  %v1753 = vadd.f32 %v1752, 1.0
  %v1754 = vrcp.pop %v1753
  %v1755 = vmul.f32 %v1753, %v1754
  %v1756 = vsub.f32 1.0, %v1755
  %v1757 = vmul.f32 %v1754, %v1756
  %v1758 = vadd.f32 %v1754, %v1757
  %vm1759 = vweird.f32 %v1753
  %vm1760 = vweird.f32 %v1754
  %vm1761 = vmor %vm1759, %vm1760
  %v1762 = vsel %vm1761, %v1754, %v1758
  %v1763 = vand.u32 2147483647, %v1753
  %vm1764 = vcmp.eq.f32.partialorder %v1763, 8.507059e+37
  %v1765 = vand.u32 %v1753, 2147483648
  %v1766 = vor.u32 1.1754944e-38, %v1765
  %v1767 = vsel %vm1764, %v1766, %v1762
  %v1768 = vmul.f32 1.0, %v1767
  %v1769 = vadd.f32 %v1723, %v1385
  %v1770 = vmul.f32 %v1744, %v1769
  %v1771 = vadd.f32 %v1362, %v1770
  %v1772 = vtanh.pop %v1771
  %v1773 = vsub.f32 %v1679, %v1772
  %v1774 = vmul.f32 %v1768, %v1773
  %v1775 = vadd.f32 %v1772, %v1774
  %v1776 = vmul.f32 %v49, %v1775
  %v1777 = vsub.f32 %v1775, %v1679
  %v1778 = vmul.f32 %v49, %v1777
  %v1779 = vadd.f32 %v1679, %v1778
  %1780 = vst.msk [vmem:[%s718] sm:$0xff] %vm76, %v1776
  %1781 = vst.msk [vmem:[%s720] sm:$0xff] %vm414, %v1776
  %v1783 = vsel %vm315, %v1779, 0
  %1785 = vmatpush.msra.mxu0 0.0
  %1786 = vmatpush.msra.mxu0 0.0
  %1787 = vmatpush.msra.mxu0 0.0
  %1788 = vmatpush.msra.mxu0 0.0
  %1789 = vmatpush.msra.mxu0 0.0
  %1790 = vmatpush.msra.mxu0 0.0
  %1791 = vmatpush.msra.mxu0 0.0
  %1792 = vmatpush.msra.mxu0 0.0
  %1793 = vmatpush.msra.mxu0 %v1381
  %1794 = vmatpush.msra.mxu0 %v1379
  %1795 = vmatpush.msra.mxu0 %v1377
  %1796 = vmatpush.msra.mxu0 %v1375
  %1797 = vmatpush.msra.mxu0 %v1373
  %1798 = vmatpush.msra.mxu0 %v1371
  %1799 = vmatpush.msra.mxu0 %v1369
  %1800 = vmatpush.msra.mxu0 %v1367
  %1801 = vmatmul.f32.gmra.mxu0 %v1783
  %v1802 = vpop.f32.mrf.mxu0
  %v1803 = vadd.f32 0.0, %v1802
  %1804 = vdwg.mxu0
  %1805 = vmatpush.msra.mxu0 0.0
  %1806 = vmatpush.msra.mxu0 0.0
  %1807 = vmatpush.msra.mxu0 0.0
  %1808 = vmatpush.msra.mxu0 0.0
  %1809 = vmatpush.msra.mxu0 0.0
  %1810 = vmatpush.msra.mxu0 0.0
  %1811 = vmatpush.msra.mxu0 0.0
  %1812 = vmatpush.msra.mxu0 0.0
  %1813 = vmatpush.msra.mxu0 %v1382
  %1814 = vmatpush.msra.mxu0 %v1380
  %1815 = vmatpush.msra.mxu0 %v1378
  %1816 = vmatpush.msra.mxu0 %v1376
  %1817 = vmatpush.msra.mxu0 %v1374
  %1818 = vmatpush.msra.mxu0 %v1372
  %1819 = vmatpush.msra.mxu0 %v1370
  %1820 = vmatpush.msra.mxu0 %v1368
  %1821 = vmatmul.f32.gmra.mxu0 %v1783
  %v1822 = vpop.f32.mrf.mxu0
  %v1823 = vadd.f32 0.0, %v1822
  %1824 = vdwg.mxu0
  %v1825 = vadd.f32 %v1291, %v1803
  %v1826 = vxor.u32 %v1825, 2147483648
  %v1827 = vmul.f32 %v1826, 1.442695
  %v1828 = vpow.pop %v1827
  %v1829 = vadd.f32 %v1828, 1.0
  %v1830 = vrcp.pop %v1829
  %v1831 = vmul.f32 %v1829, %v1830
  %v1832 = vsub.f32 1.0, %v1831
  %v1833 = vmul.f32 %v1830, %v1832
  %v1834 = vadd.f32 %v1830, %v1833
  %vm1835 = vweird.f32 %v1829
  %vm1836 = vweird.f32 %v1830
  %vm1837 = vmor %vm1835, %vm1836
  %v1838 = vsel %vm1837, %v1830, %v1834
  %v1839 = vand.u32 2147483647, %v1829
  %vm1840 = vcmp.eq.f32.partialorder %v1839, 8.507059e+37
  %v1841 = vand.u32 %v1829, 2147483648
  %v1842 = vor.u32 1.1754944e-38, %v1841
  %v1843 = vsel %vm1840, %v1842, %v1838
  %v1844 = vmul.f32 1.0, %v1843
  %1846 = vrot.lane.b32.xlu0 %v1803, 64
  %v1847 = vpop.permute.xlu0 %1846
  %v1849 = vadd.f32 %v1355, %v1847
  %v1850 = vxor.u32 %v1849, 2147483648
  %v1851 = vmul.f32 %v1850, 1.442695
  %v1852 = vpow.pop %v1851
  %v1853 = vadd.f32 %v1852, 1.0
  %v1854 = vrcp.pop %v1853
  %v1855 = vmul.f32 %v1853, %v1854
  %v1856 = vsub.f32 1.0, %v1855
  %v1857 = vmul.f32 %v1854, %v1856
  %v1858 = vadd.f32 %v1854, %v1857
  %vm1859 = vweird.f32 %v1853
  %vm1860 = vweird.f32 %v1854
  %vm1861 = vmor %vm1859, %vm1860
  %v1862 = vsel %vm1861, %v1854, %v1858
  %v1863 = vand.u32 2147483647, %v1853
  %vm1864 = vcmp.eq.f32.partialorder %v1863, 8.507059e+37
  %v1865 = vand.u32 %v1853, 2147483648
  %v1866 = vor.u32 1.1754944e-38, %v1865
  %v1867 = vsel %vm1864, %v1866, %v1862
  %v1868 = vmul.f32 1.0, %v1867
  %v1869 = vadd.f32 %v1823, %v1385
  %v1870 = vmul.f32 %v1844, %v1869
  %v1871 = vadd.f32 %v1363, %v1870
  %v1872 = vtanh.pop %v1871
  %v1873 = vsub.f32 %v1779, %v1872
  %v1874 = vmul.f32 %v1868, %v1873
  %v1875 = vadd.f32 %v1872, %v1874
  %v1876 = vmul.f32 %v50, %v1875
  %v1877 = vsub.f32 %v1875, %v1779
  %v1878 = vmul.f32 %v50, %v1877
  %v1879 = vadd.f32 %v1779, %v1878
  %1880 = vst.msk [vmem:[%s720] sm:$0xff] %vm76, %v1876
  %1881 = vst.msk [vmem:[%s718] sm:$0xff] %vm414, %v1876
  %v1883 = vsel %vm315, %v1879, 0
  %1885 = vmatpush.msra.mxu0 0.0
  %1886 = vmatpush.msra.mxu0 0.0
  %1887 = vmatpush.msra.mxu0 0.0
  %1888 = vmatpush.msra.mxu0 0.0
  %1889 = vmatpush.msra.mxu0 0.0
  %1890 = vmatpush.msra.mxu0 0.0
  %1891 = vmatpush.msra.mxu0 0.0
  %1892 = vmatpush.msra.mxu0 0.0
  %1893 = vmatpush.msra.mxu0 %v1381
  %1894 = vmatpush.msra.mxu0 %v1379
  %1895 = vmatpush.msra.mxu0 %v1377
  %1896 = vmatpush.msra.mxu0 %v1375
  %1897 = vmatpush.msra.mxu0 %v1373
  %1898 = vmatpush.msra.mxu0 %v1371
  %1899 = vmatpush.msra.mxu0 %v1369
  %1900 = vmatpush.msra.mxu0 %v1367
  %1901 = vmatmul.f32.gmra.mxu0 %v1883
  %v1902 = vpop.f32.mrf.mxu0
  %v1903 = vadd.f32 0.0, %v1902
  %1904 = vdwg.mxu0
  %1905 = vmatpush.msra.mxu0 0.0
  %1906 = vmatpush.msra.mxu0 0.0
  %1907 = vmatpush.msra.mxu0 0.0
  %1908 = vmatpush.msra.mxu0 0.0
  %1909 = vmatpush.msra.mxu0 0.0
  %1910 = vmatpush.msra.mxu0 0.0
  %1911 = vmatpush.msra.mxu0 0.0
  %1912 = vmatpush.msra.mxu0 0.0
  %1913 = vmatpush.msra.mxu0 %v1382
  %1914 = vmatpush.msra.mxu0 %v1380
  %1915 = vmatpush.msra.mxu0 %v1378
  %1916 = vmatpush.msra.mxu0 %v1376
  %1917 = vmatpush.msra.mxu0 %v1374
  %1918 = vmatpush.msra.mxu0 %v1372
  %1919 = vmatpush.msra.mxu0 %v1370
  %1920 = vmatpush.msra.mxu0 %v1368
  %1921 = vmatmul.f32.gmra.mxu0 %v1883
  %v1922 = vpop.f32.mrf.mxu0
  %v1923 = vadd.f32 0.0, %v1922
  %1924 = vdwg.mxu0
  %v1925 = vadd.f32 %v1292, %v1903
  %v1926 = vxor.u32 %v1925, 2147483648
  %v1927 = vmul.f32 %v1926, 1.442695
  %v1928 = vpow.pop %v1927
  %v1929 = vadd.f32 %v1928, 1.0
  %v1930 = vrcp.pop %v1929
  %v1931 = vmul.f32 %v1929, %v1930
  %v1932 = vsub.f32 1.0, %v1931
  %v1933 = vmul.f32 %v1930, %v1932
  %v1934 = vadd.f32 %v1930, %v1933
  %vm1935 = vweird.f32 %v1929
  %vm1936 = vweird.f32 %v1930
  %vm1937 = vmor %vm1935, %vm1936
  %v1938 = vsel %vm1937, %v1930, %v1934
  %v1939 = vand.u32 2147483647, %v1929
  %vm1940 = vcmp.eq.f32.partialorder %v1939, 8.507059e+37
  %v1941 = vand.u32 %v1929, 2147483648
  %v1942 = vor.u32 1.1754944e-38, %v1941
  %v1943 = vsel %vm1940, %v1942, %v1938
  %v1944 = vmul.f32 1.0, %v1943
  %1946 = vrot.lane.b32.xlu0 %v1903, 64
  %v1947 = vpop.permute.xlu0 %1946
  %v1949 = vadd.f32 %v1356, %v1947
  %v1950 = vxor.u32 %v1949, 2147483648
  %v1951 = vmul.f32 %v1950, 1.442695
  %v1952 = vpow.pop %v1951
  %v1953 = vadd.f32 %v1952, 1.0
  %v1954 = vrcp.pop %v1953
  %v1955 = vmul.f32 %v1953, %v1954
  %v1956 = vsub.f32 1.0, %v1955
  %v1957 = vmul.f32 %v1954, %v1956
  %v1958 = vadd.f32 %v1954, %v1957
  %vm1959 = vweird.f32 %v1953
  %vm1960 = vweird.f32 %v1954
  %vm1961 = vmor %vm1959, %vm1960
  %v1962 = vsel %vm1961, %v1954, %v1958
  %v1963 = vand.u32 2147483647, %v1953
  %vm1964 = vcmp.eq.f32.partialorder %v1963, 8.507059e+37
  %v1965 = vand.u32 %v1953, 2147483648
  %v1966 = vor.u32 1.1754944e-38, %v1965
  %v1967 = vsel %vm1964, %v1966, %v1962
  %v1968 = vmul.f32 1.0, %v1967
  %v1969 = vadd.f32 %v1923, %v1385
  %v1970 = vmul.f32 %v1944, %v1969
  %v1971 = vadd.f32 %v1364, %v1970
  %v1972 = vtanh.pop %v1971
  %v1973 = vsub.f32 %v1879, %v1972
  %v1974 = vmul.f32 %v1968, %v1973
  %v1975 = vadd.f32 %v1972, %v1974
  %v1976 = vmul.f32 %v51, %v1975
  %v1977 = vsub.f32 %v1975, %v1879
  %v1978 = vmul.f32 %v51, %v1977
  %v1979 = vadd.f32 %v1879, %v1978
  %1980 = vst.msk [vmem:[%s618] sm:$0xff] %vm76, %v1976
  %1981 = vst.msk [vmem:[%s616] sm:$0xff] %vm414, %v1976
  %v1983 = vsel %vm315, %v1979, 0
  %1985 = vmatpush.msra.mxu0 0.0
  %1986 = vmatpush.msra.mxu0 0.0
  %1987 = vmatpush.msra.mxu0 0.0
  %1988 = vmatpush.msra.mxu0 0.0
  %1989 = vmatpush.msra.mxu0 0.0
  %1990 = vmatpush.msra.mxu0 0.0
  %1991 = vmatpush.msra.mxu0 0.0
  %1992 = vmatpush.msra.mxu0 0.0
  %1993 = vmatpush.msra.mxu0 %v1381
  %1994 = vmatpush.msra.mxu0 %v1379
  %1995 = vmatpush.msra.mxu0 %v1377
  %1996 = vmatpush.msra.mxu0 %v1375
  %1997 = vmatpush.msra.mxu0 %v1373
  %1998 = vmatpush.msra.mxu0 %v1371
  %1999 = vmatpush.msra.mxu0 %v1369
  %2000 = vmatpush.msra.mxu0 %v1367
  %2001 = vmatmul.f32.gmra.mxu0 %v1983
  %v2002 = vpop.f32.mrf.mxu0
  %v2003 = vadd.f32 0.0, %v2002
  %2004 = vdwg.mxu0
  %2005 = vmatpush.msra.mxu0 0.0
  %2006 = vmatpush.msra.mxu0 0.0
  %2007 = vmatpush.msra.mxu0 0.0
  %2008 = vmatpush.msra.mxu0 0.0
  %2009 = vmatpush.msra.mxu0 0.0
  %2010 = vmatpush.msra.mxu0 0.0
  %2011 = vmatpush.msra.mxu0 0.0
  %2012 = vmatpush.msra.mxu0 0.0
  %2013 = vmatpush.msra.mxu0 %v1382
  %2014 = vmatpush.msra.mxu0 %v1380
  %2015 = vmatpush.msra.mxu0 %v1378
  %2016 = vmatpush.msra.mxu0 %v1376
  %2017 = vmatpush.msra.mxu0 %v1374
  %2018 = vmatpush.msra.mxu0 %v1372
  %2019 = vmatpush.msra.mxu0 %v1370
  %2020 = vmatpush.msra.mxu0 %v1368
  %2021 = vmatmul.f32.gmra.mxu0 %v1983
  %v2022 = vpop.f32.mrf.mxu0
  %v2023 = vadd.f32 0.0, %v2022
  %2024 = vdwg.mxu0
  %v2025 = vadd.f32 %v1293, %v2003
  %v2026 = vxor.u32 %v2025, 2147483648
  %v2027 = vmul.f32 %v2026, 1.442695
  %v2028 = vpow.pop %v2027
  %v2029 = vadd.f32 %v2028, 1.0
  %v2030 = vrcp.pop %v2029
  %v2031 = vmul.f32 %v2029, %v2030
  %v2032 = vsub.f32 1.0, %v2031
  %v2033 = vmul.f32 %v2030, %v2032
  %v2034 = vadd.f32 %v2030, %v2033
  %vm2035 = vweird.f32 %v2029
  %vm2036 = vweird.f32 %v2030
  %vm2037 = vmor %vm2035, %vm2036
  %v2038 = vsel %vm2037, %v2030, %v2034
  %v2039 = vand.u32 2147483647, %v2029
  %vm2040 = vcmp.eq.f32.partialorder %v2039, 8.507059e+37
  %v2041 = vand.u32 %v2029, 2147483648
  %v2042 = vor.u32 1.1754944e-38, %v2041
  %v2043 = vsel %vm2040, %v2042, %v2038
  %v2044 = vmul.f32 1.0, %v2043
  %2046 = vrot.lane.b32.xlu0 %v2003, 64
  %v2047 = vpop.permute.xlu0 %2046
  %v2049 = vadd.f32 %v1357, %v2047
  %v2050 = vxor.u32 %v2049, 2147483648
  %v2051 = vmul.f32 %v2050, 1.442695
  %v2052 = vpow.pop %v2051
  %v2053 = vadd.f32 %v2052, 1.0
  %v2054 = vrcp.pop %v2053
  %v2055 = vmul.f32 %v2053, %v2054
  %v2056 = vsub.f32 1.0, %v2055
  %v2057 = vmul.f32 %v2054, %v2056
  %v2058 = vadd.f32 %v2054, %v2057
  %vm2059 = vweird.f32 %v2053
  %vm2060 = vweird.f32 %v2054
  %vm2061 = vmor %vm2059, %vm2060
  %v2062 = vsel %vm2061, %v2054, %v2058
  %v2063 = vand.u32 2147483647, %v2053
  %vm2064 = vcmp.eq.f32.partialorder %v2063, 8.507059e+37
  %v2065 = vand.u32 %v2053, 2147483648
  %v2066 = vor.u32 1.1754944e-38, %v2065
  %v2067 = vsel %vm2064, %v2066, %v2062
  %v2068 = vmul.f32 1.0, %v2067
  %v2069 = vadd.f32 %v2023, %v1385
  %v2070 = vmul.f32 %v2044, %v2069
  %v2071 = vadd.f32 %v1365, %v2070
  %v2072 = vtanh.pop %v2071
  %v2073 = vsub.f32 %v1979, %v2072
  %v2074 = vmul.f32 %v2068, %v2073
  %v2075 = vadd.f32 %v2072, %v2074
  %v2076 = vmul.f32 %v52, %v2075
  %v2077 = vsub.f32 %v2075, %v1979
  %v2078 = vmul.f32 %v52, %v2077
  %v2079 = vadd.f32 %v1979, %v2078
  %2080 = vst.msk [vmem:[%s516] sm:$0xff] %vm76, %v2076
  %2081 = vst.msk [vmem:[%s514] sm:$0xff] %vm414, %v2076
  %v2083 = vsel %vm315, %v2079, 0
  %2085 = vmatpush.msra.mxu0 0.0
  %2086 = vmatpush.msra.mxu0 0.0
  %2087 = vmatpush.msra.mxu0 0.0
  %2088 = vmatpush.msra.mxu0 0.0
  %2089 = vmatpush.msra.mxu0 0.0
  %2090 = vmatpush.msra.mxu0 0.0
  %2091 = vmatpush.msra.mxu0 0.0
  %2092 = vmatpush.msra.mxu0 0.0
  %2093 = vmatpush.msra.mxu0 %v1381
  %2094 = vmatpush.msra.mxu0 %v1379
  %2095 = vmatpush.msra.mxu0 %v1377
  %2096 = vmatpush.msra.mxu0 %v1375
  %2097 = vmatpush.msra.mxu0 %v1373
  %2098 = vmatpush.msra.mxu0 %v1371
  %2099 = vmatpush.msra.mxu0 %v1369
  %2100 = vmatpush.msra.mxu0 %v1367
  %2101 = vmatmul.f32.gmra.mxu0 %v2083
  %v2102 = vpop.f32.mrf.mxu0
  %v2103 = vadd.f32 0.0, %v2102
  %2104 = vdwg.mxu0
  %2105 = vmatpush.msra.mxu0 0.0
  %2106 = vmatpush.msra.mxu0 0.0
  %2107 = vmatpush.msra.mxu0 0.0
  %2108 = vmatpush.msra.mxu0 0.0
  %2109 = vmatpush.msra.mxu0 0.0
  %2110 = vmatpush.msra.mxu0 0.0
  %2111 = vmatpush.msra.mxu0 0.0
  %2112 = vmatpush.msra.mxu0 0.0
  %2113 = vmatpush.msra.mxu0 %v1382
  %2114 = vmatpush.msra.mxu0 %v1380
  %2115 = vmatpush.msra.mxu0 %v1378
  %2116 = vmatpush.msra.mxu0 %v1376
  %2117 = vmatpush.msra.mxu0 %v1374
  %2118 = vmatpush.msra.mxu0 %v1372
  %2119 = vmatpush.msra.mxu0 %v1370
  %2120 = vmatpush.msra.mxu0 %v1368
  %2121 = vmatmul.f32.gmra.mxu0 %v2083
  %v2122 = vpop.f32.mrf.mxu0
  %v2123 = vadd.f32 0.0, %v2122
  %2124 = vdwg.mxu0
  %v2125 = vadd.f32 %v1294, %v2103
  %v2126 = vxor.u32 %v2125, 2147483648
  %v2127 = vmul.f32 %v2126, 1.442695
  %v2128 = vpow.pop %v2127
  %v2129 = vadd.f32 %v2128, 1.0
  %v2130 = vrcp.pop %v2129
  %v2131 = vmul.f32 %v2129, %v2130
  %v2132 = vsub.f32 1.0, %v2131
  %v2133 = vmul.f32 %v2130, %v2132
  %v2134 = vadd.f32 %v2130, %v2133
  %vm2135 = vweird.f32 %v2129
  %vm2136 = vweird.f32 %v2130
  %vm2137 = vmor %vm2135, %vm2136
  %v2138 = vsel %vm2137, %v2130, %v2134
  %v2139 = vand.u32 2147483647, %v2129
  %vm2140 = vcmp.eq.f32.partialorder %v2139, 8.507059e+37
  %v2141 = vand.u32 %v2129, 2147483648
  %v2142 = vor.u32 1.1754944e-38, %v2141
  %v2143 = vsel %vm2140, %v2142, %v2138
  %v2144 = vmul.f32 1.0, %v2143
  %2146 = vrot.lane.b32.xlu0 %v2103, 64
  %v2147 = vpop.permute.xlu0 %2146
  %v2149 = vadd.f32 %v1358, %v2147
  %v2150 = vxor.u32 %v2149, 2147483648
  %v2151 = vmul.f32 %v2150, 1.442695
  %v2152 = vpow.pop %v2151
  %v2153 = vadd.f32 %v2152, 1.0
  %v2154 = vrcp.pop %v2153
  %v2155 = vmul.f32 %v2153, %v2154
  %v2156 = vsub.f32 1.0, %v2155
  %v2157 = vmul.f32 %v2154, %v2156
  %v2158 = vadd.f32 %v2154, %v2157
  %vm2159 = vweird.f32 %v2153
  %vm2160 = vweird.f32 %v2154
  %vm2161 = vmor %vm2159, %vm2160
  %v2162 = vsel %vm2161, %v2154, %v2158
  %v2163 = vand.u32 2147483647, %v2153
  %vm2164 = vcmp.eq.f32.partialorder %v2163, 8.507059e+37
  %v2165 = vand.u32 %v2153, 2147483648
  %v2166 = vor.u32 1.1754944e-38, %v2165
  %v2167 = vsel %vm2164, %v2166, %v2162
  %v2168 = vmul.f32 1.0, %v2167
  %v2169 = vadd.f32 %v2123, %v1385
  %v2170 = vmul.f32 %v2144, %v2169
  %v2171 = vadd.f32 %v1366, %v2170
  %v2172 = vtanh.pop %v2171
  %v2173 = vsub.f32 %v2079, %v2172
  %v2174 = vmul.f32 %v2168, %v2173
  %v2175 = vadd.f32 %v2172, %v2174
  %v2176 = vmul.f32 %v53, %v2175
  %2177 = vst.msk [vmem:[%s413] sm:$0xff] %vm76, %v2176
  %2178 = vst.msk [vmem:[#allocation2] sm:$0xff] %vm414, %v2176
  %v2179 = vld [vmem:[#allocation2] sm:$0xff]
  %v2180 = vld [vmem:[#allocation2 + $0x8] sm:$0xff]
  %v2181 = vld [vmem:[#allocation2 + $0x10] sm:$0xff]
  %v2182 = vld [vmem:[#allocation2 + $0x18] sm:$0xff]
  %v2183 = vld [vmem:[#allocation2 + $0x20] sm:$0xff]
  %v2184 = vld [vmem:[#allocation2 + $0x28] sm:$0xff]
  %v2185 = vld [vmem:[#allocation2 + $0x30] sm:$0xff]
  %v2186 = vld [vmem:[#allocation2 + $0x38] sm:$0xff]
  %v2187 = vld [vmem:[%s10] sm:$0xff]
  %v2188 = vld [vmem:[%s10 + $0x8] sm:$0xff]
  %v2189 = vld [vmem:[%s10 + $0x10] sm:$0xff]
  %v2190 = vld [vmem:[%s10 + $0x18] sm:$0xff]
  %v2191 = vld [vmem:[%s10 + $0x20] sm:$0xff]
  %v2192 = vld [vmem:[%s10 + $0x28] sm:$0xff]
  %v2193 = vld [vmem:[%s10 + $0x30] sm:$0xff]
  %v2194 = vld [vmem:[%s10 + $0x38] sm:$0xff]
  %v2195 = vld [vmem:[%s11] sm:$0x1]
  %v2197 = vperm.slane %v2195, 0
  %v2200 = vsel %vm315, %v2179, 0
  %v2203 = vsel %vm315, %v2180, 0
  %v2206 = vsel %vm315, %v2181, 0
  %v2209 = vsel %vm315, %v2182, 0
  %v2212 = vsel %vm315, %v2183, 0
  %v2215 = vsel %vm315, %v2184, 0
  %v2218 = vsel %vm315, %v2185, 0
  %v2221 = vsel %vm315, %v2186, 0
  %2223 = vmatpush.msra.mxu0 0.0
  %2224 = vmatpush.msra.mxu0 0.0
  %2225 = vmatpush.msra.mxu0 0.0
  %2226 = vmatpush.msra.mxu0 0.0
  %2227 = vmatpush.msra.mxu0 0.0
  %2228 = vmatpush.msra.mxu0 0.0
  %2229 = vmatpush.msra.mxu0 0.0
  %2230 = vmatpush.msra.mxu0 0.0
  %2231 = vmatpush.msra.mxu0 %v2194
  %2232 = vmatpush.msra.mxu0 %v2193
  %2233 = vmatpush.msra.mxu0 %v2192
  %2234 = vmatpush.msra.mxu0 %v2191
  %2235 = vmatpush.msra.mxu0 %v2190
  %2236 = vmatpush.msra.mxu0 %v2189
  %2237 = vmatpush.msra.mxu0 %v2188
  %2238 = vmatpush.msra.mxu0 %v2187
  %2239 = vmatmul.f32.gmra.mxu0 %v2200
  %v2240 = vpop.f32.mrf.mxu0
  %v2241 = vadd.f32 %v2197, %v2240
  %2242 = vmatmul.f32.gmra.mxu0 %v2203
  %v2243 = vpop.f32.mrf.mxu0
  %v2244 = vadd.f32 %v2197, %v2243
  %2245 = vmatmul.f32.gmra.mxu0 %v2206
  %v2246 = vpop.f32.mrf.mxu0
  %v2247 = vadd.f32 %v2197, %v2246
  %2248 = vmatmul.f32.gmra.mxu0 %v2209
  %v2249 = vpop.f32.mrf.mxu0
  %v2250 = vadd.f32 %v2197, %v2249
  %2251 = vmatmul.f32.gmra.mxu0 %v2212
  %v2252 = vpop.f32.mrf.mxu0
  %v2253 = vadd.f32 %v2197, %v2252
  %2254 = vmatmul.f32.gmra.mxu0 %v2215
  %v2255 = vpop.f32.mrf.mxu0
  %v2256 = vadd.f32 %v2197, %v2255
  %2257 = vmatmul.f32.gmra.mxu0 %v2218
  %v2258 = vpop.f32.mrf.mxu0
  %v2259 = vadd.f32 %v2197, %v2258
  %2260 = vmatmul.f32.gmra.mxu0 %v2221
  %v2261 = vpop.f32.mrf.mxu0
  %v2262 = vadd.f32 %v2197, %v2261
  %2263 = vdwg.mxu0
  %v2264 = vtanh.pop %v2241
  %v2265 = vtanh.pop %v2244
  %v2266 = vtanh.pop %v2247
  %v2267 = vtanh.pop %v2250
  %v2268 = vtanh.pop %v2253
  %v2269 = vtanh.pop %v2256
  %v2270 = vtanh.pop %v2259
  %v2271 = vtanh.pop %v2262
  %v2272 = vld [vmem:[%s12] sm:$0x1]
  %v2274 = vperm.slane %v2272, 0
  %v2276 = vmul.f32 %v2264, %v2274
  %v2277 = vmul.f32 %v2265, %v2274
  %v2278 = vmul.f32 %v2266, %v2274
  %v2279 = vmul.f32 %v2267, %v2274
  %v2280 = vmul.f32 %v2268, %v2274
  %v2281 = vmul.f32 %v2269, %v2274
  %v2282 = vmul.f32 %v2270, %v2274
  %v2283 = vmul.f32 %v2271, %v2274
  %v2284 = vsel %vm76, %v2276, 0.0
  %2285 = vadd.xlane.f32.xlu0 %v2284
  %v2286 = vpop.xlane.xlu0 %2285
  %v2287 = vsel %vm76, %v2277, 0.0
  %2288 = vadd.xlane.f32.xlu0 %v2287
  %v2289 = vpop.xlane.xlu0 %2288
  %v2290 = vsel %vm76, %v2278, 0.0
  %2291 = vadd.xlane.f32.xlu0 %v2290
  %v2292 = vpop.xlane.xlu0 %2291
  %v2293 = vsel %vm76, %v2279, 0.0
  %2294 = vadd.xlane.f32.xlu0 %v2293
  %v2295 = vpop.xlane.xlu0 %2294
  %v2296 = vsel %vm76, %v2280, 0.0
  %2297 = vadd.xlane.f32.xlu0 %v2296
  %v2298 = vpop.xlane.xlu0 %2297
  %v2299 = vsel %vm76, %v2281, 0.0
  %2300 = vadd.xlane.f32.xlu0 %v2299
  %v2301 = vpop.xlane.xlu0 %2300
  %v2302 = vsel %vm76, %v2282, 0.0
  %2303 = vadd.xlane.f32.xlu0 %v2302
  %v2304 = vpop.xlane.xlu0 %2303
  %v2305 = vsel %vm76, %v2283, 0.0
  %2306 = vadd.xlane.f32.xlu0 %v2305
  %v2307 = vpop.xlane.xlu0 %2306
  %vm2308 = vcmp.gt.f32.partialorder %v46, 0.0
  %vm2309 = vcmp.gt.f32.partialorder %v47, 0.0
  %vm2310 = vcmp.gt.f32.partialorder %v48, 0.0
  %vm2311 = vcmp.gt.f32.partialorder %v49, 0.0
  %vm2312 = vcmp.gt.f32.partialorder %v50, 0.0
  %vm2313 = vcmp.gt.f32.partialorder %v51, 0.0
  %vm2314 = vcmp.gt.f32.partialorder %v52, 0.0
  %vm2315 = vcmp.gt.f32.partialorder %v53, 0.0
  %v2316 = vsel %vm2308, %v2286, -1e+30
  %v2317 = vsel %vm2309, %v2289, -1e+30
  %v2318 = vsel %vm2310, %v2292, -1e+30
  %v2319 = vsel %vm2311, %v2295, -1e+30
  %v2320 = vsel %vm2312, %v2298, -1e+30
  %v2321 = vsel %vm2313, %v2301, -1e+30
  %v2322 = vsel %vm2314, %v2304, -1e+30
  %v2323 = vsel %vm2315, %v2307, -1e+30
  %vm2324 = vcmask 7168
  %v2325 = vsel %vm2324, %v2316, -inf
  %v2326 = vsel %vm2324, %v2317, -inf
  %v2327 = vsel %vm2324, %v2318, -inf
  %v2328 = vsel %vm2324, %v2319, -inf
  %v2329 = vsel %vm2324, %v2320, -inf
  %v2330 = vmax.f32 %v2325, %v2329
  %v2331 = vsel %vm2324, %v2321, -inf
  %v2332 = vmax.f32 %v2326, %v2331
  %v2333 = vsel %vm2324, %v2322, -inf
  %v2334 = vmax.f32 %v2327, %v2333
  %v2335 = vsel %vm2324, %v2323, -inf
  %v2336 = vmax.f32 %v2328, %v2335
  %v2337 = vmax.f32 %v2330, %v2332
  %v2338 = vmax.f32 %v2334, %v2336
  %v2339 = vmax.f32 %v2337, %v2338
  %2340 = vmax.xlane.f32.xlu0 %v2339
  %v2341 = vpop.xlane.xlu0 %2340
  %v2342 = vrot.slane %v2341, 4
  %v2343 = vmax.f32 %v2341, %v2342
  %v2344 = vrot.slane %v2343, 2
  %v2345 = vmax.f32 %v2343, %v2344
  %v2346 = vrot.slane %v2345, 1
  %v2347 = vmax.f32 %v2345, %v2346
  %s2348 = vtos %v2347
  %v2349 = vstv %s2348
  %v2350 = vsub.f32 %v2286, %v2349
  %v2351 = vsub.f32 %v2289, %v2349
  %v2352 = vsub.f32 %v2292, %v2349
  %v2353 = vsub.f32 %v2295, %v2349
  %v2354 = vsub.f32 %v2298, %v2349
  %v2355 = vsub.f32 %v2301, %v2349
  %v2356 = vsub.f32 %v2304, %v2349
  %v2357 = vsub.f32 %v2307, %v2349
  %v2358 = vmin.f32 %v2350, 0.0
  %v2359 = vmin.f32 %v2351, 0.0
  %v2360 = vmin.f32 %v2352, 0.0
  %v2361 = vmin.f32 %v2353, 0.0
  %v2362 = vmin.f32 %v2354, 0.0
  %v2363 = vmin.f32 %v2355, 0.0
  %v2364 = vmin.f32 %v2356, 0.0
  %v2365 = vmin.f32 %v2357, 0.0
  %v2366 = vmul.f32 %v2358, 1.442695
  %v2367 = vpow.pop %v2366
  %v2368 = vmul.f32 %v2359, 1.442695
  %v2369 = vpow.pop %v2368
  %v2370 = vmul.f32 %v2360, 1.442695
  %v2371 = vpow.pop %v2370
  %v2372 = vmul.f32 %v2361, 1.442695
  %v2373 = vpow.pop %v2372
  %v2374 = vmul.f32 %v2362, 1.442695
  %v2375 = vpow.pop %v2374
  %v2376 = vmul.f32 %v2363, 1.442695
  %v2377 = vpow.pop %v2376
  %v2378 = vmul.f32 %v2364, 1.442695
  %v2379 = vpow.pop %v2378
  %v2380 = vmul.f32 %v2365, 1.442695
  %v2381 = vpow.pop %v2380
  %v2382 = vmul.f32 %v2367, %v46
  %v2383 = vmul.f32 %v2369, %v47
  %v2384 = vmul.f32 %v2371, %v48
  %v2385 = vmul.f32 %v2373, %v49
  %v2386 = vmul.f32 %v2375, %v50
  %v2387 = vmul.f32 %v2377, %v51
  %v2388 = vmul.f32 %v2379, %v52
  %v2389 = vmul.f32 %v2381, %v53
  %v2390 = vsel %vm2324, %v2382, 0.0
  %v2391 = vsel %vm2324, %v2383, 0.0
  %v2392 = vadd.f32 %v2390, %v2391
  %v2393 = vsel %vm2324, %v2384, 0.0
  %v2394 = vadd.f32 %v2392, %v2393
  %v2395 = vsel %vm2324, %v2385, 0.0
  %v2396 = vadd.f32 %v2394, %v2395
  %v2397 = vsel %vm2324, %v2386, 0.0
  %v2398 = vadd.f32 %v2396, %v2397
  %v2399 = vsel %vm2324, %v2387, 0.0
  %v2400 = vadd.f32 %v2398, %v2399
  %v2401 = vsel %vm2324, %v2388, 0.0
  %v2402 = vadd.f32 %v2400, %v2401
  %v2403 = vsel %vm2324, %v2389, 0.0
  %v2404 = vadd.f32 %v2402, %v2403
  %2405 = vadd.xlane.f32.xlu0 %v2404
  %v2406 = vpop.xlane.xlu0 %2405
  %v2407 = vrot.slane %v2406, 4
  %v2408 = vadd.f32 %v2406, %v2407
  %v2409 = vrot.slane %v2408, 2
  %v2410 = vadd.f32 %v2408, %v2409
  %v2411 = vrot.slane %v2410, 1
  %v2412 = vadd.f32 %v2410, %v2411
  %s2413 = vtos %v2412
  %v2414 = vstv %s2413
  %v2415 = vrcp.pop %v2414
  %v2416 = vmul.f32 %v2382, %v2415
  %v2417 = vmul.f32 %v2383, %v2415
  %v2418 = vmul.f32 %v2384, %v2415
  %v2419 = vmul.f32 %v2385, %v2415
  %v2420 = vmul.f32 %v2386, %v2415
  %v2421 = vmul.f32 %v2387, %v2415
  %v2422 = vmul.f32 %v2388, %v2415
  %v2423 = vmul.f32 %v2389, %v2415
  %2424 = vst.msk [vmem:[%s14] sm:$0xff] %vm2324, %v2416
  %2425 = vst.msk [vmem:[%s14 + $0x8] sm:$0xff] %vm2324, %v2417
  %2426 = vst.msk [vmem:[%s14 + $0x10] sm:$0xff] %vm2324, %v2418
  %2427 = vst.msk [vmem:[%s14 + $0x18] sm:$0xff] %vm2324, %v2419
  %2428 = vst.msk [vmem:[%s14 + $0x20] sm:$0xff] %vm2324, %v2420
  %2429 = vst.msk [vmem:[%s14 + $0x28] sm:$0xff] %vm2324, %v2421
  %2430 = vst.msk [vmem:[%s14 + $0x30] sm:$0xff] %vm2324, %v2422
  %2431 = vst.msk [vmem:[%s14 + $0x38] sm:$0xff] %vm2324, %v2423
  %2433 = vset.pattern.permute.xlu0 0
  %2434 = vperm.xlu0 %2433, %v2416
  %v2435 = vpop.permute.xlu0 %2434
  %2438 = vset.pattern.permute.xlu0 0
  %2439 = vperm.xlu0 %2438, %v2417
  %v2440 = vpop.permute.xlu0 %2439
  %2443 = vset.pattern.permute.xlu0 0
  %2444 = vperm.xlu0 %2443, %v2418
  %v2445 = vpop.permute.xlu0 %2444
  %2448 = vset.pattern.permute.xlu0 0
  %2449 = vperm.xlu0 %2448, %v2419
  %v2450 = vpop.permute.xlu0 %2449
  %2453 = vset.pattern.permute.xlu0 0
  %2454 = vperm.xlu0 %2453, %v2420
  %v2455 = vpop.permute.xlu0 %2454
  %2458 = vset.pattern.permute.xlu0 0
  %2459 = vperm.xlu0 %2458, %v2421
  %v2460 = vpop.permute.xlu0 %2459
  %2463 = vset.pattern.permute.xlu0 0
  %2464 = vperm.xlu0 %2463, %v2422
  %v2465 = vpop.permute.xlu0 %2464
  %2468 = vset.pattern.permute.xlu0 0
  %2469 = vperm.xlu0 %2468, %v2423
  %v2470 = vpop.permute.xlu0 %2469
  %v2472 = vmul.f32 %v2435, %v2179
  %v2473 = vmul.f32 %v2440, %v2180
  %v2474 = vmul.f32 %v2445, %v2181
  %v2475 = vmul.f32 %v2450, %v2182
  %v2476 = vmul.f32 %v2455, %v2183
  %v2477 = vmul.f32 %v2460, %v2184
  %v2478 = vmul.f32 %v2465, %v2185
  %v2479 = vmul.f32 %v2470, %v2186
  %v2480 = vsel %vm315, %v2472, 0.0
  %v2481 = vsel %vm315, %v2473, 0.0
  %v2482 = vadd.f32 %v2480, %v2481
  %v2483 = vsel %vm315, %v2474, 0.0
  %v2484 = vadd.f32 %v2482, %v2483
  %v2485 = vsel %vm315, %v2475, 0.0
  %v2486 = vadd.f32 %v2484, %v2485
  %v2487 = vsel %vm315, %v2476, 0.0
  %v2488 = vadd.f32 %v2486, %v2487
  %v2489 = vsel %vm315, %v2477, 0.0
  %v2490 = vadd.f32 %v2488, %v2489
  %v2491 = vsel %vm315, %v2478, 0.0
  %v2492 = vadd.f32 %v2490, %v2491
  %v2493 = vsel %vm315, %v2479, 0.0
  %v2494 = vadd.f32 %v2492, %v2493
  %2495 = vst.msk [vmem:[%s13] sm:$0xff] %vm315, %v2494
  // Predicated region
  $region54: #{han_forward.2} parent=0 // pred_check
    _
  $region55: #{han_forward.2} parent=0 // pred_check_branch
    %2497 = sbr.rel (0) target = $region57
  $region56: #{han_forward.2} parent=0 // pred_region
    _
  $region57: #{han_forward.2} parent=0 // pred_fallthru
    _
  // Predicated region
  $region58: #{han_forward.2} parent=0 // pred_check
    _
  $region59: #{han_forward.2} parent=0 // pred_check_branch
    %2499 = sbr.rel (0) target = $region61
  $region60: #{han_forward.2} parent=0 // pred_region
    _
  $region61: #{han_forward.2} parent=0 // pred_fallthru
    _
  // Predicated region
  $region62: #{han_forward.2} parent=0 // pred_check
    _
  $region63: #{han_forward.2} parent=0 // pred_check_branch
    %2501 = sbr.rel (0) target = $region65
  $region64: #{han_forward.2} parent=0 // pred_region
    _
  $region65: #{han_forward.2} parent=0 // pred_fallthru
    _
  // Predicated region
  $region66: #{han_forward.2} parent=0 // pred_check
    _
  $region67: #{han_forward.2} parent=0 // pred_check_branch
    %2503 = sbr.rel (0) target = $region69
  $region68: #{han_forward.2} parent=0 // pred_region
    _
  $region69: #{han_forward.2} parent=0 // pred_fallthru
    _

</llo_original>
